<compile_context>
chip_gen: v7x
topology: tpu7x:2x2x1
jax: 0.10.0
libtpu: 0.0.40
codegen_flags: <defaults>
</compile_context>

<pallas_src>
import math
import numpy as np
import jax
import jax.numpy as jnp
from jax import lax
from jax.experimental import pallas as pl
from jax.experimental.pallas import tpu as pltpu


# ----------------------------------------------------------------------------
# Plain-JAX glue: im2col / col2im matching torch.nn.Unfold / F.fold exactly.
# ----------------------------------------------------------------------------
def unfold(x, ksize, stride, padding):
    """x: (B, C, H, W) -> (B, C*kh*kw, L), same layout as nn.Unfold."""
    b, c, H, W = x.shape
    kh, kw = ksize
    xp = jnp.pad(x, ((0, 0), (0, 0), (padding, padding), (padding, padding)))
    oh = (H + 2 * padding - kh) // stride + 1
    ow = (W + 2 * padding - kw) // stride + 1
    cols = []
    for i in range(kh):
        for j in range(kw):
            patch = xp[:, :, i:i + stride * (oh - 1) + 1:stride,
                             j:j + stride * (ow - 1) + 1:stride]   # (b,c,oh,ow)
            cols.append(patch.reshape(b, c, oh * ow))
    cols = jnp.stack(cols, axis=2)                                 # (b,c,kh*kw,L)
    return cols.reshape(b, c * kh * kw, oh * ow)


def fold(cols, output_size, ksize, stride, padding):
    """cols: (B, C*kh*kw, L) -> (B, C, H, W), overlapping patches summed (F.fold)."""
    b = cols.shape[0]
    kh, kw = ksize
    H, W = output_size
    oh = (H + 2 * padding - kh) // stride + 1
    ow = (W + 2 * padding - kw) // stride + 1
    c = cols.shape[1] // (kh * kw)
    cols = cols.reshape(b, c, kh, kw, oh, ow)
    out = jnp.zeros((b, c, H + 2 * padding, W + 2 * padding), cols.dtype)
    for i in range(kh):
        for j in range(kw):
            out = out.at[:, :, i:i + stride * (oh - 1) + 1:stride,
                               j:j + stride * (ow - 1) + 1:stride].add(cols[:, :, i, j])
    return out[:, :, padding:padding + H, padding:padding + W]


# ----------------------------------------------------------------------------
# Pallas kernel: multi-head attention (+ residual) for one (batch, Lq-tile)
# block; channel-sublane / sequence-lane layout throughout.
# ----------------------------------------------------------------------------
def _make_mha_kernel(C, Lkv, num_heads):
    H = num_heads
    bf16 = jnp.bfloat16

    def mha_kernel(xq_ref, xkv_ref, wq_ref, bq_ref, wkv_ref, bkv_ref,
                   mask_ref, wo_ref, bo_ref, out_ref, e_ref):
        # ---- projections (f32; K=C contraction is tiny) --------------------
        # 1/sqrt(head_dim) already folded into wq / bq by the wrapper.
        qp = jnp.dot(wq_ref[...], xq_ref[...],
                     preferred_element_type=jnp.float32) + bq_ref[...]    # (C, tLq)
        kvp = jnp.dot(wkv_ref[...], xkv_ref[...],
                      preferred_element_type=jnp.float32) + bkv_ref[...]  # (2C, Lkv)

        # ---- head-block-masked, lane-replicated K / V (bf16) ----------------
        # mask (precomputed in wrapper): lane block h keeps only head h's
        # channels; rows C.. are the V copy of the same pattern.
        mask = mask_ref[...]                                       # (2C, H*Lkv) bf16
        kv_wide = jnp.concatenate([kvp.astype(bf16)] * H, axis=1) * mask
        k_wide = kv_wide[:C, :]                                    # (C, H*Lkv)
        v_wide = kv_wide[C:, :]                                    # (C, H*Lkv)
        sel = mask[:C, :]           # one-hot head selector, reused for denominators

        # ---- all-head scores in ONE MXU matmul ------------------------------
        q_t = jnp.transpose(qp).astype(bf16)                       # tiny (tLq, C)
        s = jnp.dot(q_t, k_wide, preferred_element_type=jnp.float32)  # (tLq, H*Lkv)

        # ---- per-head shifted exp, written in place into bf16 scratch -------
        # (no concat, no normalization pass; stats stay f32)
        for h in range(H):
            sh = s[:, h * Lkv:(h + 1) * Lkv]
            sh = sh - jnp.max(sh, axis=-1, keepdims=True)
            e_ref[:, h * Lkv:(h + 1) * Lkv] = jnp.exp(sh).astype(bf16)
        e = e_ref[...]                                             # (tLq, H*Lkv) bf16

        # ---- unnormalized values + channel-major denominators (two NT matmuls)
        o_un = lax.dot_general(v_wide, e, (((1,), (1,)), ((), ())),
                               preferred_element_type=jnp.float32)  # (C, tLq)
        d_cm = lax.dot_general(sel, e, (((1,), (1,)), ((), ())),
                               preferred_element_type=jnp.float32)  # (C, tLq)
        o = o_un * pl.reciprocal(d_cm, approx=True)

        # ---- out-proj + mmcv residual (identity = query), lane-dense store ---
        out_ref[...] = (xq_ref[...]
                        + jnp.dot(wo_ref[...].astype(bf16), o.astype(bf16),
                                  preferred_element_type=jnp.float32)
                        + bo_ref[...])

    return mha_kernel


def mha_pallas(xq_cm, xkv_cm, params, num_heads, *, lq_tile=128):
    """xq_cm: (B, C, Lq), xkv_cm: (B, C, Lkv) -> (B, C, Lq), channel-major."""
    B, C, Lq = xq_cm.shape
    Lkv = xkv_cm.shape[2]
    HD = C // num_heads
    scale = 1.0 / math.sqrt(HD)

    # Pad Lq to a multiple of the Lq tile: unmasked lane-dense stores and an
    # even Lq grid (padded columns are sliced off after the call).
    Lqp = ((Lq + lq_tile - 1) // lq_tile) * lq_tile
    if Lqp != Lq:
        xq_cm = jnp.pad(xq_cm, ((0, 0), (0, 0), (0, Lqp - Lq)))
    n_lq = Lqp // lq_tile

    # Parameter preprocessing (free, host/XLA side):
    #  - fold softmax scale into the Q projection,
    #  - fuse K and V projection weights/biases,
    #  - precompute the grid-invariant head-block mask (bf16).
    wq_s = params["wq"] * scale                                      # (C, C)
    bq_s = (params["bq"] * scale).reshape(C, 1)
    wkv = jnp.concatenate([params["wk"], params["wv"]], axis=0)      # (2C, C)
    bkv = jnp.concatenate([params["bk"], params["bv"]], axis=0).reshape(2 * C, 1)
    wo = params["wo"]                                                # (C, C)
    bo = params["bo"].reshape(C, 1)

    row_head = (np.arange(2 * C) % C) // HD                          # channel -> head
    col_head = np.arange(num_heads * Lkv) // Lkv                     # lane block -> head
    mask_np = (row_head[:, None] == col_head[None, :]).astype(np.float32)
    mask = jnp.asarray(mask_np, dtype=jnp.bfloat16)                  # (2C, H*Lkv)

    kernel = _make_mha_kernel(C, Lkv, num_heads)
    wmap = lambda b, t: (0, 0)

    out = pl.pallas_call(
        kernel,
        out_shape=jax.ShapeDtypeStruct((B, C, Lqp), jnp.float32),
        grid_spec=pltpu.PrefetchScalarGridSpec(
            num_scalar_prefetch=0,
            grid=(B, n_lq),
            in_specs=[
                pl.BlockSpec((None, C, lq_tile), lambda b, t: (b, 0, t)),  # xq  (C,tLq)
                pl.BlockSpec((None, C, Lkv), lambda b, t: (b, 0, 0)),      # xkv (C,Lkv)
                pl.BlockSpec((C, C), wmap),                                # wq (scaled)
                pl.BlockSpec((C, 1), wmap),                                # bq (scaled)
                pl.BlockSpec((2 * C, C), wmap),                            # wkv fused
                pl.BlockSpec((2 * C, 1), wmap),                            # bkv fused
                pl.BlockSpec((2 * C, num_heads * Lkv), wmap),              # head mask
                pl.BlockSpec((C, C), wmap),                                # wo
                pl.BlockSpec((C, 1), wmap),                                # bo
            ],
            out_specs=pl.BlockSpec((None, C, lq_tile), lambda b, t: (b, 0, t)),
            scratch_shapes=[pltpu.VMEM((lq_tile, num_heads * Lkv), jnp.bfloat16)],
        ),
        compiler_params=pltpu.CompilerParams(
            dimension_semantics=("parallel", "parallel"),
            vmem_limit_bytes=32 * 1024 * 1024),
    )(xq_cm, xkv_cm, wq_s, bq_s, wkv, bkv, mask, wo, bo)
    return out[:, :, :Lq]


# ----------------------------------------------------------------------------
# CRAU forward
# ----------------------------------------------------------------------------
def crau_forward(feat, src, params, *, ksize=(3, 3), stride=2, padding=1,
                 num_heads=8):
    b, c, H, W = src.shape
    kernel_numel = ksize[0] * ksize[1]

    # key_value_unfold with (1,1) kernel == flatten spatial; keep channel-major.
    kv_cm = feat.reshape(b, c, -1)                                    # (b, C, Lkv)

    # query columns: unfold(src) -> (b, C*9, L) -> (b, C, 9*L)  (channel-major).
    cols = unfold(src, ksize, stride, padding)                        # (b, C*9, L)
    L = cols.shape[-1]
    xq_cm = cols.reshape(b, c, kernel_numel * L)                      # (b, C, Lq)

    # attention (Pallas kernel), channel-major in and out (no transposes).
    attn_out = mha_pallas(xq_cm, kv_cm, params, num_heads)            # (b, C, Lq)

    # back to column layout (no transpose needed) and fold.
    cols_out = attn_out.reshape(b, c * kernel_numel, L)
    folded = fold(cols_out, (H, W), ksize, stride, padding)           # (b, C, H, W)
    return folded * src


# ----------------------------------------------------------------------------
# Pure-JAX reference (standard head-split MHA, torch-style layouts).
# ----------------------------------------------------------------------------
def mha_ref(query, kv, params, num_heads):
    B, Lq, C = query.shape
    hd = C // num_heads
    q = query @ params["wq"].T + params["bq"]
    k = kv @ params["wk"].T + params["bk"]
    v = kv @ params["wv"].T + params["bv"]
    q = q.reshape(B, Lq, num_heads, hd) / math.sqrt(hd)
    k = k.reshape(B, -1, num_heads, hd)
    v = v.reshape(B, -1, num_heads, hd)
    s = jnp.einsum("bqhd,bkhd->bhqk", q, k)
    p = jax.nn.softmax(s, axis=-1)
    o = jnp.einsum("bhqk,bkhd->bqhd", p, v).reshape(B, Lq, C)
    return query + (o @ params["wo"].T + params["bo"])


def crau_ref(feat, src, params, *, ksize=(3, 3), stride=2, padding=1, num_heads=8):
    b, c, H, W = src.shape
    kn = ksize[0] * ksize[1]
    kv = feat.reshape(b, c, -1).transpose(0, 2, 1)
    cols = unfold(src, ksize, stride, padding)
    L = cols.shape[-1]
    query = cols.reshape(b, c, kn * L).transpose(0, 2, 1)
    attn_out = mha_ref(query, kv, params, num_heads)
    cols_out = attn_out.transpose(0, 2, 1).reshape(b, c * kn, L)
    return fold(cols_out, (H, W), ksize, stride, padding) * src


# ----------------------------------------------------------------------------
if __name__ == "__main__":
    B, C, H, W = 2, 16, 16, 16      # in_channels=16 (divisible by num_heads=8)
    NUM_HEADS = 8

    key = jax.random.PRNGKey(0)
    ks = jax.random.split(key, 12)
    feat = jax.random.normal(ks[0], (B, C, H, W), jnp.float32)
    src = jax.random.normal(ks[1], (B, C, H, W), jnp.float32)

    # deterministic synthetic MHA parameters (torch Linear layout: (out, in))
    params = {
        "wq": jax.random.normal(ks[2], (C, C), jnp.float32) * 0.1,
        "wk": jax.random.normal(ks[3], (C, C), jnp.float32) * 0.1,
        "wv": jax.random.normal(ks[4], (C, C), jnp.float32) * 0.1,
        "bq": jax.random.normal(ks[5], (C,), jnp.float32) * 0.1,
        "bk": jax.random.normal(ks[6], (C,), jnp.float32) * 0.1,
        "bv": jax.random.normal(ks[7], (C,), jnp.float32) * 0.1,
        "wo": jax.random.normal(ks[8], (C, C), jnp.float32) * 0.1,
        "bo": jax.random.normal(ks[9], (C,), jnp.float32) * 0.1,
    }

    out = jax.jit(crau_forward)(feat, src, params)
    out = jax.block_until_ready(out)
    assert out.shape == (B, C, H, W), out.shape

    ref = jax.block_until_ready(jax.jit(crau_ref)(feat, src, params))
    # tolerance loosened for bf16 MXU operands (f32 accumulation) + approx recip.
    np.testing.assert_allclose(np.asarray(out), np.asarray(ref),
                               rtol=2e-2, atol=2e-2)
    print("KERNEL_OK")
</pallas_src>

<mosaic_0001>
module attributes {stable_mosaic.version = 11 : i64} {
  func.func @mha_kernel(%arg0: i32, %arg1: i32, %arg2: memref<1x16x128xf32, #tpu.memory_space<vmem>>, %arg3: memref<1x16x256xf32, #tpu.memory_space<vmem>>, %arg4: memref<16x16xf32, #tpu.memory_space<vmem>>, %arg5: memref<16x1xf32, #tpu.memory_space<vmem>>, %arg6: memref<32x16xf32, #tpu.memory_space<vmem>>, %arg7: memref<32x1xf32, #tpu.memory_space<vmem>>, %arg8: memref<32x2048xbf16, #tpu.memory_space<vmem>>, %arg9: memref<16x16xf32, #tpu.memory_space<vmem>>, %arg10: memref<16x1xf32, #tpu.memory_space<vmem>>, %arg11: memref<1x16x128xf32, #tpu.memory_space<vmem>>, %arg12: memref<128x2048xbf16, #tpu.memory_space<vmem>>) attributes {dimension_semantics = [#tpu.dimension_semantics<parallel>, #tpu.dimension_semantics<parallel>], iteration_bounds = array<i64: 2, 5>, scalar_prefetch = 0 : i64, scratch_operands = 1 : i64, tpu.core_type = #tpu.core_type<tc>, window_params = [{transform_indices = @transform_0, window_bounds = array<i64: 1, 16, 128>}, {transform_indices = @transform_1, window_bounds = array<i64: 1, 16, 256>}, {pipeline_mode = #tpu.pipeline_mode<synchronous>, transform_indices = @transform_2, window_bounds = array<i64: 16, 16>}, {pipeline_mode = #tpu.pipeline_mode<synchronous>, transform_indices = @transform_3, window_bounds = array<i64: 16, 1>}, {pipeline_mode = #tpu.pipeline_mode<synchronous>, transform_indices = @transform_4, window_bounds = array<i64: 32, 16>}, {pipeline_mode = #tpu.pipeline_mode<synchronous>, transform_indices = @transform_5, window_bounds = array<i64: 32, 1>}, {pipeline_mode = #tpu.pipeline_mode<synchronous>, transform_indices = @transform_6, window_bounds = array<i64: 32, 2048>}, {pipeline_mode = #tpu.pipeline_mode<synchronous>, transform_indices = @transform_7, window_bounds = array<i64: 16, 16>}, {pipeline_mode = #tpu.pipeline_mode<synchronous>, transform_indices = @transform_8, window_bounds = array<i64: 16, 1>}, {transform_indices = @transform_9, window_bounds = array<i64: 1, 16, 128>}]} {
    %c0 = arith.constant 0 : index
    %c0_0 = arith.constant 0 : index
    %0 = vector.load %arg4[%c0, %c0_0] : memref<16x16xf32, #tpu.memory_space<vmem>>, vector<16x16xf32>
    %c0_1 = arith.constant 0 : index
    %c0_2 = arith.constant 0 : index
    %c0_3 = arith.constant 0 : index
    %1 = vector.load %arg2[%c0_1, %c0_2, %c0_3] : memref<1x16x128xf32, #tpu.memory_space<vmem>>, vector<1x16x128xf32>
    %2 = vector.shape_cast %1 : vector<1x16x128xf32> to vector<16x128xf32>
    %cst = arith.constant dense<0.000000e+00> : vector<16x128xf32>
    %3 = tpu.matmul %0, %2, %cst {dimension_numbers = #tpu.dot_dimension_numbers<[1], [0], [0], [1], [0, 0, 1, 1], [], []>} : vector<16x16xf32>, vector<16x128xf32>, vector<16x128xf32> -> vector<16x128xf32>
    %c0_4 = arith.constant 0 : index
    %c0_5 = arith.constant 0 : index
    %4 = vector.load %arg5[%c0_4, %c0_5] : memref<16x1xf32, #tpu.memory_space<vmem>>, vector<16x1xf32>
    %5 = vector.broadcast %4 : vector<16x1xf32> to vector<16x128xf32>
    %6 = arith.addf %3, %5 : vector<16x128xf32>
    %c0_6 = arith.constant 0 : index
    %c0_7 = arith.constant 0 : index
    %7 = vector.load %arg6[%c0_6, %c0_7] : memref<32x16xf32, #tpu.memory_space<vmem>>, vector<32x16xf32>
    %c0_8 = arith.constant 0 : index
    %c0_9 = arith.constant 0 : index
    %c0_10 = arith.constant 0 : index
    %8 = vector.load %arg3[%c0_8, %c0_9, %c0_10] : memref<1x16x256xf32, #tpu.memory_space<vmem>>, vector<1x16x256xf32>
    %9 = vector.shape_cast %8 : vector<1x16x256xf32> to vector<16x256xf32>
    %cst_11 = arith.constant dense<0.000000e+00> : vector<32x256xf32>
    %10 = tpu.matmul %7, %9, %cst_11 {dimension_numbers = #tpu.dot_dimension_numbers<[1], [0], [0], [1], [0, 0, 1, 1], [], []>} : vector<32x16xf32>, vector<16x256xf32>, vector<32x256xf32> -> vector<32x256xf32>
    %c0_12 = arith.constant 0 : index
    %c0_13 = arith.constant 0 : index
    %11 = vector.load %arg7[%c0_12, %c0_13] : memref<32x1xf32, #tpu.memory_space<vmem>>, vector<32x1xf32>
    %12 = vector.broadcast %11 : vector<32x1xf32> to vector<32x256xf32>
    %13 = arith.addf %10, %12 : vector<32x256xf32>
    %c0_14 = arith.constant 0 : index
    %c0_15 = arith.constant 0 : index
    %14 = vector.load %arg8[%c0_14, %c0_15] : memref<32x2048xbf16, #tpu.memory_space<vmem>>, vector<32x2048xbf16>
    %15 = arith.truncf %13 : vector<32x256xf32> to vector<32x256xbf16>
    %16 = tpu.concatenate %15, %15, %15, %15, %15, %15, %15, %15 in 1 : vector<32x256xbf16>, vector<32x256xbf16>, vector<32x256xbf16>, vector<32x256xbf16>, vector<32x256xbf16>, vector<32x256xbf16>, vector<32x256xbf16>, vector<32x256xbf16> -> vector<32x2048xbf16>
    %17 = arith.mulf %16, %14 : vector<32x2048xbf16>
    %18 = vector.extract_strided_slice %17 {offsets = [0, 0], sizes = [16, 2048], strides = [1, 1]} : vector<32x2048xbf16> to vector<16x2048xbf16>
    %19 = vector.extract_strided_slice %17 {offsets = [16, 0], sizes = [16, 2048], strides = [1, 1]} : vector<32x2048xbf16> to vector<16x2048xbf16>
    %20 = vector.extract_strided_slice %14 {offsets = [0, 0], sizes = [16, 2048], strides = [1, 1]} : vector<32x2048xbf16> to vector<16x2048xbf16>
    %21 = tpu.transpose %6, [1, 0] : vector<16x128xf32> -> vector<128x16xf32>
    %22 = arith.truncf %21 : vector<128x16xf32> to vector<128x16xbf16>
    %cst_16 = arith.constant dense<0.000000e+00> : vector<128x2048xf32>
    %23 = tpu.matmul %22, %18, %cst_16 {dimension_numbers = #tpu.dot_dimension_numbers<[1], [0], [0], [1], [0, 0, 1, 1], [], []>} : vector<128x16xbf16>, vector<16x2048xbf16>, vector<128x2048xf32> -> vector<128x2048xf32>
    %24 = vector.extract_strided_slice %23 {offsets = [0, 0], sizes = [128, 256], strides = [1, 1]} : vector<128x2048xf32> to vector<128x256xf32>
    %cst_17 = arith.constant dense<0xFF800000> : vector<128xf32>
    %25 = vector.multi_reduction <maximumf>, %24, %cst_17 [1] : vector<128x256xf32> to vector<128xf32>
    %26 = vector.shape_cast %25 : vector<128xf32> to vector<128x1xf32>
    %27 = vector.broadcast %26 : vector<128x1xf32> to vector<128x256xf32>
    %28 = arith.subf %24, %27 : vector<128x256xf32>
    %29 = math.exp %28 : vector<128x256xf32>
    %30 = arith.truncf %29 : vector<128x256xf32> to vector<128x256xbf16>
    %c0_18 = arith.constant 0 : index
    %c0_19 = arith.constant 0 : index
    %31 = vector.load %arg12[%c0_18, %c0_19] : memref<128x2048xbf16, #tpu.memory_space<vmem>>, vector<128x256xbf16>
    tpu.vector_store %arg12[%c0_18, %c0_19], %30 {strides = array<i32>} : memref<128x2048xbf16, #tpu.memory_space<vmem>>, vector<128x256xbf16>,
    %32 = vector.extract_strided_slice %23 {offsets = [0, 256], sizes = [128, 256], strides = [1, 1]} : vector<128x2048xf32> to vector<128x256xf32>
    %cst_20 = arith.constant dense<0xFF800000> : vector<128xf32>
    %33 = vector.multi_reduction <maximumf>, %32, %cst_20 [1] : vector<128x256xf32> to vector<128xf32>
    %34 = vector.shape_cast %33 : vector<128xf32> to vector<128x1xf32>
    %35 = vector.broadcast %34 : vector<128x1xf32> to vector<128x256xf32>
    %36 = arith.subf %32, %35 : vector<128x256xf32>
    %37 = math.exp %36 : vector<128x256xf32>
    %38 = arith.truncf %37 : vector<128x256xf32> to vector<128x256xbf16>
    %c0_21 = arith.constant 0 : index
    %c256 = arith.constant 256 : index
    %39 = vector.load %arg12[%c0_21, %c256] : memref<128x2048xbf16, #tpu.memory_space<vmem>>, vector<128x256xbf16>
    tpu.vector_store %arg12[%c0_21, %c256], %38 {strides = array<i32>} : memref<128x2048xbf16, #tpu.memory_space<vmem>>, vector<128x256xbf16>,
    %40 = vector.extract_strided_slice %23 {offsets = [0, 512], sizes = [128, 256], strides = [1, 1]} : vector<128x2048xf32> to vector<128x256xf32>
    %cst_22 = arith.constant dense<0xFF800000> : vector<128xf32>
    %41 = vector.multi_reduction <maximumf>, %40, %cst_22 [1] : vector<128x256xf32> to vector<128xf32>
    %42 = vector.shape_cast %41 : vector<128xf32> to vector<128x1xf32>
    %43 = vector.broadcast %42 : vector<128x1xf32> to vector<128x256xf32>
    %44 = arith.subf %40, %43 : vector<128x256xf32>
    %45 = math.exp %44 : vector<128x256xf32>
    %46 = arith.truncf %45 : vector<128x256xf32> to vector<128x256xbf16>
    %c0_23 = arith.constant 0 : index
    %c512 = arith.constant 512 : index
    %47 = vector.load %arg12[%c0_23, %c512] : memref<128x2048xbf16, #tpu.memory_space<vmem>>, vector<128x256xbf16>
    tpu.vector_store %arg12[%c0_23, %c512], %46 {strides = array<i32>} : memref<128x2048xbf16, #tpu.memory_space<vmem>>, vector<128x256xbf16>,
    %48 = vector.extract_strided_slice %23 {offsets = [0, 768], sizes = [128, 256], strides = [1, 1]} : vector<128x2048xf32> to vector<128x256xf32>
    %cst_24 = arith.constant dense<0xFF800000> : vector<128xf32>
    %49 = vector.multi_reduction <maximumf>, %48, %cst_24 [1] : vector<128x256xf32> to vector<128xf32>
    %50 = vector.shape_cast %49 : vector<128xf32> to vector<128x1xf32>
    %51 = vector.broadcast %50 : vector<128x1xf32> to vector<128x256xf32>
    %52 = arith.subf %48, %51 : vector<128x256xf32>
    %53 = math.exp %52 : vector<128x256xf32>
    %54 = arith.truncf %53 : vector<128x256xf32> to vector<128x256xbf16>
    %c0_25 = arith.constant 0 : index
    %c768 = arith.constant 768 : index
    %55 = vector.load %arg12[%c0_25, %c768] : memref<128x2048xbf16, #tpu.memory_space<vmem>>, vector<128x256xbf16>
    tpu.vector_store %arg12[%c0_25, %c768], %54 {strides = array<i32>} : memref<128x2048xbf16, #tpu.memory_space<vmem>>, vector<128x256xbf16>,
    %56 = vector.extract_strided_slice %23 {offsets = [0, 1024], sizes = [128, 256], strides = [1, 1]} : vector<128x2048xf32> to vector<128x256xf32>
    %cst_26 = arith.constant dense<0xFF800000> : vector<128xf32>
    %57 = vector.multi_reduction <maximumf>, %56, %cst_26 [1] : vector<128x256xf32> to vector<128xf32>
    %58 = vector.shape_cast %57 : vector<128xf32> to vector<128x1xf32>
    %59 = vector.broadcast %58 : vector<128x1xf32> to vector<128x256xf32>
    %60 = arith.subf %56, %59 : vector<128x256xf32>
    %61 = math.exp %60 : vector<128x256xf32>
    %62 = arith.truncf %61 : vector<128x256xf32> to vector<128x256xbf16>
    %c0_27 = arith.constant 0 : index
    %c1024 = arith.constant 1024 : index
    %63 = vector.load %arg12[%c0_27, %c1024] : memref<128x2048xbf16, #tpu.memory_space<vmem>>, vector<128x256xbf16>
    tpu.vector_store %arg12[%c0_27, %c1024], %62 {strides = array<i32>} : memref<128x2048xbf16, #tpu.memory_space<vmem>>, vector<128x256xbf16>,
    %64 = vector.extract_strided_slice %23 {offsets = [0, 1280], sizes = [128, 256], strides = [1, 1]} : vector<128x2048xf32> to vector<128x256xf32>
    %cst_28 = arith.constant dense<0xFF800000> : vector<128xf32>
    %65 = vector.multi_reduction <maximumf>, %64, %cst_28 [1] : vector<128x256xf32> to vector<128xf32>
    %66 = vector.shape_cast %65 : vector<128xf32> to vector<128x1xf32>
    %67 = vector.broadcast %66 : vector<128x1xf32> to vector<128x256xf32>
    %68 = arith.subf %64, %67 : vector<128x256xf32>
    %69 = math.exp %68 : vector<128x256xf32>
    %70 = arith.truncf %69 : vector<128x256xf32> to vector<128x256xbf16>
    %c0_29 = arith.constant 0 : index
    %c1280 = arith.constant 1280 : index
    %71 = vector.load %arg12[%c0_29, %c1280] : memref<128x2048xbf16, #tpu.memory_space<vmem>>, vector<128x256xbf16>
    tpu.vector_store %arg12[%c0_29, %c1280], %70 {strides = array<i32>} : memref<128x2048xbf16, #tpu.memory_space<vmem>>, vector<128x256xbf16>,
    %72 = vector.extract_strided_slice %23 {offsets = [0, 1536], sizes = [128, 256], strides = [1, 1]} : vector<128x2048xf32> to vector<128x256xf32>
    %cst_30 = arith.constant dense<0xFF800000> : vector<128xf32>
    %73 = vector.multi_reduction <maximumf>, %72, %cst_30 [1] : vector<128x256xf32> to vector<128xf32>
    %74 = vector.shape_cast %73 : vector<128xf32> to vector<128x1xf32>
    %75 = vector.broadcast %74 : vector<128x1xf32> to vector<128x256xf32>
    %76 = arith.subf %72, %75 : vector<128x256xf32>
    %77 = math.exp %76 : vector<128x256xf32>
    %78 = arith.truncf %77 : vector<128x256xf32> to vector<128x256xbf16>
    %c0_31 = arith.constant 0 : index
    %c1536 = arith.constant 1536 : index
    %79 = vector.load %arg12[%c0_31, %c1536] : memref<128x2048xbf16, #tpu.memory_space<vmem>>, vector<128x256xbf16>
    tpu.vector_store %arg12[%c0_31, %c1536], %78 {strides = array<i32>} : memref<128x2048xbf16, #tpu.memory_space<vmem>>, vector<128x256xbf16>,
    %80 = vector.extract_strided_slice %23 {offsets = [0, 1792], sizes = [128, 256], strides = [1, 1]} : vector<128x2048xf32> to vector<128x256xf32>
    %cst_32 = arith.constant dense<0xFF800000> : vector<128xf32>
    %81 = vector.multi_reduction <maximumf>, %80, %cst_32 [1] : vector<128x256xf32> to vector<128xf32>
    %82 = vector.shape_cast %81 : vector<128xf32> to vector<128x1xf32>
    %83 = vector.broadcast %82 : vector<128x1xf32> to vector<128x256xf32>
    %84 = arith.subf %80, %83 : vector<128x256xf32>
    %85 = math.exp %84 : vector<128x256xf32>
    %86 = arith.truncf %85 : vector<128x256xf32> to vector<128x256xbf16>
    %c0_33 = arith.constant 0 : index
    %c1792 = arith.constant 1792 : index
    %87 = vector.load %arg12[%c0_33, %c1792] : memref<128x2048xbf16, #tpu.memory_space<vmem>>, vector<128x256xbf16>
    tpu.vector_store %arg12[%c0_33, %c1792], %86 {strides = array<i32>} : memref<128x2048xbf16, #tpu.memory_space<vmem>>, vector<128x256xbf16>,
    %c0_34 = arith.constant 0 : index
    %c0_35 = arith.constant 0 : index
    %88 = vector.load %arg12[%c0_34, %c0_35] : memref<128x2048xbf16, #tpu.memory_space<vmem>>, vector<128x2048xbf16>
    %cst_36 = arith.constant dense<0.000000e+00> : vector<16x128xf32>
    %89 = tpu.matmul %19, %88, %cst_36 {dimension_numbers = #tpu.dot_dimension_numbers<[1], [1], [0], [0], [0, 0, 1, 0], [], []>} : vector<16x2048xbf16>, vector<128x2048xbf16>, vector<16x128xf32> -> vector<16x128xf32>
    %cst_37 = arith.constant dense<0.000000e+00> : vector<16x128xf32>
    %90 = tpu.matmul %20, %88, %cst_37 {dimension_numbers = #tpu.dot_dimension_numbers<[1], [1], [0], [0], [0, 0, 1, 0], [], []>} : vector<16x2048xbf16>, vector<128x2048xbf16>, vector<16x128xf32> -> vector<16x128xf32>
    %91 = tpu.reciprocal %90 {approx = true} : vector<16x128xf32> -> vector<16x128xf32>
    %92 = arith.mulf %89, %91 : vector<16x128xf32>
    %c0_38 = arith.constant 0 : index
    %c0_39 = arith.constant 0 : index
    %c0_40 = arith.constant 0 : index
    %93 = vector.load %arg2[%c0_38, %c0_39, %c0_40] : memref<1x16x128xf32, #tpu.memory_space<vmem>>, vector<1x16x128xf32>
    %94 = vector.shape_cast %93 : vector<1x16x128xf32> to vector<16x128xf32>
    %c0_41 = arith.constant 0 : index
    %c0_42 = arith.constant 0 : index
    %95 = vector.load %arg9[%c0_41, %c0_42] : memref<16x16xf32, #tpu.memory_space<vmem>>, vector<16x16xf32>
    %96 = arith.truncf %95 : vector<16x16xf32> to vector<16x16xbf16>
    %97 = arith.truncf %92 : vector<16x128xf32> to vector<16x128xbf16>
    %cst_43 = arith.constant dense<0.000000e+00> : vector<16x128xf32>
    %98 = tpu.matmul %96, %97, %cst_43 {dimension_numbers = #tpu.dot_dimension_numbers<[1], [0], [0], [1], [0, 0, 1, 1], [], []>} : vector<16x16xbf16>, vector<16x128xbf16>, vector<16x128xf32> -> vector<16x128xf32>
    %99 = arith.addf %94, %98 : vector<16x128xf32>
    %c0_44 = arith.constant 0 : index
    %c0_45 = arith.constant 0 : index
    %100 = vector.load %arg10[%c0_44, %c0_45] : memref<16x1xf32, #tpu.memory_space<vmem>>, vector<16x1xf32>
    %101 = vector.broadcast %100 : vector<16x1xf32> to vector<16x128xf32>
    %102 = arith.addf %99, %101 : vector<16x128xf32>
    %c0_46 = arith.constant 0 : index
    %c0_47 = arith.constant 0 : index
    %c0_48 = arith.constant 0 : index
    %103 = vector.load %arg11[%c0_46, %c0_47, %c0_48] : memref<1x16x128xf32, #tpu.memory_space<vmem>>, vector<1x16x128xf32>
    %104 = vector.shape_cast %103 : vector<1x16x128xf32> to vector<16x128xf32>
    %105 = vector.shape_cast %102 : vector<16x128xf32> to vector<1x16x128xf32>
    tpu.vector_store %arg11[%c0_46, %c0_47, %c0_48], %105 {strides = array<i32>} : memref<1x16x128xf32, #tpu.memory_space<vmem>>, vector<1x16x128xf32>,
    return
  }
  func.func @transform_0(%arg0: i32, %arg1: i32) -> (i32, i32, i32) {
    %c0_i32 = arith.constant 0 : i32
    %c0_i32_0 = arith.constant 0 : i32
    return %arg0, %c0_i32, %arg1 : i32, i32, i32
  }
  func.func @transform_1(%arg0: i32, %arg1: i32) -> (i32, i32, i32) {
    %c0_i32 = arith.constant 0 : i32
    %c0_i32_0 = arith.constant 0 : i32
    %c0_i32_1 = arith.constant 0 : i32
    return %arg0, %c0_i32, %c0_i32_0 : i32, i32, i32
  }
  func.func @transform_2(%arg0: i32, %arg1: i32) -> (i32, i32) {
    %c0_i32 = arith.constant 0 : i32
    %c0_i32_0 = arith.constant 0 : i32
    %c0_i32_1 = arith.constant 0 : i32
    return %c0_i32, %c0_i32_0 : i32, i32
  }
  func.func @transform_3(%arg0: i32, %arg1: i32) -> (i32, i32) {
    %c0_i32 = arith.constant 0 : i32
    %c0_i32_0 = arith.constant 0 : i32
    %c0_i32_1 = arith.constant 0 : i32
    return %c0_i32, %c0_i32_0 : i32, i32
  }
  func.func @transform_4(%arg0: i32, %arg1: i32) -> (i32, i32) {
    %c0_i32 = arith.constant 0 : i32
    %c0_i32_0 = arith.constant 0 : i32
    %c0_i32_1 = arith.constant 0 : i32
    return %c0_i32, %c0_i32_0 : i32, i32
  }
  func.func @transform_5(%arg0: i32, %arg1: i32) -> (i32, i32) {
    %c0_i32 = arith.constant 0 : i32
    %c0_i32_0 = arith.constant 0 : i32
    %c0_i32_1 = arith.constant 0 : i32
    return %c0_i32, %c0_i32_0 : i32, i32
  }
  func.func @transform_6(%arg0: i32, %arg1: i32) -> (i32, i32) {
    %c0_i32 = arith.constant 0 : i32
    %c0_i32_0 = arith.constant 0 : i32
    %c0_i32_1 = arith.constant 0 : i32
    return %c0_i32, %c0_i32_0 : i32, i32
  }
  func.func @transform_7(%arg0: i32, %arg1: i32) -> (i32, i32) {
    %c0_i32 = arith.constant 0 : i32
    %c0_i32_0 = arith.constant 0 : i32
    %c0_i32_1 = arith.constant 0 : i32
    return %c0_i32, %c0_i32_0 : i32, i32
  }
  func.func @transform_8(%arg0: i32, %arg1: i32) -> (i32, i32) {
    %c0_i32 = arith.constant 0 : i32
    %c0_i32_0 = arith.constant 0 : i32
    %c0_i32_1 = arith.constant 0 : i32
    return %c0_i32, %c0_i32_0 : i32, i32
  }
  func.func @transform_9(%arg0: i32, %arg1: i32) -> (i32, i32, i32) {
    %c0_i32 = arith.constant 0 : i32
    %c0_i32_0 = arith.constant 0 : i32
    return %arg0, %c0_i32, %arg1 : i32, i32, i32
  }
}

</mosaic_0001>

<llo_original>
// kernel: mul.43
$region0: #{mul.43}
  #allocation2 [shape = 's32[1]{0}', space=sflag, size = 0x4, scoped, tag = 'scoped memory for mul.43']
  %s0 = inlined_call_operand.vmem [shape: f32[2,16,16,16], index: 0, kind: input, shape index: {}]
  %s1 = inlined_call_operand.vmem [shape: f32[2,16,16,16], index: 1, kind: input, shape index: {}]
  %s2 = inlined_call_operand.hbm [shape: f32[2,16,16,16], index: 2, kind: output, shape index: {}]
  $region1: #{mul.43} parent=0
    #allocation0 [shape = 'u8[262144]{0}', space=vmem, size = 0x40000, scoped, tag = 'operand span for operand 2']
    #allocation1 [shape = 's32[1]{0}', space=sflag, size = 0x4, scoped, tag = 'scoped memory for mul.43']
    %3 = vsyncpa [#allocation1], 0
    %v4 = vld [vmem:[%s0] sm:$0xff]
    %v5 = vld [vmem:[%s1] sm:$0xff]
    %6 = xla_tuple %v4, %v5
    %7 = xla_tuple %6
    %v8 = vmul.f32 %v4, %v5
    %9 = xla_tuple %v8
    %10 = vst [vmem:[#allocation0] sm:$0xff] %v8
    %s11 = scalar_lea.vmem %s0, 256
    %v12 = vld [vmem:[%s11] sm:$0xff]
    %s13 = scalar_lea.vmem %s1, 256
    %v14 = vld [vmem:[%s13] sm:$0xff]
    %15 = xla_tuple %v12, %v14
    %16 = xla_tuple %15
    %v17 = vmul.f32 %v12, %v14
    %18 = xla_tuple %v17
    %s19 = scalar_lea.vmem [#allocation0], 256
    %20 = vst [vmem:[%s19] sm:$0xff] %v17
    %s21 = scalar_lea.vmem %s0, 16
    %v22 = vld [vmem:[%s21] sm:$0xff]
    %s23 = scalar_lea.vmem %s1, 16
    %v24 = vld [vmem:[%s23] sm:$0xff]
    %25 = xla_tuple %v22, %v24
    %26 = xla_tuple %25
    %v27 = vmul.f32 %v22, %v24
    %28 = xla_tuple %v27
    %s29 = scalar_lea.vmem [#allocation0], 16
    %30 = vst [vmem:[%s29] sm:$0xff] %v27
    %s31 = scalar_lea.vmem %s0, 272
    %v32 = vld [vmem:[%s31] sm:$0xff]
    %s33 = scalar_lea.vmem %s1, 272
    %v34 = vld [vmem:[%s33] sm:$0xff]
    %35 = xla_tuple %v32, %v34
    %36 = xla_tuple %35
    %v37 = vmul.f32 %v32, %v34
    %38 = xla_tuple %v37
    %s39 = scalar_lea.vmem [#allocation0], 272
    %40 = vst [vmem:[%s39] sm:$0xff] %v37
    %s41 = scalar_lea.vmem %s0, 32
    %v42 = vld [vmem:[%s41] sm:$0xff]
    %s43 = scalar_lea.vmem %s1, 32
    %v44 = vld [vmem:[%s43] sm:$0xff]
    %45 = xla_tuple %v42, %v44
    %46 = xla_tuple %45
    %v47 = vmul.f32 %v42, %v44
    %48 = xla_tuple %v47
    %s49 = scalar_lea.vmem [#allocation0], 32
    %50 = vst [vmem:[%s49] sm:$0xff] %v47
    %s51 = scalar_lea.vmem %s0, 288
    %v52 = vld [vmem:[%s51] sm:$0xff]
    %s53 = scalar_lea.vmem %s1, 288
    %v54 = vld [vmem:[%s53] sm:$0xff]
    %55 = xla_tuple %v52, %v54
    %56 = xla_tuple %55
    %v57 = vmul.f32 %v52, %v54
    %58 = xla_tuple %v57
    %s59 = scalar_lea.vmem [#allocation0], 288
    %60 = vst [vmem:[%s59] sm:$0xff] %v57
    %s61 = scalar_lea.vmem %s0, 48
    %v62 = vld [vmem:[%s61] sm:$0xff]
    %s63 = scalar_lea.vmem %s1, 48
    %v64 = vld [vmem:[%s63] sm:$0xff]
    %65 = xla_tuple %v62, %v64
    %66 = xla_tuple %65
    %v67 = vmul.f32 %v62, %v64
    %68 = xla_tuple %v67
    %s69 = scalar_lea.vmem [#allocation0], 48
    %70 = vst [vmem:[%s69] sm:$0xff] %v67
    %s71 = scalar_lea.vmem %s0, 304
    %v72 = vld [vmem:[%s71] sm:$0xff]
    %s73 = scalar_lea.vmem %s1, 304
    %v74 = vld [vmem:[%s73] sm:$0xff]
    %75 = xla_tuple %v72, %v74
    %76 = xla_tuple %75
    %v77 = vmul.f32 %v72, %v74
    %78 = xla_tuple %v77
    %s79 = scalar_lea.vmem [#allocation0], 304
    %80 = vst [vmem:[%s79] sm:$0xff] %v77
    %s81 = scalar_lea.vmem %s0, 64
    %v82 = vld [vmem:[%s81] sm:$0xff]
    %s83 = scalar_lea.vmem %s1, 64
    %v84 = vld [vmem:[%s83] sm:$0xff]
    %85 = xla_tuple %v82, %v84
    %86 = xla_tuple %85
    %v87 = vmul.f32 %v82, %v84
    %88 = xla_tuple %v87
    %s89 = scalar_lea.vmem [#allocation0], 64
    %90 = vst [vmem:[%s89] sm:$0xff] %v87
    %s91 = scalar_lea.vmem %s0, 320
    %v92 = vld [vmem:[%s91] sm:$0xff]
    %s93 = scalar_lea.vmem %s1, 320
    %v94 = vld [vmem:[%s93] sm:$0xff]
    %95 = xla_tuple %v92, %v94
    %96 = xla_tuple %95
    %v97 = vmul.f32 %v92, %v94
    %98 = xla_tuple %v97
    %s99 = scalar_lea.vmem [#allocation0], 320
    %100 = vst [vmem:[%s99] sm:$0xff] %v97
    %s101 = scalar_lea.vmem %s0, 80
    %v102 = vld [vmem:[%s101] sm:$0xff]
    %s103 = scalar_lea.vmem %s1, 80
    %v104 = vld [vmem:[%s103] sm:$0xff]
    %105 = xla_tuple %v102, %v104
    %106 = xla_tuple %105
    %v107 = vmul.f32 %v102, %v104
    %108 = xla_tuple %v107
    %s109 = scalar_lea.vmem [#allocation0], 80
    %110 = vst [vmem:[%s109] sm:$0xff] %v107
    %s111 = scalar_lea.vmem %s0, 336
    %v112 = vld [vmem:[%s111] sm:$0xff]
    %s113 = scalar_lea.vmem %s1, 336
    %v114 = vld [vmem:[%s113] sm:$0xff]
    %115 = xla_tuple %v112, %v114
    %116 = xla_tuple %115
    %v117 = vmul.f32 %v112, %v114
    %118 = xla_tuple %v117
    %s119 = scalar_lea.vmem [#allocation0], 336
    %120 = vst [vmem:[%s119] sm:$0xff] %v117
    %s121 = scalar_lea.vmem %s0, 96
    %v122 = vld [vmem:[%s121] sm:$0xff]
    %s123 = scalar_lea.vmem %s1, 96
    %v124 = vld [vmem:[%s123] sm:$0xff]
    %125 = xla_tuple %v122, %v124
    %126 = xla_tuple %125
    %v127 = vmul.f32 %v122, %v124
    %128 = xla_tuple %v127
    %s129 = scalar_lea.vmem [#allocation0], 96
    %130 = vst [vmem:[%s129] sm:$0xff] %v127
    %s131 = scalar_lea.vmem %s0, 352
    %v132 = vld [vmem:[%s131] sm:$0xff]
    %s133 = scalar_lea.vmem %s1, 352
    %v134 = vld [vmem:[%s133] sm:$0xff]
    %135 = xla_tuple %v132, %v134
    %136 = xla_tuple %135
    %v137 = vmul.f32 %v132, %v134
    %138 = xla_tuple %v137
    %s139 = scalar_lea.vmem [#allocation0], 352
    %140 = vst [vmem:[%s139] sm:$0xff] %v137
    %s141 = scalar_lea.vmem %s0, 112
    %v142 = vld [vmem:[%s141] sm:$0xff]
    %s143 = scalar_lea.vmem %s1, 112
    %v144 = vld [vmem:[%s143] sm:$0xff]
    %145 = xla_tuple %v142, %v144
    %146 = xla_tuple %145
    %v147 = vmul.f32 %v142, %v144
    %148 = xla_tuple %v147
    %s149 = scalar_lea.vmem [#allocation0], 112
    %150 = vst [vmem:[%s149] sm:$0xff] %v147
    %s151 = scalar_lea.vmem %s0, 368
    %v152 = vld [vmem:[%s151] sm:$0xff]
    %s153 = scalar_lea.vmem %s1, 368
    %v154 = vld [vmem:[%s153] sm:$0xff]
    %155 = xla_tuple %v152, %v154
    %156 = xla_tuple %155
    %v157 = vmul.f32 %v152, %v154
    %158 = xla_tuple %v157
    %s159 = scalar_lea.vmem [#allocation0], 368
    %160 = vst [vmem:[%s159] sm:$0xff] %v157
    %s161 = scalar_lea.vmem %s0, 128
    %v162 = vld [vmem:[%s161] sm:$0xff]
    %s163 = scalar_lea.vmem %s1, 128
    %v164 = vld [vmem:[%s163] sm:$0xff]
    %165 = xla_tuple %v162, %v164
    %166 = xla_tuple %165
    %v167 = vmul.f32 %v162, %v164
    %168 = xla_tuple %v167
    %s169 = scalar_lea.vmem [#allocation0], 128
    %170 = vst [vmem:[%s169] sm:$0xff] %v167
    %s171 = scalar_lea.vmem %s0, 384
    %v172 = vld [vmem:[%s171] sm:$0xff]
    %s173 = scalar_lea.vmem %s1, 384
    %v174 = vld [vmem:[%s173] sm:$0xff]
    %175 = xla_tuple %v172, %v174
    %176 = xla_tuple %175
    %v177 = vmul.f32 %v172, %v174
    %178 = xla_tuple %v177
    %s179 = scalar_lea.vmem [#allocation0], 384
    %180 = vst [vmem:[%s179] sm:$0xff] %v177
    %s181 = scalar_lea.vmem %s0, 144
    %v182 = vld [vmem:[%s181] sm:$0xff]
    %s183 = scalar_lea.vmem %s1, 144
    %v184 = vld [vmem:[%s183] sm:$0xff]
    %185 = xla_tuple %v182, %v184
    %186 = xla_tuple %185
    %v187 = vmul.f32 %v182, %v184
    %188 = xla_tuple %v187
    %s189 = scalar_lea.vmem [#allocation0], 144
    %190 = vst [vmem:[%s189] sm:$0xff] %v187
    %s191 = scalar_lea.vmem %s0, 400
    %v192 = vld [vmem:[%s191] sm:$0xff]
    %s193 = scalar_lea.vmem %s1, 400
    %v194 = vld [vmem:[%s193] sm:$0xff]
    %195 = xla_tuple %v192, %v194
    %196 = xla_tuple %195
    %v197 = vmul.f32 %v192, %v194
    %198 = xla_tuple %v197
    %s199 = scalar_lea.vmem [#allocation0], 400
    %200 = vst [vmem:[%s199] sm:$0xff] %v197
    %s201 = scalar_lea.vmem %s0, 160
    %v202 = vld [vmem:[%s201] sm:$0xff]
    %s203 = scalar_lea.vmem %s1, 160
    %v204 = vld [vmem:[%s203] sm:$0xff]
    %205 = xla_tuple %v202, %v204
    %206 = xla_tuple %205
    %v207 = vmul.f32 %v202, %v204
    %208 = xla_tuple %v207
    %s209 = scalar_lea.vmem [#allocation0], 160
    %210 = vst [vmem:[%s209] sm:$0xff] %v207
    %s211 = scalar_lea.vmem %s0, 416
    %v212 = vld [vmem:[%s211] sm:$0xff]
    %s213 = scalar_lea.vmem %s1, 416
    %v214 = vld [vmem:[%s213] sm:$0xff]
    %215 = xla_tuple %v212, %v214
    %216 = xla_tuple %215
    %v217 = vmul.f32 %v212, %v214
    %218 = xla_tuple %v217
    %s219 = scalar_lea.vmem [#allocation0], 416
    %220 = vst [vmem:[%s219] sm:$0xff] %v217
    %s221 = scalar_lea.vmem %s0, 176
    %v222 = vld [vmem:[%s221] sm:$0xff]
    %s223 = scalar_lea.vmem %s1, 176
    %v224 = vld [vmem:[%s223] sm:$0xff]
    %225 = xla_tuple %v222, %v224
    %226 = xla_tuple %225
    %v227 = vmul.f32 %v222, %v224
    %228 = xla_tuple %v227
    %s229 = scalar_lea.vmem [#allocation0], 176
    %230 = vst [vmem:[%s229] sm:$0xff] %v227
    %s231 = scalar_lea.vmem %s0, 432
    %v232 = vld [vmem:[%s231] sm:$0xff]
    %s233 = scalar_lea.vmem %s1, 432
    %v234 = vld [vmem:[%s233] sm:$0xff]
    %235 = xla_tuple %v232, %v234
    %236 = xla_tuple %235
    %v237 = vmul.f32 %v232, %v234
    %238 = xla_tuple %v237
    %s239 = scalar_lea.vmem [#allocation0], 432
    %240 = vst [vmem:[%s239] sm:$0xff] %v237
    %s241 = scalar_lea.vmem %s0, 192
    %v242 = vld [vmem:[%s241] sm:$0xff]
    %s243 = scalar_lea.vmem %s1, 192
    %v244 = vld [vmem:[%s243] sm:$0xff]
    %245 = xla_tuple %v242, %v244
    %246 = xla_tuple %245
    %v247 = vmul.f32 %v242, %v244
    %248 = xla_tuple %v247
    %s249 = scalar_lea.vmem [#allocation0], 192
    %250 = vst [vmem:[%s249] sm:$0xff] %v247
    %s251 = scalar_lea.vmem %s0, 448
    %v252 = vld [vmem:[%s251] sm:$0xff]
    %s253 = scalar_lea.vmem %s1, 448
    %v254 = vld [vmem:[%s253] sm:$0xff]
    %255 = xla_tuple %v252, %v254
    %256 = xla_tuple %255
    %v257 = vmul.f32 %v252, %v254
    %258 = xla_tuple %v257
    %s259 = scalar_lea.vmem [#allocation0], 448
    %260 = vst [vmem:[%s259] sm:$0xff] %v257
    %s261 = scalar_lea.vmem %s0, 208
    %v262 = vld [vmem:[%s261] sm:$0xff]
    %s263 = scalar_lea.vmem %s1, 208
    %v264 = vld [vmem:[%s263] sm:$0xff]
    %265 = xla_tuple %v262, %v264
    %266 = xla_tuple %265
    %v267 = vmul.f32 %v262, %v264
    %268 = xla_tuple %v267
    %s269 = scalar_lea.vmem [#allocation0], 208
    %270 = vst [vmem:[%s269] sm:$0xff] %v267
    %s271 = scalar_lea.vmem %s0, 464
    %v272 = vld [vmem:[%s271] sm:$0xff]
    %s273 = scalar_lea.vmem %s1, 464
    %v274 = vld [vmem:[%s273] sm:$0xff]
    %275 = xla_tuple %v272, %v274
    %276 = xla_tuple %275
    %v277 = vmul.f32 %v272, %v274
    %278 = xla_tuple %v277
    %s279 = scalar_lea.vmem [#allocation0], 464
    %280 = vst [vmem:[%s279] sm:$0xff] %v277
    %s281 = scalar_lea.vmem %s0, 224
    %v282 = vld [vmem:[%s281] sm:$0xff]
    %s283 = scalar_lea.vmem %s1, 224
    %v284 = vld [vmem:[%s283] sm:$0xff]
    %285 = xla_tuple %v282, %v284
    %286 = xla_tuple %285
    %v287 = vmul.f32 %v282, %v284
    %288 = xla_tuple %v287
    %s289 = scalar_lea.vmem [#allocation0], 224
    %290 = vst [vmem:[%s289] sm:$0xff] %v287
    %s291 = scalar_lea.vmem %s0, 480
    %v292 = vld [vmem:[%s291] sm:$0xff]
    %s293 = scalar_lea.vmem %s1, 480
    %v294 = vld [vmem:[%s293] sm:$0xff]
    %295 = xla_tuple %v292, %v294
    %296 = xla_tuple %295
    %v297 = vmul.f32 %v292, %v294
    %298 = xla_tuple %v297
    %s299 = scalar_lea.vmem [#allocation0], 480
    %300 = vst [vmem:[%s299] sm:$0xff] %v297
    %s301 = scalar_lea.vmem %s0, 240
    %v302 = vld [vmem:[%s301] sm:$0xff]
    %s303 = scalar_lea.vmem %s1, 240
    %v304 = vld [vmem:[%s303] sm:$0xff]
    %305 = xla_tuple %v302, %v304
    %306 = xla_tuple %305
    %v307 = vmul.f32 %v302, %v304
    %308 = xla_tuple %v307
    %s309 = scalar_lea.vmem [#allocation0], 240
    %310 = vst [vmem:[%s309] sm:$0xff] %v307
    %s311 = scalar_lea.vmem %s0, 496
    %v312 = vld [vmem:[%s311] sm:$0xff]
    %s313 = scalar_lea.vmem %s1, 496
    %v314 = vld [vmem:[%s313] sm:$0xff]
    %315 = xla_tuple %v312, %v314
    %316 = xla_tuple %315
    %v317 = vmul.f32 %v312, %v314
    %318 = xla_tuple %v317
    %s319 = scalar_lea.vmem [#allocation0], 496
    %320 = vst [vmem:[%s319] sm:$0xff] %v317
    %s321 = scalar_lea.vmem %s0, 8
    %v322 = vld [vmem:[%s321] sm:$0xff]
    %s323 = scalar_lea.vmem %s1, 8
    %v324 = vld [vmem:[%s323] sm:$0xff]
    %325 = xla_tuple %v322, %v324
    %326 = xla_tuple %325
    %v327 = vmul.f32 %v322, %v324
    %328 = xla_tuple %v327
    %s329 = scalar_lea.vmem [#allocation0], 8
    %330 = vst [vmem:[%s329] sm:$0xff] %v327
    %s331 = scalar_lea.vmem %s0, 264
    %v332 = vld [vmem:[%s331] sm:$0xff]
    %s333 = scalar_lea.vmem %s1, 264
    %v334 = vld [vmem:[%s333] sm:$0xff]
    %335 = xla_tuple %v332, %v334
    %336 = xla_tuple %335
    %v337 = vmul.f32 %v332, %v334
    %338 = xla_tuple %v337
    %s339 = scalar_lea.vmem [#allocation0], 264
    %340 = vst [vmem:[%s339] sm:$0xff] %v337
    %s341 = scalar_lea.vmem %s0, 24
    %v342 = vld [vmem:[%s341] sm:$0xff]
    %s343 = scalar_lea.vmem %s1, 24
    %v344 = vld [vmem:[%s343] sm:$0xff]
    %345 = xla_tuple %v342, %v344
    %346 = xla_tuple %345
    %v347 = vmul.f32 %v342, %v344
    %348 = xla_tuple %v347
    %s349 = scalar_lea.vmem [#allocation0], 24
    %350 = vst [vmem:[%s349] sm:$0xff] %v347
    %s351 = scalar_lea.vmem %s0, 280
    %v352 = vld [vmem:[%s351] sm:$0xff]
    %s353 = scalar_lea.vmem %s1, 280
    %v354 = vld [vmem:[%s353] sm:$0xff]
    %355 = xla_tuple %v352, %v354
    %356 = xla_tuple %355
    %v357 = vmul.f32 %v352, %v354
    %358 = xla_tuple %v357
    %s359 = scalar_lea.vmem [#allocation0], 280
    %360 = vst [vmem:[%s359] sm:$0xff] %v357
    %s361 = scalar_lea.vmem %s0, 40
    %v362 = vld [vmem:[%s361] sm:$0xff]
    %s363 = scalar_lea.vmem %s1, 40
    %v364 = vld [vmem:[%s363] sm:$0xff]
    %365 = xla_tuple %v362, %v364
    %366 = xla_tuple %365
    %v367 = vmul.f32 %v362, %v364
    %368 = xla_tuple %v367
    %s369 = scalar_lea.vmem [#allocation0], 40
    %370 = vst [vmem:[%s369] sm:$0xff] %v367
    %s371 = scalar_lea.vmem %s0, 296
    %v372 = vld [vmem:[%s371] sm:$0xff]
    %s373 = scalar_lea.vmem %s1, 296
    %v374 = vld [vmem:[%s373] sm:$0xff]
    %375 = xla_tuple %v372, %v374
    %376 = xla_tuple %375
    %v377 = vmul.f32 %v372, %v374
    %378 = xla_tuple %v377
    %s379 = scalar_lea.vmem [#allocation0], 296
    %380 = vst [vmem:[%s379] sm:$0xff] %v377
    %s381 = scalar_lea.vmem %s0, 56
    %v382 = vld [vmem:[%s381] sm:$0xff]
    %s383 = scalar_lea.vmem %s1, 56
    %v384 = vld [vmem:[%s383] sm:$0xff]
    %385 = xla_tuple %v382, %v384
    %386 = xla_tuple %385
    %v387 = vmul.f32 %v382, %v384
    %388 = xla_tuple %v387
    %s389 = scalar_lea.vmem [#allocation0], 56
    %390 = vst [vmem:[%s389] sm:$0xff] %v387
    %s391 = scalar_lea.vmem %s0, 312
    %v392 = vld [vmem:[%s391] sm:$0xff]
    %s393 = scalar_lea.vmem %s1, 312
    %v394 = vld [vmem:[%s393] sm:$0xff]
    %395 = xla_tuple %v392, %v394
    %396 = xla_tuple %395
    %v397 = vmul.f32 %v392, %v394
    %398 = xla_tuple %v397
    %s399 = scalar_lea.vmem [#allocation0], 312
    %400 = vst [vmem:[%s399] sm:$0xff] %v397
    %s401 = scalar_lea.vmem %s0, 72
    %v402 = vld [vmem:[%s401] sm:$0xff]
    %s403 = scalar_lea.vmem %s1, 72
    %v404 = vld [vmem:[%s403] sm:$0xff]
    %405 = xla_tuple %v402, %v404
    %406 = xla_tuple %405
    %v407 = vmul.f32 %v402, %v404
    %408 = xla_tuple %v407
    %s409 = scalar_lea.vmem [#allocation0], 72
    %410 = vst [vmem:[%s409] sm:$0xff] %v407
    %s411 = scalar_lea.vmem %s0, 328
    %v412 = vld [vmem:[%s411] sm:$0xff]
    %s413 = scalar_lea.vmem %s1, 328
    %v414 = vld [vmem:[%s413] sm:$0xff]
    %415 = xla_tuple %v412, %v414
    %416 = xla_tuple %415
    %v417 = vmul.f32 %v412, %v414
    %418 = xla_tuple %v417
    %s419 = scalar_lea.vmem [#allocation0], 328
    %420 = vst [vmem:[%s419] sm:$0xff] %v417
    %s421 = scalar_lea.vmem %s0, 88
    %v422 = vld [vmem:[%s421] sm:$0xff]
    %s423 = scalar_lea.vmem %s1, 88
    %v424 = vld [vmem:[%s423] sm:$0xff]
    %425 = xla_tuple %v422, %v424
    %426 = xla_tuple %425
    %v427 = vmul.f32 %v422, %v424
    %428 = xla_tuple %v427
    %s429 = scalar_lea.vmem [#allocation0], 88
    %430 = vst [vmem:[%s429] sm:$0xff] %v427
    %s431 = scalar_lea.vmem %s0, 344
    %v432 = vld [vmem:[%s431] sm:$0xff]
    %s433 = scalar_lea.vmem %s1, 344
    %v434 = vld [vmem:[%s433] sm:$0xff]
    %435 = xla_tuple %v432, %v434
    %436 = xla_tuple %435
    %v437 = vmul.f32 %v432, %v434
    %438 = xla_tuple %v437
    %s439 = scalar_lea.vmem [#allocation0], 344
    %440 = vst [vmem:[%s439] sm:$0xff] %v437
    %s441 = scalar_lea.vmem %s0, 104
    %v442 = vld [vmem:[%s441] sm:$0xff]
    %s443 = scalar_lea.vmem %s1, 104
    %v444 = vld [vmem:[%s443] sm:$0xff]
    %445 = xla_tuple %v442, %v444
    %446 = xla_tuple %445
    %v447 = vmul.f32 %v442, %v444
    %448 = xla_tuple %v447
    %s449 = scalar_lea.vmem [#allocation0], 104
    %450 = vst [vmem:[%s449] sm:$0xff] %v447
    %s451 = scalar_lea.vmem %s0, 360
    %v452 = vld [vmem:[%s451] sm:$0xff]
    %s453 = scalar_lea.vmem %s1, 360
    %v454 = vld [vmem:[%s453] sm:$0xff]
    %455 = xla_tuple %v452, %v454
    %456 = xla_tuple %455
    %v457 = vmul.f32 %v452, %v454
    %458 = xla_tuple %v457
    %s459 = scalar_lea.vmem [#allocation0], 360
    %460 = vst [vmem:[%s459] sm:$0xff] %v457
    %s461 = scalar_lea.vmem %s0, 120
    %v462 = vld [vmem:[%s461] sm:$0xff]
    %s463 = scalar_lea.vmem %s1, 120
    %v464 = vld [vmem:[%s463] sm:$0xff]
    %465 = xla_tuple %v462, %v464
    %466 = xla_tuple %465
    %v467 = vmul.f32 %v462, %v464
    %468 = xla_tuple %v467
    %s469 = scalar_lea.vmem [#allocation0], 120
    %470 = vst [vmem:[%s469] sm:$0xff] %v467
    %s471 = scalar_lea.vmem %s0, 376
    %v472 = vld [vmem:[%s471] sm:$0xff]
    %s473 = scalar_lea.vmem %s1, 376
    %v474 = vld [vmem:[%s473] sm:$0xff]
    %475 = xla_tuple %v472, %v474
    %476 = xla_tuple %475
    %v477 = vmul.f32 %v472, %v474
    %478 = xla_tuple %v477
    %s479 = scalar_lea.vmem [#allocation0], 376
    %480 = vst [vmem:[%s479] sm:$0xff] %v477
    %s481 = scalar_lea.vmem %s0, 136
    %v482 = vld [vmem:[%s481] sm:$0xff]
    %s483 = scalar_lea.vmem %s1, 136
    %v484 = vld [vmem:[%s483] sm:$0xff]
    %485 = xla_tuple %v482, %v484
    %486 = xla_tuple %485
    %v487 = vmul.f32 %v482, %v484
    %488 = xla_tuple %v487
    %s489 = scalar_lea.vmem [#allocation0], 136
    %490 = vst [vmem:[%s489] sm:$0xff] %v487
    %s491 = scalar_lea.vmem %s0, 392
    %v492 = vld [vmem:[%s491] sm:$0xff]
    %s493 = scalar_lea.vmem %s1, 392
    %v494 = vld [vmem:[%s493] sm:$0xff]
    %495 = xla_tuple %v492, %v494
    %496 = xla_tuple %495
    %v497 = vmul.f32 %v492, %v494
    %498 = xla_tuple %v497
    %s499 = scalar_lea.vmem [#allocation0], 392
    %500 = vst [vmem:[%s499] sm:$0xff] %v497
    %s501 = scalar_lea.vmem %s0, 152
    %v502 = vld [vmem:[%s501] sm:$0xff]
    %s503 = scalar_lea.vmem %s1, 152
    %v504 = vld [vmem:[%s503] sm:$0xff]
    %505 = xla_tuple %v502, %v504
    %506 = xla_tuple %505
    %v507 = vmul.f32 %v502, %v504
    %508 = xla_tuple %v507
    %s509 = scalar_lea.vmem [#allocation0], 152
    %510 = vst [vmem:[%s509] sm:$0xff] %v507
    %s511 = scalar_lea.vmem %s0, 408
    %v512 = vld [vmem:[%s511] sm:$0xff]
    %s513 = scalar_lea.vmem %s1, 408
    %v514 = vld [vmem:[%s513] sm:$0xff]
    %515 = xla_tuple %v512, %v514
    %516 = xla_tuple %515
    %v517 = vmul.f32 %v512, %v514
    %518 = xla_tuple %v517
    %s519 = scalar_lea.vmem [#allocation0], 408
    %520 = vst [vmem:[%s519] sm:$0xff] %v517
    %s521 = scalar_lea.vmem %s0, 168
    %v522 = vld [vmem:[%s521] sm:$0xff]
    %s523 = scalar_lea.vmem %s1, 168
    %v524 = vld [vmem:[%s523] sm:$0xff]
    %525 = xla_tuple %v522, %v524
    %526 = xla_tuple %525
    %v527 = vmul.f32 %v522, %v524
    %528 = xla_tuple %v527
    %s529 = scalar_lea.vmem [#allocation0], 168
    %530 = vst [vmem:[%s529] sm:$0xff] %v527
    %s531 = scalar_lea.vmem %s0, 424
    %v532 = vld [vmem:[%s531] sm:$0xff]
    %s533 = scalar_lea.vmem %s1, 424
    %v534 = vld [vmem:[%s533] sm:$0xff]
    %535 = xla_tuple %v532, %v534
    %536 = xla_tuple %535
    %v537 = vmul.f32 %v532, %v534
    %538 = xla_tuple %v537
    %s539 = scalar_lea.vmem [#allocation0], 424
    %540 = vst [vmem:[%s539] sm:$0xff] %v537
    %s541 = scalar_lea.vmem %s0, 184
    %v542 = vld [vmem:[%s541] sm:$0xff]
    %s543 = scalar_lea.vmem %s1, 184
    %v544 = vld [vmem:[%s543] sm:$0xff]
    %545 = xla_tuple %v542, %v544
    %546 = xla_tuple %545
    %v547 = vmul.f32 %v542, %v544
    %548 = xla_tuple %v547
    %s549 = scalar_lea.vmem [#allocation0], 184
    %550 = vst [vmem:[%s549] sm:$0xff] %v547
    %s551 = scalar_lea.vmem %s0, 440
    %v552 = vld [vmem:[%s551] sm:$0xff]
    %s553 = scalar_lea.vmem %s1, 440
    %v554 = vld [vmem:[%s553] sm:$0xff]
    %555 = xla_tuple %v552, %v554
    %556 = xla_tuple %555
    %v557 = vmul.f32 %v552, %v554
    %558 = xla_tuple %v557
    %s559 = scalar_lea.vmem [#allocation0], 440
    %560 = vst [vmem:[%s559] sm:$0xff] %v557
    %s561 = scalar_lea.vmem %s0, 200
    %v562 = vld [vmem:[%s561] sm:$0xff]
    %s563 = scalar_lea.vmem %s1, 200
    %v564 = vld [vmem:[%s563] sm:$0xff]
    %565 = xla_tuple %v562, %v564
    %566 = xla_tuple %565
    %v567 = vmul.f32 %v562, %v564
    %568 = xla_tuple %v567
    %s569 = scalar_lea.vmem [#allocation0], 200
    %570 = vst [vmem:[%s569] sm:$0xff] %v567
    %s571 = scalar_lea.vmem %s0, 456
    %v572 = vld [vmem:[%s571] sm:$0xff]
    %s573 = scalar_lea.vmem %s1, 456
    %v574 = vld [vmem:[%s573] sm:$0xff]
    %575 = xla_tuple %v572, %v574
    %576 = xla_tuple %575
    %v577 = vmul.f32 %v572, %v574
    %578 = xla_tuple %v577
    %s579 = scalar_lea.vmem [#allocation0], 456
    %580 = vst [vmem:[%s579] sm:$0xff] %v577
    %s581 = scalar_lea.vmem %s0, 216
    %v582 = vld [vmem:[%s581] sm:$0xff]
    %s583 = scalar_lea.vmem %s1, 216
    %v584 = vld [vmem:[%s583] sm:$0xff]
    %585 = xla_tuple %v582, %v584
    %586 = xla_tuple %585
    %v587 = vmul.f32 %v582, %v584
    %588 = xla_tuple %v587
    %s589 = scalar_lea.vmem [#allocation0], 216
    %590 = vst [vmem:[%s589] sm:$0xff] %v587
    %s591 = scalar_lea.vmem %s0, 472
    %v592 = vld [vmem:[%s591] sm:$0xff]
    %s593 = scalar_lea.vmem %s1, 472
    %v594 = vld [vmem:[%s593] sm:$0xff]
    %595 = xla_tuple %v592, %v594
    %596 = xla_tuple %595
    %v597 = vmul.f32 %v592, %v594
    %598 = xla_tuple %v597
    %s599 = scalar_lea.vmem [#allocation0], 472
    %600 = vst [vmem:[%s599] sm:$0xff] %v597
    %s601 = scalar_lea.vmem %s0, 232
    %v602 = vld [vmem:[%s601] sm:$0xff]
    %s603 = scalar_lea.vmem %s1, 232
    %v604 = vld [vmem:[%s603] sm:$0xff]
    %605 = xla_tuple %v602, %v604
    %606 = xla_tuple %605
    %v607 = vmul.f32 %v602, %v604
    %608 = xla_tuple %v607
    %s609 = scalar_lea.vmem [#allocation0], 232
    %610 = vst [vmem:[%s609] sm:$0xff] %v607
    %s611 = scalar_lea.vmem %s0, 488
    %v612 = vld [vmem:[%s611] sm:$0xff]
    %s613 = scalar_lea.vmem %s1, 488
    %v614 = vld [vmem:[%s613] sm:$0xff]
    %615 = xla_tuple %v612, %v614
    %616 = xla_tuple %615
    %v617 = vmul.f32 %v612, %v614
    %618 = xla_tuple %v617
    %s619 = scalar_lea.vmem [#allocation0], 488
    %620 = vst [vmem:[%s619] sm:$0xff] %v617
    %s621 = scalar_lea.vmem %s0, 248
    %v622 = vld [vmem:[%s621] sm:$0xff]
    %s623 = scalar_lea.vmem %s1, 248
    %v624 = vld [vmem:[%s623] sm:$0xff]
    %625 = xla_tuple %v622, %v624
    %626 = xla_tuple %625
    %v627 = vmul.f32 %v622, %v624
    %628 = xla_tuple %v627
    %s629 = scalar_lea.vmem [#allocation0], 248
    %630 = vst [vmem:[%s629] sm:$0xff] %v627
    %s631 = scalar_lea.vmem %s0, 504
    %v632 = vld [vmem:[%s631] sm:$0xff]
    %s633 = scalar_lea.vmem %s1, 504
    %v634 = vld [vmem:[%s633] sm:$0xff]
    %635 = xla_tuple %v632, %v634
    %636 = xla_tuple %635
    %v637 = vmul.f32 %v632, %v634
    %638 = xla_tuple %v637
    %s639 = scalar_lea.vmem [#allocation0], 504
    %640 = vst [vmem:[%s639] sm:$0xff] %v637
    %s642 = ssub.s32 8192, 8192
    %643 = vsyncadd [#allocation1], %s642
    %s644 = sshll.u32 [#allocation0], 4
    %s645 = int_to_ptr.vmem [resolvable:$true] %s644
    %650 = dma.vmem_to_hbm [thread:$0]  %s645, 8192, %s2, [#allocation1], 128, 128, 8
    %651 = dma.done [#allocation1], 8192
    %652 = vsyncpa [#allocation1], 1

// kernel: crau_forward.1
$region0: #{crau_forward.1}
  #allocation0 [shape = 'u32[]', space=smem, size = 0x4, offset = 0x4, fixed_abs, tag = 'smem constant byte address 0x4 - core index']
  #allocation1 [shape = 'u32[144,128]{1,0:T(1,128)}', space=vmem, size = 0x12000, scoped, tag = 'internal scratch']
  #allocation2 [shape = 'bf16[128,2048]{1,0:T(16,128)(2,1)}', space=vmem, size = 0x80000, scoped, tag = 'scratch operand']
  %s0 = inlined_call_operand.vmem [shape: f32[2,16,640], index: 0, kind: input, shape index: {}]
  %s1 = inlined_call_operand.vmem [shape: f32[2,16,256], index: 1, kind: input, shape index: {}]
  %s2 = inlined_call_operand.vmem [shape: f32[16,16], index: 2, kind: input, shape index: {}]
  %s3 = inlined_call_operand.vmem [shape: f32[16,1], index: 3, kind: input, shape index: {}]
  %s4 = inlined_call_operand.vmem [shape: f32[32,16], index: 4, kind: input, shape index: {}]
  %s5 = inlined_call_operand.vmem [shape: f32[32,1], index: 5, kind: input, shape index: {}]
  %s6 = inlined_call_operand.vmem [shape: bf16[32,2048], index: 6, kind: input, shape index: {}]
  %s7 = inlined_call_operand.vmem [shape: f32[16,16], index: 7, kind: input, shape index: {}]
  %s8 = inlined_call_operand.vmem [shape: f32[16,1], index: 8, kind: input, shape index: {}]
  %s9 = inlined_call_operand.vmem [shape: f32[2,16,640], index: 9, kind: output, shape index: {}]
  %s10 = sld [smem:[#allocation0]]
  $region141: #{crau_forward.1} parent=0
    _
  %s12 = ssub.s32 1, %s10
  %s13 = scalar_select 0, %s12, %s10
  $region1: #{crau_forward.1} parent=0
    #allocation3 [shape = 'u8[16384]{0}', space=vmem, size = 0x4000, scoped, tag = 'input window, operand 0']
    #allocation4 [shape = 'u8[16384]{0}', space=vmem, size = 0x4000, scoped, tag = 'output window, operand 0']
    loop: start=0, step=1, limit=12
    $region2: #{crau_forward.1} parent=1 // loop_pre_header
      _
    $region3: #{crau_forward.1} parent=1 // loop_header
      %s15 = sphi 0, %s19
      %p16 = scmp.ge.s32.totalorder %s15, 12
      %s22 = sphi 0, %s34
      %s23 = sphi 0, %s30
      %s24 = sphi 0, %s22
      %s25 = sphi 0, %s23
      %s26 = sphi 0, %s24
      %s27 = sphi 0, %s25
      %s39 = sphi 0, %s41
      %s42 = sphi 0, %s39
      %s43 = sphi 0, %s42
      %s59 = sphi 0, %s43
      %s65 = sphi 0, %s67
      %s68 = sphi 0, %s65
      %s69 = sphi 0, %s68
      %s85 = sphi 0, %s69
      %s89 = sphi 0, %s89
      %s91 = sphi 0, %s89
      %s92 = sphi 0, %s91
      %s106 = sphi 0, %s92
      %s110 = sphi 0, %s110
      %s112 = sphi 0, %s110
      %s113 = sphi 0, %s112
      %s127 = sphi 0, %s113
      %s131 = sphi 0, %s131
      %s133 = sphi 0, %s131
      %s134 = sphi 0, %s133
      %s148 = sphi 0, %s134
      %s152 = sphi 0, %s152
      %s154 = sphi 0, %s152
      %s155 = sphi 0, %s154
      %s169 = sphi 0, %s155
      %s173 = sphi 0, %s173
      %s175 = sphi 0, %s173
      %s176 = sphi 0, %s175
      %s190 = sphi 0, %s176
      %s194 = sphi 0, %s194
      %s196 = sphi 0, %s194
      %s197 = sphi 0, %s196
      %s211 = sphi 0, %s197
      %s215 = sphi 0, %s215
      %s217 = sphi 0, %s215
      %s218 = sphi 0, %s217
      %s232 = sphi 0, %s218
      %s240 = sphi 0, %s242
      %s243 = sphi 0, %s240
      %s244 = sphi 0, %s243
      %s260 = sphi 0, %s244
    $region4: #{crau_forward.1} parent=1 // loop_header_branch
      %18 = sbr.rel (%p16) target = $region8
    $region5: #{crau_forward.1} parent=1 // loop_body
      %s20 = ssub.s32 %s15, 1
      %s21 = ssub.s32 %s15, 2
      %s28 = sadd.s32 1, %s23
      %p29 = scmp.ge.s32.totalorder %s28, 5
      %s30 = scalar_select %p29, 0, %s28
      %s31 = sadd.s32 1, %s22
      %s32 = scalar_select %p29, %s31, %s22
      %p33 = scmp.ge.s32.totalorder %s32, 2
      %s34 = scalar_select %p33, 0, %s32
      %s35 = ssub.s32 %s22, %s34
      %s36 = ssub.s32 %s23, %s30
      %s37 = sor.u32 %s35, %s36
      %p38 = scmp.eq.s32.totalorder %s37, 0
      %s40 = sadd.s32 %s39, 1
      %s41 = scalar_select %p38, %s39, %s40
      %p44 = pneg %p38
      %p45 = scmp.eq.s32.totalorder %s15, 9
      %p46 = por %p44, %p45
      %p47 = scmp.ne.s32.totalorder %s39, %s42
      %p48 = scmp.eq.s32.totalorder %s15, 0
      %p49 = por %p47, %p48
      %p50 = scmp.ne.s32.totalorder %s39, %s42
      %p51 = scmp.eq.s32.totalorder %s20, 9
      %p52 = por %p50, %p51
      %p53 = scmp.ne.s32.totalorder %s42, %s43
      %p54 = scmp.eq.s32.totalorder %s20, 0
      %p55 = por %p53, %p54
      %p56 = scmp.ne.s32.totalorder %s42, %s43
      %p57 = scmp.eq.s32.totalorder %s21, 9
      %p58 = por %p56, %p57
      %p60 = scmp.ne.s32.totalorder %s43, %s59
      %p61 = scmp.eq.s32.totalorder %s21, 0
      %p62 = por %p60, %p61
      %s63 = ssub.s32 %s22, %s34
      %p64 = scmp.eq.s32.totalorder %s63, 0
      %s66 = sadd.s32 %s65, 1
      %s67 = scalar_select %p64, %s65, %s66
      %p70 = pneg %p64
      %p71 = scmp.eq.s32.totalorder %s15, 9
      %p72 = por %p70, %p71
      %p73 = scmp.ne.s32.totalorder %s65, %s68
      %p74 = scmp.eq.s32.totalorder %s15, 0
      %p75 = por %p73, %p74
      %p76 = scmp.ne.s32.totalorder %s65, %s68
      %p77 = scmp.eq.s32.totalorder %s20, 9
      %p78 = por %p76, %p77
      %p79 = scmp.ne.s32.totalorder %s68, %s69
      %p80 = scmp.eq.s32.totalorder %s20, 0
      %p81 = por %p79, %p80
      %p82 = scmp.ne.s32.totalorder %s68, %s69
      %p83 = scmp.eq.s32.totalorder %s21, 9
      %p84 = por %p82, %p83
      %p86 = scmp.ne.s32.totalorder %s69, %s85
      %p87 = scmp.eq.s32.totalorder %s21, 0
      %p88 = por %p86, %p87
      %s90 = sadd.s32 %s89, 1
      %p93 = scmp.eq.s32.totalorder %s15, 9
      %p94 = scmp.ne.s32.totalorder %s89, %s91
      %p95 = scmp.eq.s32.totalorder %s15, 0
      %p96 = por %p94, %p95
      %p97 = scmp.ne.s32.totalorder %s89, %s91
      %p98 = scmp.eq.s32.totalorder %s20, 9
      %p99 = por %p97, %p98
      %p100 = scmp.ne.s32.totalorder %s91, %s92
      %p101 = scmp.eq.s32.totalorder %s20, 0
      %p102 = por %p100, %p101
      %p103 = scmp.ne.s32.totalorder %s91, %s92
      %p104 = scmp.eq.s32.totalorder %s21, 9
      %p105 = por %p103, %p104
      %p107 = scmp.ne.s32.totalorder %s92, %s106
      %p108 = scmp.eq.s32.totalorder %s21, 0
      %p109 = por %p107, %p108
      %s111 = sadd.s32 %s110, 1
      %p114 = scmp.eq.s32.totalorder %s15, 9
      %p115 = scmp.ne.s32.totalorder %s110, %s112
      %p116 = scmp.eq.s32.totalorder %s15, 0
      %p117 = por %p115, %p116
      %p118 = scmp.ne.s32.totalorder %s110, %s112
      %p119 = scmp.eq.s32.totalorder %s20, 9
      %p120 = por %p118, %p119
      %p121 = scmp.ne.s32.totalorder %s112, %s113
      %p122 = scmp.eq.s32.totalorder %s20, 0
      %p123 = por %p121, %p122
      %p124 = scmp.ne.s32.totalorder %s112, %s113
      %p125 = scmp.eq.s32.totalorder %s21, 9
      %p126 = por %p124, %p125
      %p128 = scmp.ne.s32.totalorder %s113, %s127
      %p129 = scmp.eq.s32.totalorder %s21, 0
      %p130 = por %p128, %p129
      %s132 = sadd.s32 %s131, 1
      %p135 = scmp.eq.s32.totalorder %s15, 9
      %p136 = scmp.ne.s32.totalorder %s131, %s133
      %p137 = scmp.eq.s32.totalorder %s15, 0
      %p138 = por %p136, %p137
      %p139 = scmp.ne.s32.totalorder %s131, %s133
      %p140 = scmp.eq.s32.totalorder %s20, 9
      %p141 = por %p139, %p140
      %p142 = scmp.ne.s32.totalorder %s133, %s134
      %p143 = scmp.eq.s32.totalorder %s20, 0
      %p144 = por %p142, %p143
      %p145 = scmp.ne.s32.totalorder %s133, %s134
      %p146 = scmp.eq.s32.totalorder %s21, 9
      %p147 = por %p145, %p146
      %p149 = scmp.ne.s32.totalorder %s134, %s148
      %p150 = scmp.eq.s32.totalorder %s21, 0
      %p151 = por %p149, %p150
      %s153 = sadd.s32 %s152, 1
      %p156 = scmp.eq.s32.totalorder %s15, 9
      %p157 = scmp.ne.s32.totalorder %s152, %s154
      %p158 = scmp.eq.s32.totalorder %s15, 0
      %p159 = por %p157, %p158
      %p160 = scmp.ne.s32.totalorder %s152, %s154
      %p161 = scmp.eq.s32.totalorder %s20, 9
      %p162 = por %p160, %p161
      %p163 = scmp.ne.s32.totalorder %s154, %s155
      %p164 = scmp.eq.s32.totalorder %s20, 0
      %p165 = por %p163, %p164
      %p166 = scmp.ne.s32.totalorder %s154, %s155
      %p167 = scmp.eq.s32.totalorder %s21, 9
      %p168 = por %p166, %p167
      %p170 = scmp.ne.s32.totalorder %s155, %s169
      %p171 = scmp.eq.s32.totalorder %s21, 0
      %p172 = por %p170, %p171
      %s174 = sadd.s32 %s173, 1
      %p177 = scmp.eq.s32.totalorder %s15, 9
      %p178 = scmp.ne.s32.totalorder %s173, %s175
      %p179 = scmp.eq.s32.totalorder %s15, 0
      %p180 = por %p178, %p179
      %p181 = scmp.ne.s32.totalorder %s173, %s175
      %p182 = scmp.eq.s32.totalorder %s20, 9
      %p183 = por %p181, %p182
      %p184 = scmp.ne.s32.totalorder %s175, %s176
      %p185 = scmp.eq.s32.totalorder %s20, 0
      %p186 = por %p184, %p185
      %p187 = scmp.ne.s32.totalorder %s175, %s176
      %p188 = scmp.eq.s32.totalorder %s21, 9
      %p189 = por %p187, %p188
      %p191 = scmp.ne.s32.totalorder %s176, %s190
      %p192 = scmp.eq.s32.totalorder %s21, 0
      %p193 = por %p191, %p192
      %s195 = sadd.s32 %s194, 1
      %p198 = scmp.eq.s32.totalorder %s15, 9
      %p199 = scmp.ne.s32.totalorder %s194, %s196
      %p200 = scmp.eq.s32.totalorder %s15, 0
      %p201 = por %p199, %p200
      %p202 = scmp.ne.s32.totalorder %s194, %s196
      %p203 = scmp.eq.s32.totalorder %s20, 9
      %p204 = por %p202, %p203
      %p205 = scmp.ne.s32.totalorder %s196, %s197
      %p206 = scmp.eq.s32.totalorder %s20, 0
      %p207 = por %p205, %p206
      %p208 = scmp.ne.s32.totalorder %s196, %s197
      %p209 = scmp.eq.s32.totalorder %s21, 9
      %p210 = por %p208, %p209
      %p212 = scmp.ne.s32.totalorder %s197, %s211
      %p213 = scmp.eq.s32.totalorder %s21, 0
      %p214 = por %p212, %p213
      %s216 = sadd.s32 %s215, 1
      %p219 = scmp.eq.s32.totalorder %s15, 9
      %p220 = scmp.ne.s32.totalorder %s215, %s217
      %p221 = scmp.eq.s32.totalorder %s15, 0
      %p222 = por %p220, %p221
      %p223 = scmp.ne.s32.totalorder %s215, %s217
      %p224 = scmp.eq.s32.totalorder %s20, 9
      %p225 = por %p223, %p224
      %p226 = scmp.ne.s32.totalorder %s217, %s218
      %p227 = scmp.eq.s32.totalorder %s20, 0
      %p228 = por %p226, %p227
      %p229 = scmp.ne.s32.totalorder %s217, %s218
      %p230 = scmp.eq.s32.totalorder %s21, 9
      %p231 = por %p229, %p230
      %p233 = scmp.ne.s32.totalorder %s218, %s232
      %p234 = scmp.eq.s32.totalorder %s21, 0
      %p235 = por %p233, %p234
      %s236 = ssub.s32 %s22, %s34
      %s237 = ssub.s32 %s23, %s30
      %s238 = sor.u32 %s236, %s237
      %p239 = scmp.eq.s32.totalorder %s238, 0
      %s241 = sadd.s32 %s240, 1
      %s242 = scalar_select %p239, %s240, %s241
      %p245 = pneg %p239
      %p246 = scmp.eq.s32.totalorder %s15, 9
      %p247 = por %p245, %p246
      %p248 = scmp.ne.s32.totalorder %s240, %s243
      %p249 = scmp.eq.s32.totalorder %s15, 0
      %p250 = por %p248, %p249
      %p251 = scmp.ne.s32.totalorder %s240, %s243
      %p252 = scmp.eq.s32.totalorder %s20, 9
      %p253 = por %p251, %p252
      %p254 = scmp.ne.s32.totalorder %s243, %s244
      %p255 = scmp.eq.s32.totalorder %s20, 0
      %p256 = por %p254, %p255
      %p257 = scmp.ne.s32.totalorder %s243, %s244
      %p258 = scmp.eq.s32.totalorder %s21, 9
      %p259 = por %p257, %p258
      %p261 = scmp.ne.s32.totalorder %s244, %s260
      %p262 = scmp.eq.s32.totalorder %s21, 0
      %p263 = por %p261, %p262
      %p264 = scmp.le.s32.totalorder 1, %s15
      %p265 = scmp.lt.s32.totalorder %s15, 11
      %p266 = pnand %p264, %p265
      %p267 = pneg %p266
      // Predicated region
      $region9: #{crau_forward.1} parent=5 // pred_check
        _
      $region10: #{crau_forward.1} parent=5 // pred_check_branch
        %269 = sbr.rel (%p266) target = $region12
      $region11: #{crau_forward.1} parent=5 // pred_region
        %s270 = ssub.s32 %s15, 1
        // Predicated region
        $region13: #{crau_forward.1} parent=11 // pred_check
          %p271 = pneg %p102
        $region14: #{crau_forward.1} parent=11 // pred_check_branch
          %273 = sbr.rel (%p271) target = $region16
        $region15: #{crau_forward.1} parent=11 // pred_region
          _
        $region16: #{crau_forward.1} parent=11 // pred_fallthru
          _
        // Predicated region
        $region17: #{crau_forward.1} parent=11 // pred_check
          %p274 = pneg %p123
        $region18: #{crau_forward.1} parent=11 // pred_check_branch
          %276 = sbr.rel (%p274) target = $region20
        $region19: #{crau_forward.1} parent=11 // pred_region
          _
        $region20: #{crau_forward.1} parent=11 // pred_fallthru
          _
        // Predicated region
        $region21: #{crau_forward.1} parent=11 // pred_check
          %p277 = pneg %p144
        $region22: #{crau_forward.1} parent=11 // pred_check_branch
          %279 = sbr.rel (%p277) target = $region24
        $region23: #{crau_forward.1} parent=11 // pred_region
          _
        $region24: #{crau_forward.1} parent=11 // pred_fallthru
          _
        // Predicated region
        $region25: #{crau_forward.1} parent=11 // pred_check
          %p280 = pneg %p165
        $region26: #{crau_forward.1} parent=11 // pred_check_branch
          %282 = sbr.rel (%p280) target = $region28
        $region27: #{crau_forward.1} parent=11 // pred_region
          _
        $region28: #{crau_forward.1} parent=11 // pred_fallthru
          _
        // Predicated region
        $region29: #{crau_forward.1} parent=11 // pred_check
          %p283 = pneg %p186
        $region30: #{crau_forward.1} parent=11 // pred_check_branch
          %285 = sbr.rel (%p283) target = $region32
        $region31: #{crau_forward.1} parent=11 // pred_region
          _
        $region32: #{crau_forward.1} parent=11 // pred_fallthru
          _
        // Predicated region
        $region33: #{crau_forward.1} parent=11 // pred_check
          %p286 = pneg %p207
        $region34: #{crau_forward.1} parent=11 // pred_check_branch
          %288 = sbr.rel (%p286) target = $region36
        $region35: #{crau_forward.1} parent=11 // pred_region
          _
        $region36: #{crau_forward.1} parent=11 // pred_fallthru
          _
        // Predicated region
        $region37: #{crau_forward.1} parent=11 // pred_check
          %p289 = pneg %p228
        $region38: #{crau_forward.1} parent=11 // pred_check_branch
          %291 = sbr.rel (%p289) target = $region40
        $region39: #{crau_forward.1} parent=11 // pred_region
          _
        $region40: #{crau_forward.1} parent=11 // pred_fallthru
          _
      $region12: #{crau_forward.1} parent=5 // pred_fallthru
        _
      %p292 = scmp.lt.s32.totalorder %s15, 10
      // Predicated region
      $region41: #{crau_forward.1} parent=5 // pred_check
        %p293 = pneg %p292
      $region42: #{crau_forward.1} parent=5 // pred_check_branch
        %295 = sbr.rel (%p293) target = $region44
      $region43: #{crau_forward.1} parent=5 // pred_region
        // Predicated region
        $region45: #{crau_forward.1} parent=43 // pred_check
          %p296 = pneg %p49
        $region46: #{crau_forward.1} parent=43 // pred_check_branch
          %298 = sbr.rel (%p296) target = $region48
        $region47: #{crau_forward.1} parent=43 // pred_region
          %s299 = sand.u32 %s39, 1
          %s300 = sand.u32 %s39, 1
          %s301 = smul.addr %s300, 16
          %s302 = scalar_lea.vmem [#allocation3], %s301
          %s303 = smul.addr %s22, 10
          %s304 = sadd.s32 %s23, %s303
          %s305 = smul.addr %s304, 8
          %s306 = scalar_lea.vmem %s0, %s305
          // Predicated region
          $region49: #{crau_forward.1} parent=47 // pred_check
            _
          $region50: #{crau_forward.1} parent=47 // pred_check_branch
            %308 = sbr.rel (0) target = $region52
          $region51: #{crau_forward.1} parent=47 // pred_region
            // Predicated region
            $region53: #{crau_forward.1} parent=51 // pred_check
              _
            $region54: #{crau_forward.1} parent=51 // pred_check_branch
              %310 = sbr.rel (0) target = $region56
            $region55: #{crau_forward.1} parent=51 // pred_region
              // Predicated region
              $region68: #{crau_forward.1} parent=55 // pred_check
                _
              $region69: #{crau_forward.1} parent=55 // pred_check_branch
                %327 = sbr.rel (0) target = $region71
              $region70: #{crau_forward.1} parent=55 // pred_region
                loop: start=0, step=1, limit=1
                $region72: #{crau_forward.1} parent=70 // loop_pre_header
                  _
                $region73: #{crau_forward.1} parent=70 // loop_header
                  %s329 = sphi 0, %s333
                  %p330 = scmp.ge.s32.totalorder %s329, 1
                  %s334 = sphi %s306, %s306
                  %s335 = sphi %s302, %s302
                $region74: #{crau_forward.1} parent=70 // loop_header_branch
                  %332 = sbr.rel (%p330) target = $region78
                $region75: #{crau_forward.1} parent=70 // loop_body
                  %v336 = vld [vmem:[%s334] sm:$0xff]
                  %337 = vst [vmem:[%s335] sm:$0xff] %v336
                  %v338 = vld [vmem:[%s334 + $0x28] sm:$0xff]
                  %339 = vst [vmem:[%s335 + $0x8] sm:$0xff] %v338
                $region76: #{crau_forward.1} parent=70 // loop_footer
                  %s333 = sadd.s32 1, %s329
                $region77: #{crau_forward.1} parent=70 // loop_footer_branch
                  %328 = sbr.rel target = $region73
                $region78: #{crau_forward.1} parent=70 // loop_exit
                  _
              $region71: #{crau_forward.1} parent=55 // pred_fallthru
                _
              // Predicated region
              $region79: #{crau_forward.1} parent=55 // pred_check
                _
              $region80: #{crau_forward.1} parent=55 // pred_check_branch
                %341 = sbr.rel target = $region82
              $region81: #{crau_forward.1} parent=55 // pred_region
                _
              $region82: #{crau_forward.1} parent=55 // pred_fallthru
                _
            $region56: #{crau_forward.1} parent=51 // pred_fallthru
              _
            // Predicated region
            $region57: #{crau_forward.1} parent=51 // pred_check
              _
            $region58: #{crau_forward.1} parent=51 // pred_check_branch
              %312 = sbr.rel target = $region60
            $region59: #{crau_forward.1} parent=51 // pred_region
              loop: start=0, step=1, limit=1
              $region61: #{crau_forward.1} parent=59 // loop_pre_header
                _
              $region62: #{crau_forward.1} parent=59 // loop_header
                %s315 = sphi 0, %s319
                %p316 = scmp.ge.s32.totalorder %s315, 1
                %s320 = sphi %s306, %s306
                %s321 = sphi %s302, %s302
              $region63: #{crau_forward.1} parent=59 // loop_header_branch
                %318 = sbr.rel (%p316) target = $region67
              $region64: #{crau_forward.1} parent=59 // loop_body
                %v322 = vld [vmem:[%s320] sm:$0xff]
                %323 = vst [vmem:[%s321] sm:$0xff] %v322
                %v324 = vld [vmem:[%s320 + $0x28] sm:$0xff]
                %325 = vst [vmem:[%s321 + $0x8] sm:$0xff] %v324
              $region65: #{crau_forward.1} parent=59 // loop_footer
                %s319 = sadd.s32 1, %s315
              $region66: #{crau_forward.1} parent=59 // loop_footer_branch
                %314 = sbr.rel target = $region62
              $region67: #{crau_forward.1} parent=59 // loop_exit
                _
            $region60: #{crau_forward.1} parent=51 // pred_fallthru
              _
          $region52: #{crau_forward.1} parent=47 // pred_fallthru
            _
          %342 = vnop
        $region48: #{crau_forward.1} parent=43 // pred_fallthru
          _
        // Predicated region
        $region83: #{crau_forward.1} parent=43 // pred_check
          %p343 = pneg %p75
        $region84: #{crau_forward.1} parent=43 // pred_check_branch
          %345 = sbr.rel (%p343) target = $region86
        $region85: #{crau_forward.1} parent=43 // pred_region
          %p346 = scmp.lt.s32.totalorder %s22, 1
          %s347 = scalar_select %p346, %s22, 1
          %s348 = smul.addr %s347, 4
          %s349 = smul.addr %s348, 8
          %s350 = scalar_lea.vmem %s1, %s349
        $region86: #{crau_forward.1} parent=43 // pred_fallthru
          _
      $region44: #{crau_forward.1} parent=5 // pred_fallthru
        _
      %p351 = scmp.le.s32.totalorder 1, %s15
      %p352 = scmp.lt.s32.totalorder %s15, 11
      %p353 = pnand %p351, %p352
      %p354 = pneg %p353
      // Predicated region
      $region87: #{crau_forward.1} parent=5 // pred_check
        _
      $region88: #{crau_forward.1} parent=5 // pred_check_branch
        %356 = sbr.rel (%p353) target = $region90
      $region89: #{crau_forward.1} parent=5 // pred_region
        %s357 = ssub.s32 %s15, 1
        %s358 = sand.u32 %s42, 1
        %s359 = sand.u32 %s42, 1
        %s360 = smul.addr %s359, 16
        %s361 = scalar_lea.vmem [#allocation3], %s360
        // Predicated region
        $region91: #{crau_forward.1} parent=89 // pred_check
          %p362 = pneg %p55
        $region92: #{crau_forward.1} parent=89 // pred_check_branch
          %364 = sbr.rel (%p362) target = $region94
        $region93: #{crau_forward.1} parent=89 // pred_region
          _
        $region94: #{crau_forward.1} parent=89 // pred_fallthru
          _
        %s365 = sand.u32 %s42, 1
        %s366 = sand.u32 %s42, 1
        %s367 = smul.addr %s366, 16
        %s368 = scalar_lea.vmem [#allocation3], %s367
        %p369 = pneg %p55
        %p370 = pneg %p52
        %p371 = scmp.lt.s32.totalorder %s24, 1
        %s372 = scalar_select %p371, %s24, 1
        %s373 = smul.addr %s372, 4
        %s374 = smul.addr %s373, 8
        %s375 = scalar_lea.vmem %s1, %s374
        %p376 = pneg %p81
        %p377 = pneg %p78
        %p378 = pneg %p102
        %p379 = pneg %p99
        %p380 = pneg %p123
        %p381 = pneg %p120
        %p382 = pneg %p144
        %p383 = pneg %p141
        %p384 = pneg %p165
        %p385 = pneg %p162
        %p386 = pneg %p186
        %p387 = pneg %p183
        %p388 = pneg %p207
        %p389 = pneg %p204
        %p390 = pneg %p228
        %p391 = pneg %p225
        %p392 = pneg %p256
        %p393 = pneg %p253
        %s394 = sand.u32 %s243, 1
        %s395 = sand.u32 %s243, 1
        %s396 = smul.addr %s395, 16
        %s397 = scalar_lea.vmem [#allocation4], %s396
        %p398 = scmp.lt.s32.totalorder %s24, 1
        %s399 = scalar_select %p398, %s24, 1
        %s400 = smul.addr %s399, 4
        %s401 = smul.addr %s400, 8
        %s402 = scalar_lea.vmem %s1, %s401
        %v404 = vld [vmem:[%s2] sm:$0xff]
        %v405 = vld [vmem:[%s2 + $0x8] sm:$0xff]
        %v406 = vld [vmem:[%s361] sm:$0xff]
        %v407 = vld [vmem:[%s361 + $0x8] sm:$0xff]
        %v408 = vld [vmem:[%s3] sm:$0xff]
        %v409 = vld [vmem:[%s3 + $0x8] sm:$0xff]
        %411 = vset.pattern.permute.xlu0 0
        %412 = vperm.xlu0 %411, %v408
        %v413 = vpop.permute.xlu0 %412
        %416 = vset.pattern.permute.xlu0 0
        %417 = vperm.xlu0 %416, %v409
        %v418 = vpop.permute.xlu0 %417
        %vm420 = vcmask 130048
        %v422 = vsel %vm420, %v404, 0
        %v425 = vsel %vm420, %v405, 0
        %427 = vmatprep.subr.mxu0 0.0
        %428 = vmatpush1.msra.mxu0 %v406
        %429 = vmatprep.subr.mxu0 0.0
        %430 = vmatpush1.msra.mxu0 %v407
        %431 = vmatprep.subr.mxu0 0.0
        %432 = vmatpush1.msra.mxu0 0.0
        %433 = vmatprep.subr.mxu0 0.0
        %434 = vmatpush1.msra.mxu0 0.0
        %435 = vmatprep.subr.mxu0 0.0
        %436 = vmatpush1.msra.mxu0 0.0
        %437 = vmatprep.subr.mxu0 0.0
        %438 = vmatpush1.msra.mxu0 0.0
        %439 = vmatprep.subr.mxu0 0.0
        %440 = vmatpush1.msra.mxu0 0.0
        %441 = vmatprep.subr.mxu0 0.0
        %442 = vmatpush1.msra.mxu0 0.0
        %443 = vmatprep.subr.mxu0 0.0
        %444 = vmatpush1.msra.mxu0 0.0
        %445 = vmatprep.subr.mxu0 0.0
        %446 = vmatpush1.msra.mxu0 0.0
        %447 = vmatprep.subr.mxu0 0.0
        %448 = vmatpush1.msra.mxu0 0.0
        %449 = vmatprep.subr.mxu0 0.0
        %450 = vmatpush1.msra.mxu0 0.0
        %451 = vmatprep.subr.mxu0 0.0
        %452 = vmatpush1.msra.mxu0 0.0
        %453 = vmatprep.subr.mxu0 0.0
        %454 = vmatpush1.msra.mxu0 0.0
        %455 = vmatprep.subr.mxu0 0.0
        %456 = vmatpush1.msra.mxu0 0.0
        %457 = vmatprep.subr.mxu0 0.0
        %458 = vmatpush1.msra.mxu0 0.0
        %459 = vmatprep.subr.mxu0 0.0
        %460 = vmatpush1.msra.mxu0 0.0
        %461 = vmatprep.subr.mxu0 0.0
        %462 = vmatpush1.msra.mxu0 0.0
        %463 = vmatprep.subr.mxu0 0.0
        %464 = vmatpush1.msra.mxu0 0.0
        %465 = vmatprep.subr.mxu0 0.0
        %466 = vmatpush1.msra.mxu0 0.0
        %467 = vmatprep.subr.mxu0 0.0
        %468 = vmatpush1.msra.mxu0 0.0
        %469 = vmatprep.subr.mxu0 0.0
        %470 = vmatpush1.msra.mxu0 0.0
        %471 = vmatprep.subr.mxu0 0.0
        %472 = vmatpush1.msra.mxu0 0.0
        %473 = vmatprep.subr.mxu0 0.0
        %474 = vmatpush1.msra.mxu0 0.0
        %475 = vmatprep.subr.mxu0 0.0
        %476 = vmatpush1.msra.mxu0 0.0
        %477 = vmatprep.subr.mxu0 0.0
        %478 = vmatpush1.msra.mxu0 0.0
        %479 = vmatprep.subr.mxu0 0.0
        %480 = vmatpush1.msra.mxu0 0.0
        %481 = vmatprep.subr.mxu0 0.0
        %482 = vmatpush1.msra.mxu0 0.0
        %483 = vmatprep.subr.mxu0 0.0
        %484 = vmatpush1.msra.mxu0 0.0
        %485 = vmatprep.subr.mxu0 0.0
        %486 = vmatpush1.msra.mxu0 0.0
        %487 = vmatprep.subr.mxu0 0.0
        %488 = vmatpush1.msra.mxu0 0.0
        %489 = vmatprep.subr.mxu0 0.0
        %490 = vmatpush1.msra.mxu0 0.0
        %491 = vmatprep.mubr.f32.mxu0 0.0
        %492 = vmatmul.mubr.f32.gmra.mrb[0].mxu0 %v422
        %v493 = vpop.f32.mrb[0].mxu0
        %v494 = vadd.f32 %v413, %v493
        %v495 = vpop.f32.mrb[0].mxu0
        %496 = vmatprep.mubr.f32.mxu0 0.0
        %497 = vmatmul.mubr.f32.gmra.mrb[0].mxu0 %v425
        %v498 = vpop.f32.mrb[0].mxu0
        %v499 = vadd.f32 %v418, %v498
        %v500 = vpop.f32.mrb[0].mxu0
        %501 = vdwg.mxu0
        %v502 = vld [vmem:[%s4] sm:$0xff]
        %v503 = vld [vmem:[%s4 + $0x8] sm:$0xff]
        %v504 = vld [vmem:[%s4 + $0x10] sm:$0xff]
        %v505 = vld [vmem:[%s4 + $0x18] sm:$0xff]
        %v506 = vld [vmem:[%s402] sm:$0xff]
        %v507 = vld [vmem:[%s402 + $0x8] sm:$0xff]
        %v508 = vld [vmem:[%s402 + $0x10] sm:$0xff]
        %v509 = vld [vmem:[%s402 + $0x18] sm:$0xff]
        %v510 = vld [vmem:[%s5] sm:$0xff]
        %v511 = vld [vmem:[%s5 + $0x8] sm:$0xff]
        %v512 = vld [vmem:[%s5 + $0x10] sm:$0xff]
        %v513 = vld [vmem:[%s5 + $0x18] sm:$0xff]
        %515 = vset.pattern.permute.xlu0 0
        %516 = vperm.xlu0 %515, %v510
        %v517 = vpop.permute.xlu0 %516
        %520 = vset.pattern.permute.xlu0 0
        %521 = vperm.xlu0 %520, %v511
        %v522 = vpop.permute.xlu0 %521
        %525 = vset.pattern.permute.xlu0 0
        %526 = vperm.xlu0 %525, %v512
        %v527 = vpop.permute.xlu0 %526
        %530 = vset.pattern.permute.xlu0 0
        %531 = vperm.xlu0 %530, %v513
        %v532 = vpop.permute.xlu0 %531
        %v535 = vsel %vm420, %v502, 0
        %v538 = vsel %vm420, %v503, 0
        %v541 = vsel %vm420, %v504, 0
        %v544 = vsel %vm420, %v505, 0
        %546 = vmatprep.subr.mxu0 %v507
        %547 = vmatpush1.msra.mxu0 %v506
        %548 = vmatprep.subr.mxu0 %v509
        %549 = vmatpush1.msra.mxu0 %v508
        %550 = vmatprep.subr.mxu0 0.0
        %551 = vmatpush1.msra.mxu0 0.0
        %552 = vmatprep.subr.mxu0 0.0
        %553 = vmatpush1.msra.mxu0 0.0
        %554 = vmatprep.subr.mxu0 0.0
        %555 = vmatpush1.msra.mxu0 0.0
        %556 = vmatprep.subr.mxu0 0.0
        %557 = vmatpush1.msra.mxu0 0.0
        %558 = vmatprep.subr.mxu0 0.0
        %559 = vmatpush1.msra.mxu0 0.0
        %560 = vmatprep.subr.mxu0 0.0
        %561 = vmatpush1.msra.mxu0 0.0
        %562 = vmatprep.subr.mxu0 0.0
        %563 = vmatpush1.msra.mxu0 0.0
        %564 = vmatprep.subr.mxu0 0.0
        %565 = vmatpush1.msra.mxu0 0.0
        %566 = vmatprep.subr.mxu0 0.0
        %567 = vmatpush1.msra.mxu0 0.0
        %568 = vmatprep.subr.mxu0 0.0
        %569 = vmatpush1.msra.mxu0 0.0
        %570 = vmatprep.subr.mxu0 0.0
        %571 = vmatpush1.msra.mxu0 0.0
        %572 = vmatprep.subr.mxu0 0.0
        %573 = vmatpush1.msra.mxu0 0.0
        %574 = vmatprep.subr.mxu0 0.0
        %575 = vmatpush1.msra.mxu0 0.0
        %576 = vmatprep.subr.mxu0 0.0
        %577 = vmatpush1.msra.mxu0 0.0
        %578 = vmatprep.subr.mxu0 0.0
        %579 = vmatpush1.msra.mxu0 0.0
        %580 = vmatprep.subr.mxu0 0.0
        %581 = vmatpush1.msra.mxu0 0.0
        %582 = vmatprep.subr.mxu0 0.0
        %583 = vmatpush1.msra.mxu0 0.0
        %584 = vmatprep.subr.mxu0 0.0
        %585 = vmatpush1.msra.mxu0 0.0
        %586 = vmatprep.subr.mxu0 0.0
        %587 = vmatpush1.msra.mxu0 0.0
        %588 = vmatprep.subr.mxu0 0.0
        %589 = vmatpush1.msra.mxu0 0.0
        %590 = vmatprep.subr.mxu0 0.0
        %591 = vmatpush1.msra.mxu0 0.0
        %592 = vmatprep.subr.mxu0 0.0
        %593 = vmatpush1.msra.mxu0 0.0
        %594 = vmatprep.subr.mxu0 0.0
        %595 = vmatpush1.msra.mxu0 0.0
        %596 = vmatprep.subr.mxu0 0.0
        %597 = vmatpush1.msra.mxu0 0.0
        %598 = vmatprep.subr.mxu0 0.0
        %599 = vmatpush1.msra.mxu0 0.0
        %600 = vmatprep.subr.mxu0 0.0
        %601 = vmatpush1.msra.mxu0 0.0
        %602 = vmatprep.subr.mxu0 0.0
        %603 = vmatpush1.msra.mxu0 0.0
        %604 = vmatprep.subr.mxu0 0.0
        %605 = vmatpush1.msra.mxu0 0.0
        %606 = vmatprep.subr.mxu0 0.0
        %607 = vmatpush1.msra.mxu0 0.0
        %608 = vmatprep.subr.mxu0 0.0
        %609 = vmatpush1.msra.mxu0 0.0
        %610 = vmatprep.mubr.f32.mxu0 0.0
        %611 = vmatmul.mubr.f32.gmra.mrb[0].mxu0 %v535
        %v612 = vpop.f32.mrb[0].mxu0
        %v613 = vadd.f32 %v517, %v612
        %v614 = vpop.f32.mrb[0].mxu0
        %v615 = vadd.f32 %v517, %v614
        %616 = vmatprep.mubr.f32.mxu0 0.0
        %617 = vmatmul.mubr.f32.gmra.mrb[0].mxu0 %v538
        %v618 = vpop.f32.mrb[0].mxu0
        %v619 = vadd.f32 %v522, %v618
        %v620 = vpop.f32.mrb[0].mxu0
        %v621 = vadd.f32 %v522, %v620
        %622 = vmatprep.mubr.f32.mxu0 0.0
        %623 = vmatmul.mubr.f32.gmra.mrb[0].mxu0 %v541
        %v624 = vpop.f32.mrb[0].mxu0
        %v625 = vadd.f32 %v527, %v624
        %v626 = vpop.f32.mrb[0].mxu0
        %v627 = vadd.f32 %v527, %v626
        %628 = vmatprep.mubr.f32.mxu0 0.0
        %629 = vmatmul.mubr.f32.gmra.mrb[0].mxu0 %v544
        %v630 = vpop.f32.mrb[0].mxu0
        %v631 = vadd.f32 %v532, %v630
        %v632 = vpop.f32.mrb[0].mxu0
        %v633 = vadd.f32 %v532, %v632
        %634 = vdwg.mxu0
        %v635 = vld [vmem:[%s6] sm:$0xff]
        %v636 = vld [vmem:[%s6 + $0x8] sm:$0xff]
        %v637 = vld [vmem:[%s6 + $0x10] sm:$0xff]
        %v638 = vld [vmem:[%s6 + $0x18] sm:$0xff]
        %v639 = vld [vmem:[%s6 + $0x20] sm:$0xff]
        %v640 = vld [vmem:[%s6 + $0x28] sm:$0xff]
        %v641 = vld [vmem:[%s6 + $0x30] sm:$0xff]
        %v642 = vld [vmem:[%s6 + $0x38] sm:$0xff]
        %v643 = vld [vmem:[%s6 + $0x40] sm:$0xff]
        %v644 = vld [vmem:[%s6 + $0x48] sm:$0xff]
        %v645 = vld [vmem:[%s6 + $0x50] sm:$0xff]
        %v646 = vld [vmem:[%s6 + $0x58] sm:$0xff]
        %v647 = vld [vmem:[%s6 + $0x60] sm:$0xff]
        %v648 = vld [vmem:[%s6 + $0x68] sm:$0xff]
        %v649 = vld [vmem:[%s6 + $0x70] sm:$0xff]
        %v650 = vld [vmem:[%s6 + $0x78] sm:$0xff]
        %v651 = vld [vmem:[%s6 + $0x80] sm:$0xff]
        %v652 = vld [vmem:[%s6 + $0x88] sm:$0xff]
        %v653 = vld [vmem:[%s6 + $0x90] sm:$0xff]
        %v654 = vld [vmem:[%s6 + $0x98] sm:$0xff]
        %v655 = vld [vmem:[%s6 + $0xa0] sm:$0xff]
        %v656 = vld [vmem:[%s6 + $0xa8] sm:$0xff]
        %v657 = vld [vmem:[%s6 + $0xb0] sm:$0xff]
        %v658 = vld [vmem:[%s6 + $0xb8] sm:$0xff]
        %v659 = vld [vmem:[%s6 + $0xc0] sm:$0xff]
        %v660 = vld [vmem:[%s6 + $0xc8] sm:$0xff]
        %v661 = vld [vmem:[%s6 + $0xd0] sm:$0xff]
        %v662 = vld [vmem:[%s6 + $0xd8] sm:$0xff]
        %v663 = vld [vmem:[%s6 + $0xe0] sm:$0xff]
        %v664 = vld [vmem:[%s6 + $0xe8] sm:$0xff]
        %v665 = vld [vmem:[%s6 + $0xf0] sm:$0xff]
        %v666 = vld [vmem:[%s6 + $0xf8] sm:$0xff]
        %v667 = vpack.c.bf16 %v619, %v613
        %v668 = vpack.c.bf16 %v621, %v615
        %v669 = vpack.c.bf16 %v631, %v625
        %v670 = vpack.c.bf16 %v633, %v627
        %v703 = vunpack.c.l.b16 %v635
        %v704 = vunpack.c.h.b16 %v635
        %v705 = vunpack.c.l.b16 %v636
        %v706 = vunpack.c.h.b16 %v636
        %v707 = vunpack.c.l.b16 %v637
        %v708 = vunpack.c.h.b16 %v637
        %v709 = vunpack.c.l.b16 %v638
        %v710 = vunpack.c.h.b16 %v638
        %v711 = vunpack.c.l.b16 %v639
        %v712 = vunpack.c.h.b16 %v639
        %v713 = vunpack.c.l.b16 %v640
        %v714 = vunpack.c.h.b16 %v640
        %v715 = vunpack.c.l.b16 %v641
        %v716 = vunpack.c.h.b16 %v641
        %v717 = vunpack.c.l.b16 %v642
        %v718 = vunpack.c.h.b16 %v642
        %v719 = vunpack.c.l.b16 %v643
        %v720 = vunpack.c.h.b16 %v643
        %v721 = vunpack.c.l.b16 %v644
        %v722 = vunpack.c.h.b16 %v644
        %v723 = vunpack.c.l.b16 %v645
        %v724 = vunpack.c.h.b16 %v645
        %v725 = vunpack.c.l.b16 %v646
        %v726 = vunpack.c.h.b16 %v646
        %v727 = vunpack.c.l.b16 %v647
        %v728 = vunpack.c.h.b16 %v647
        %v729 = vunpack.c.l.b16 %v648
        %v730 = vunpack.c.h.b16 %v648
        %v731 = vunpack.c.l.b16 %v649
        %v732 = vunpack.c.h.b16 %v649
        %v733 = vunpack.c.l.b16 %v650
        %v734 = vunpack.c.h.b16 %v650
        %v735 = vunpack.c.l.b16 %v651
        %v736 = vunpack.c.h.b16 %v651
        %v737 = vunpack.c.l.b16 %v652
        %v738 = vunpack.c.h.b16 %v652
        %v739 = vunpack.c.l.b16 %v653
        %v740 = vunpack.c.h.b16 %v653
        %v741 = vunpack.c.l.b16 %v654
        %v742 = vunpack.c.h.b16 %v654
        %v743 = vunpack.c.l.b16 %v655
        %v744 = vunpack.c.h.b16 %v655
        %v745 = vunpack.c.l.b16 %v656
        %v746 = vunpack.c.h.b16 %v656
        %v747 = vunpack.c.l.b16 %v657
        %v748 = vunpack.c.h.b16 %v657
        %v749 = vunpack.c.l.b16 %v658
        %v750 = vunpack.c.h.b16 %v658
        %v751 = vunpack.c.l.b16 %v659
        %v752 = vunpack.c.h.b16 %v659
        %v753 = vunpack.c.l.b16 %v660
        %v754 = vunpack.c.h.b16 %v660
        %v755 = vunpack.c.l.b16 %v661
        %v756 = vunpack.c.h.b16 %v661
        %v757 = vunpack.c.l.b16 %v662
        %v758 = vunpack.c.h.b16 %v662
        %v759 = vunpack.c.l.b16 %v663
        %v760 = vunpack.c.h.b16 %v663
        %v761 = vunpack.c.l.b16 %v664
        %v762 = vunpack.c.h.b16 %v664
        %v763 = vunpack.c.l.b16 %v665
        %v764 = vunpack.c.h.b16 %v665
        %v765 = vunpack.c.l.b16 %v666
        %v766 = vunpack.c.h.b16 %v666
        %v767 = vpack.c.b16 %v719, %v703
        %v768 = vpack.c.b16 %v720, %v704
        %v769 = vpack.c.b16 %v721, %v705
        %v770 = vpack.c.b16 %v722, %v706
        %v771 = vpack.c.b16 %v723, %v707
        %v772 = vpack.c.b16 %v724, %v708
        %v773 = vpack.c.b16 %v725, %v709
        %v774 = vpack.c.b16 %v726, %v710
        %v775 = vpack.c.b16 %v727, %v711
        %v776 = vpack.c.b16 %v728, %v712
        %v777 = vpack.c.b16 %v729, %v713
        %v778 = vpack.c.b16 %v730, %v714
        %v779 = vpack.c.b16 %v731, %v715
        %v780 = vpack.c.b16 %v732, %v716
        %v781 = vpack.c.b16 %v733, %v717
        %v782 = vpack.c.b16 %v734, %v718
        %v783 = vpack.c.b16 %v751, %v735
        %v784 = vpack.c.b16 %v752, %v736
        %v785 = vpack.c.b16 %v753, %v737
        %v786 = vpack.c.b16 %v754, %v738
        %v787 = vpack.c.b16 %v755, %v739
        %v788 = vpack.c.b16 %v756, %v740
        %v789 = vpack.c.b16 %v757, %v741
        %v790 = vpack.c.b16 %v758, %v742
        %v791 = vpack.c.b16 %v759, %v743
        %v792 = vpack.c.b16 %v760, %v744
        %v793 = vpack.c.b16 %v761, %v745
        %v794 = vpack.c.b16 %v762, %v746
        %v795 = vpack.c.b16 %v763, %v747
        %v796 = vpack.c.b16 %v764, %v748
        %v797 = vpack.c.b16 %v765, %v749
        %v798 = vpack.c.b16 %v766, %v750
        %v831 = vmul.bf16 %v667, %v767
        %v832 = vmul.bf16 %v668, %v768
        %v833 = vmul.bf16 %v667, %v769
        %v834 = vmul.bf16 %v668, %v770
        %v835 = vmul.bf16 %v667, %v771
        %v836 = vmul.bf16 %v668, %v772
        %v837 = vmul.bf16 %v667, %v773
        %v838 = vmul.bf16 %v668, %v774
        %v839 = vmul.bf16 %v667, %v775
        %v840 = vmul.bf16 %v668, %v776
        %v841 = vmul.bf16 %v667, %v777
        %v842 = vmul.bf16 %v668, %v778
        %v843 = vmul.bf16 %v667, %v779
        %v844 = vmul.bf16 %v668, %v780
        %v845 = vmul.bf16 %v667, %v781
        %v846 = vmul.bf16 %v668, %v782
        %v847 = vmul.bf16 %v669, %v783
        %v848 = vmul.bf16 %v670, %v784
        %v849 = vmul.bf16 %v669, %v785
        %v850 = vmul.bf16 %v670, %v786
        %v851 = vmul.bf16 %v669, %v787
        %v852 = vmul.bf16 %v670, %v788
        %v853 = vmul.bf16 %v669, %v789
        %v854 = vmul.bf16 %v670, %v790
        %v855 = vmul.bf16 %v669, %v791
        %v856 = vmul.bf16 %v670, %v792
        %v857 = vmul.bf16 %v669, %v793
        %v858 = vmul.bf16 %v670, %v794
        %v859 = vmul.bf16 %v669, %v795
        %v860 = vmul.bf16 %v670, %v796
        %v861 = vmul.bf16 %v669, %v797
        %v862 = vmul.bf16 %v670, %v798
        %863 = vxpose.xlu0.b32.start [1/16] %v494, 128
        %864 = vxpose.xlu0.b32.cont [2/16] %v499, 128
        %865 = vxpose.xlu0.b32.cont [3/16] 0.0, 128
        %866 = vxpose.xlu0.b32.cont [4/16] 0.0, 128
        %867 = vxpose.xlu0.b32.cont [5/16] 0.0, 128
        %868 = vxpose.xlu0.b32.cont [6/16] 0.0, 128
        %869 = vxpose.xlu0.b32.cont [7/16] 0.0, 128
        %870 = vxpose.xlu0.b32.cont [8/16] 0.0, 128
        %871 = vxpose.xlu0.b32.cont [9/16] 0.0, 128
        %872 = vxpose.xlu0.b32.cont [10/16] 0.0, 128
        %873 = vxpose.xlu0.b32.cont [11/16] 0.0, 128
        %874 = vxpose.xlu0.b32.cont [12/16] 0.0, 128
        %875 = vxpose.xlu0.b32.cont [13/16] 0.0, 128
        %876 = vxpose.xlu0.b32.cont [14/16] 0.0, 128
        %877 = vxpose.xlu0.b32.cont [15/16] 0.0, 128
        %878 = vxpose.xlu0.b32.end [16/16] 0.0, 128
        %v879 = vpop.trf.xlu0
        %v880 = vpop.trf.xlu0
        %v881 = vpop.trf.xlu0
        %v882 = vpop.trf.xlu0
        %v883 = vpop.trf.xlu0
        %v884 = vpop.trf.xlu0
        %v885 = vpop.trf.xlu0
        %v886 = vpop.trf.xlu0
        %v887 = vpop.trf.xlu0
        %v888 = vpop.trf.xlu0
        %v889 = vpop.trf.xlu0
        %v890 = vpop.trf.xlu0
        %v891 = vpop.trf.xlu0
        %v892 = vpop.trf.xlu0
        %v893 = vpop.trf.xlu0
        %v894 = vpop.trf.xlu0
        %v895 = vpack.c.bf16 %v880, %v879
        %v896 = vpack.c.bf16 %v882, %v881
        %v897 = vpack.c.bf16 %v884, %v883
        %v898 = vpack.c.bf16 %v886, %v885
        %v899 = vpack.c.bf16 %v888, %v887
        %v900 = vpack.c.bf16 %v890, %v889
        %v901 = vpack.c.bf16 %v892, %v891
        %v902 = vpack.c.bf16 %v894, %v893
        %v904 = vsel %vm420, %v895, 0
        %v907 = vsel %vm420, %v896, 0
        %v910 = vsel %vm420, %v897, 0
        %v913 = vsel %vm420, %v898, 0
        %v916 = vsel %vm420, %v899, 0
        %v919 = vsel %vm420, %v900, 0
        %v922 = vsel %vm420, %v901, 0
        %v925 = vsel %vm420, %v902, 0
        %927 = vmatprep.subr.bf16.mxu0 %v832
        %928 = vmatpush1.bf16.msra.mxu0 %v831
        %929 = vmatprep.subr.bf16.mxu0 0
        %930 = vmatpush1.bf16.msra.mxu0 0
        %931 = vmatprep.subr.bf16.mxu0 0
        %932 = vmatpush1.bf16.msra.mxu0 0
        %933 = vmatprep.subr.bf16.mxu0 0
        %934 = vmatpush1.bf16.msra.mxu0 0
        %935 = vmatprep.subr.bf16.mxu0 0
        %936 = vmatpush1.bf16.msra.mxu0 0
        %937 = vmatprep.subr.bf16.mxu0 0
        %938 = vmatpush1.bf16.msra.mxu0 0
        %939 = vmatprep.subr.bf16.mxu0 0
        %940 = vmatpush1.bf16.msra.mxu0 0
        %941 = vmatprep.subr.bf16.mxu0 0
        %942 = vmatpush1.bf16.msra.mxu0 0
        %943 = vmatprep.subr.bf16.mxu0 0
        %944 = vmatpush1.bf16.msra.mxu0 0
        %945 = vmatprep.subr.bf16.mxu0 0
        %946 = vmatpush1.bf16.msra.mxu0 0
        %947 = vmatprep.subr.bf16.mxu0 0
        %948 = vmatpush1.bf16.msra.mxu0 0
        %949 = vmatprep.subr.bf16.mxu0 0
        %950 = vmatpush1.bf16.msra.mxu0 0
        %951 = vmatprep.subr.bf16.mxu0 0
        %952 = vmatpush1.bf16.msra.mxu0 0
        %953 = vmatprep.subr.bf16.mxu0 0
        %954 = vmatpush1.bf16.msra.mxu0 0
        %955 = vmatprep.subr.bf16.mxu0 0
        %956 = vmatpush1.bf16.msra.mxu0 0
        %957 = vmatprep.subr.bf16.mxu0 0
        %958 = vmatpush1.bf16.msra.mxu0 0
        %959 = vmatprep.mubr.bf16.mxu0 0
        %960 = vmatmul.mubr.bf16.gmra.mrb[0].mxu0 %v904
        %v961 = vpop.f32.mrb[0].mxu0
        %v962 = vadd.f32 0.0, %v961
        %v963 = vpop.f32.mrb[0].mxu0
        %v964 = vadd.f32 0.0, %v963
        %v965 = vpop.f32.mrb[0].mxu0
        %v966 = vadd.f32 0.0, %v965
        %v967 = vpop.f32.mrb[0].mxu0
        %v968 = vadd.f32 0.0, %v967
        %969 = vmatprep.mubr.bf16.mxu0 0
        %970 = vmatmul.mubr.bf16.gmra.mrb[0].mxu0 %v907
        %v971 = vpop.f32.mrb[0].mxu0
        %v972 = vadd.f32 0.0, %v971
        %v973 = vpop.f32.mrb[0].mxu0
        %v974 = vadd.f32 0.0, %v973
        %v975 = vpop.f32.mrb[0].mxu0
        %v976 = vadd.f32 0.0, %v975
        %v977 = vpop.f32.mrb[0].mxu0
        %v978 = vadd.f32 0.0, %v977
        %979 = vmatprep.mubr.bf16.mxu0 0
        %980 = vmatmul.mubr.bf16.gmra.mrb[0].mxu0 %v910
        %v981 = vpop.f32.mrb[0].mxu0
        %v982 = vadd.f32 0.0, %v981
        %v983 = vpop.f32.mrb[0].mxu0
        %v984 = vadd.f32 0.0, %v983
        %v985 = vpop.f32.mrb[0].mxu0
        %v986 = vadd.f32 0.0, %v985
        %v987 = vpop.f32.mrb[0].mxu0
        %v988 = vadd.f32 0.0, %v987
        %989 = vmatprep.mubr.bf16.mxu0 0
        %990 = vmatmul.mubr.bf16.gmra.mrb[0].mxu0 %v913
        %v991 = vpop.f32.mrb[0].mxu0
        %v992 = vadd.f32 0.0, %v991
        %v993 = vpop.f32.mrb[0].mxu0
        %v994 = vadd.f32 0.0, %v993
        %v995 = vpop.f32.mrb[0].mxu0
        %v996 = vadd.f32 0.0, %v995
        %v997 = vpop.f32.mrb[0].mxu0
        %v998 = vadd.f32 0.0, %v997
        %999 = vmatprep.mubr.bf16.mxu0 0
        %1000 = vmatmul.mubr.bf16.gmra.mrb[0].mxu0 %v916
        %v1001 = vpop.f32.mrb[0].mxu0
        %v1002 = vadd.f32 0.0, %v1001
        %v1003 = vpop.f32.mrb[0].mxu0
        %v1004 = vadd.f32 0.0, %v1003
        %v1005 = vpop.f32.mrb[0].mxu0
        %v1006 = vadd.f32 0.0, %v1005
        %v1007 = vpop.f32.mrb[0].mxu0
        %v1008 = vadd.f32 0.0, %v1007
        %1009 = vmatprep.mubr.bf16.mxu0 0
        %1010 = vmatmul.mubr.bf16.gmra.mrb[0].mxu0 %v919
        %v1011 = vpop.f32.mrb[0].mxu0
        %v1012 = vadd.f32 0.0, %v1011
        %v1013 = vpop.f32.mrb[0].mxu0
        %v1014 = vadd.f32 0.0, %v1013
        %v1015 = vpop.f32.mrb[0].mxu0
        %v1016 = vadd.f32 0.0, %v1015
        %v1017 = vpop.f32.mrb[0].mxu0
        %v1018 = vadd.f32 0.0, %v1017
        %1019 = vmatprep.mubr.bf16.mxu0 0
        %1020 = vmatmul.mubr.bf16.gmra.mrb[0].mxu0 %v922
        %v1021 = vpop.f32.mrb[0].mxu0
        %v1022 = vadd.f32 0.0, %v1021
        %v1023 = vpop.f32.mrb[0].mxu0
        %v1024 = vadd.f32 0.0, %v1023
        %v1025 = vpop.f32.mrb[0].mxu0
        %v1026 = vadd.f32 0.0, %v1025
        %v1027 = vpop.f32.mrb[0].mxu0
        %v1028 = vadd.f32 0.0, %v1027
        %1029 = vmatprep.mubr.bf16.mxu0 0
        %1030 = vmatmul.mubr.bf16.gmra.mrb[0].mxu0 %v925
        %v1031 = vpop.f32.mrb[0].mxu0
        %v1032 = vadd.f32 0.0, %v1031
        %v1033 = vpop.f32.mrb[0].mxu0
        %v1034 = vadd.f32 0.0, %v1033
        %v1035 = vpop.f32.mrb[0].mxu0
        %v1036 = vadd.f32 0.0, %v1035
        %v1037 = vpop.f32.mrb[0].mxu0
        %v1038 = vadd.f32 0.0, %v1037
        %1039 = vdwg.mxu0
        %1040 = vmatprep.subr.bf16.mxu0 %v834
        %1041 = vmatpush1.bf16.msra.mxu0 %v833
        %1042 = vmatprep.subr.bf16.mxu0 0
        %1043 = vmatpush1.bf16.msra.mxu0 0
        %1044 = vmatprep.subr.bf16.mxu0 0
        %1045 = vmatpush1.bf16.msra.mxu0 0
        %1046 = vmatprep.subr.bf16.mxu0 0
        %1047 = vmatpush1.bf16.msra.mxu0 0
        %1048 = vmatprep.subr.bf16.mxu0 0
        %1049 = vmatpush1.bf16.msra.mxu0 0
        %1050 = vmatprep.subr.bf16.mxu0 0
        %1051 = vmatpush1.bf16.msra.mxu0 0
        %1052 = vmatprep.subr.bf16.mxu0 0
        %1053 = vmatpush1.bf16.msra.mxu0 0
        %1054 = vmatprep.subr.bf16.mxu0 0
        %1055 = vmatpush1.bf16.msra.mxu0 0
        %1056 = vmatprep.subr.bf16.mxu0 0
        %1057 = vmatpush1.bf16.msra.mxu0 0
        %1058 = vmatprep.subr.bf16.mxu0 0
        %1059 = vmatpush1.bf16.msra.mxu0 0
        %1060 = vmatprep.subr.bf16.mxu0 0
        %1061 = vmatpush1.bf16.msra.mxu0 0
        %1062 = vmatprep.subr.bf16.mxu0 0
        %1063 = vmatpush1.bf16.msra.mxu0 0
        %1064 = vmatprep.subr.bf16.mxu0 0
        %1065 = vmatpush1.bf16.msra.mxu0 0
        %1066 = vmatprep.subr.bf16.mxu0 0
        %1067 = vmatpush1.bf16.msra.mxu0 0
        %1068 = vmatprep.subr.bf16.mxu0 0
        %1069 = vmatpush1.bf16.msra.mxu0 0
        %1070 = vmatprep.subr.bf16.mxu0 0
        %1071 = vmatpush1.bf16.msra.mxu0 0
        %1072 = vmatprep.mubr.bf16.mxu0 0
        %1073 = vmatmul.mubr.bf16.gmra.mrb[0].mxu0 %v904
        %v1074 = vpop.f32.mrb[0].mxu0
        %v1075 = vadd.f32 0.0, %v1074
        %v1076 = vpop.f32.mrb[0].mxu0
        %v1077 = vadd.f32 0.0, %v1076
        %v1078 = vpop.f32.mrb[0].mxu0
        %v1079 = vadd.f32 0.0, %v1078
        %v1080 = vpop.f32.mrb[0].mxu0
        %v1081 = vadd.f32 0.0, %v1080
        %1082 = vmatprep.mubr.bf16.mxu0 0
        %1083 = vmatmul.mubr.bf16.gmra.mrb[0].mxu0 %v907
        %v1084 = vpop.f32.mrb[0].mxu0
        %v1085 = vadd.f32 0.0, %v1084
        %v1086 = vpop.f32.mrb[0].mxu0
        %v1087 = vadd.f32 0.0, %v1086
        %v1088 = vpop.f32.mrb[0].mxu0
        %v1089 = vadd.f32 0.0, %v1088
        %v1090 = vpop.f32.mrb[0].mxu0
        %v1091 = vadd.f32 0.0, %v1090
        %1092 = vmatprep.mubr.bf16.mxu0 0
        %1093 = vmatmul.mubr.bf16.gmra.mrb[0].mxu0 %v910
        %v1094 = vpop.f32.mrb[0].mxu0
        %v1095 = vadd.f32 0.0, %v1094
        %v1096 = vpop.f32.mrb[0].mxu0
        %v1097 = vadd.f32 0.0, %v1096
        %v1098 = vpop.f32.mrb[0].mxu0
        %v1099 = vadd.f32 0.0, %v1098
        %v1100 = vpop.f32.mrb[0].mxu0
        %v1101 = vadd.f32 0.0, %v1100
        %1102 = vmatprep.mubr.bf16.mxu0 0
        %1103 = vmatmul.mubr.bf16.gmra.mrb[0].mxu0 %v913
        %v1104 = vpop.f32.mrb[0].mxu0
        %v1105 = vadd.f32 0.0, %v1104
        %v1106 = vpop.f32.mrb[0].mxu0
        %v1107 = vadd.f32 0.0, %v1106
        %v1108 = vpop.f32.mrb[0].mxu0
        %v1109 = vadd.f32 0.0, %v1108
        %v1110 = vpop.f32.mrb[0].mxu0
        %v1111 = vadd.f32 0.0, %v1110
        %1112 = vmatprep.mubr.bf16.mxu0 0
        %1113 = vmatmul.mubr.bf16.gmra.mrb[0].mxu0 %v916
        %v1114 = vpop.f32.mrb[0].mxu0
        %v1115 = vadd.f32 0.0, %v1114
        %v1116 = vpop.f32.mrb[0].mxu0
        %v1117 = vadd.f32 0.0, %v1116
        %v1118 = vpop.f32.mrb[0].mxu0
        %v1119 = vadd.f32 0.0, %v1118
        %v1120 = vpop.f32.mrb[0].mxu0
        %v1121 = vadd.f32 0.0, %v1120
        %1122 = vmatprep.mubr.bf16.mxu0 0
        %1123 = vmatmul.mubr.bf16.gmra.mrb[0].mxu0 %v919
        %v1124 = vpop.f32.mrb[0].mxu0
        %v1125 = vadd.f32 0.0, %v1124
        %v1126 = vpop.f32.mrb[0].mxu0
        %v1127 = vadd.f32 0.0, %v1126
        %v1128 = vpop.f32.mrb[0].mxu0
        %v1129 = vadd.f32 0.0, %v1128
        %v1130 = vpop.f32.mrb[0].mxu0
        %v1131 = vadd.f32 0.0, %v1130
        %1132 = vmatprep.mubr.bf16.mxu0 0
        %1133 = vmatmul.mubr.bf16.gmra.mrb[0].mxu0 %v922
        %v1134 = vpop.f32.mrb[0].mxu0
        %v1135 = vadd.f32 0.0, %v1134
        %v1136 = vpop.f32.mrb[0].mxu0
        %v1137 = vadd.f32 0.0, %v1136
        %v1138 = vpop.f32.mrb[0].mxu0
        %v1139 = vadd.f32 0.0, %v1138
        %v1140 = vpop.f32.mrb[0].mxu0
        %v1141 = vadd.f32 0.0, %v1140
        %1142 = vmatprep.mubr.bf16.mxu0 0
        %1143 = vmatmul.mubr.bf16.gmra.mrb[0].mxu0 %v925
        %v1144 = vpop.f32.mrb[0].mxu0
        %v1145 = vadd.f32 0.0, %v1144
        %v1146 = vpop.f32.mrb[0].mxu0
        %v1147 = vadd.f32 0.0, %v1146
        %v1148 = vpop.f32.mrb[0].mxu0
        %v1149 = vadd.f32 0.0, %v1148
        %v1150 = vpop.f32.mrb[0].mxu0
        %v1151 = vadd.f32 0.0, %v1150
        %1152 = vdwg.mxu0
        %1153 = vmatprep.subr.bf16.mxu0 %v836
        %1154 = vmatpush1.bf16.msra.mxu0 %v835
        %1155 = vmatprep.subr.bf16.mxu0 0
        %1156 = vmatpush1.bf16.msra.mxu0 0
        %1157 = vmatprep.subr.bf16.mxu0 0
        %1158 = vmatpush1.bf16.msra.mxu0 0
        %1159 = vmatprep.subr.bf16.mxu0 0
        %1160 = vmatpush1.bf16.msra.mxu0 0
        %1161 = vmatprep.subr.bf16.mxu0 0
        %1162 = vmatpush1.bf16.msra.mxu0 0
        %1163 = vmatprep.subr.bf16.mxu0 0
        %1164 = vmatpush1.bf16.msra.mxu0 0
        %1165 = vmatprep.subr.bf16.mxu0 0
        %1166 = vmatpush1.bf16.msra.mxu0 0
        %1167 = vmatprep.subr.bf16.mxu0 0
        %1168 = vmatpush1.bf16.msra.mxu0 0
        %1169 = vmatprep.subr.bf16.mxu0 0
        %1170 = vmatpush1.bf16.msra.mxu0 0
        %1171 = vmatprep.subr.bf16.mxu0 0
        %1172 = vmatpush1.bf16.msra.mxu0 0
        %1173 = vmatprep.subr.bf16.mxu0 0
        %1174 = vmatpush1.bf16.msra.mxu0 0
        %1175 = vmatprep.subr.bf16.mxu0 0
        %1176 = vmatpush1.bf16.msra.mxu0 0
        %1177 = vmatprep.subr.bf16.mxu0 0
        %1178 = vmatpush1.bf16.msra.mxu0 0
        %1179 = vmatprep.subr.bf16.mxu0 0
        %1180 = vmatpush1.bf16.msra.mxu0 0
        %1181 = vmatprep.subr.bf16.mxu0 0
        %1182 = vmatpush1.bf16.msra.mxu0 0
        %1183 = vmatprep.subr.bf16.mxu0 0
        %1184 = vmatpush1.bf16.msra.mxu0 0
        %1185 = vmatprep.mubr.bf16.mxu0 0
        %1186 = vmatmul.mubr.bf16.gmra.mrb[0].mxu0 %v904
        %v1187 = vpop.f32.mrb[0].mxu0
        %v1188 = vadd.f32 0.0, %v1187
        %v1189 = vpop.f32.mrb[0].mxu0
        %v1190 = vadd.f32 0.0, %v1189
        %v1191 = vpop.f32.mrb[0].mxu0
        %v1192 = vadd.f32 0.0, %v1191
        %v1193 = vpop.f32.mrb[0].mxu0
        %v1194 = vadd.f32 0.0, %v1193
        %1195 = vmatprep.mubr.bf16.mxu0 0
        %1196 = vmatmul.mubr.bf16.gmra.mrb[0].mxu0 %v907
        %v1197 = vpop.f32.mrb[0].mxu0
        %v1198 = vadd.f32 0.0, %v1197
        %v1199 = vpop.f32.mrb[0].mxu0
        %v1200 = vadd.f32 0.0, %v1199
        %v1201 = vpop.f32.mrb[0].mxu0
        %v1202 = vadd.f32 0.0, %v1201
        %v1203 = vpop.f32.mrb[0].mxu0
        %v1204 = vadd.f32 0.0, %v1203
        %1205 = vmatprep.mubr.bf16.mxu0 0
        %1206 = vmatmul.mubr.bf16.gmra.mrb[0].mxu0 %v910
        %v1207 = vpop.f32.mrb[0].mxu0
        %v1208 = vadd.f32 0.0, %v1207
        %v1209 = vpop.f32.mrb[0].mxu0
        %v1210 = vadd.f32 0.0, %v1209
        %v1211 = vpop.f32.mrb[0].mxu0
        %v1212 = vadd.f32 0.0, %v1211
        %v1213 = vpop.f32.mrb[0].mxu0
        %v1214 = vadd.f32 0.0, %v1213
        %1215 = vmatprep.mubr.bf16.mxu0 0
        %1216 = vmatmul.mubr.bf16.gmra.mrb[0].mxu0 %v913
        %v1217 = vpop.f32.mrb[0].mxu0
        %v1218 = vadd.f32 0.0, %v1217
        %v1219 = vpop.f32.mrb[0].mxu0
        %v1220 = vadd.f32 0.0, %v1219
        %v1221 = vpop.f32.mrb[0].mxu0
        %v1222 = vadd.f32 0.0, %v1221
        %v1223 = vpop.f32.mrb[0].mxu0
        %v1224 = vadd.f32 0.0, %v1223
        %1225 = vmatprep.mubr.bf16.mxu0 0
        %1226 = vmatmul.mubr.bf16.gmra.mrb[0].mxu0 %v916
        %v1227 = vpop.f32.mrb[0].mxu0
        %v1228 = vadd.f32 0.0, %v1227
        %v1229 = vpop.f32.mrb[0].mxu0
        %v1230 = vadd.f32 0.0, %v1229
        %v1231 = vpop.f32.mrb[0].mxu0
        %v1232 = vadd.f32 0.0, %v1231
        %v1233 = vpop.f32.mrb[0].mxu0
        %v1234 = vadd.f32 0.0, %v1233
        %1235 = vmatprep.mubr.bf16.mxu0 0
        %1236 = vmatmul.mubr.bf16.gmra.mrb[0].mxu0 %v919
        %v1237 = vpop.f32.mrb[0].mxu0
        %v1238 = vadd.f32 0.0, %v1237
        %v1239 = vpop.f32.mrb[0].mxu0
        %v1240 = vadd.f32 0.0, %v1239
        %v1241 = vpop.f32.mrb[0].mxu0
        %v1242 = vadd.f32 0.0, %v1241
        %v1243 = vpop.f32.mrb[0].mxu0
        %v1244 = vadd.f32 0.0, %v1243
        %1245 = vmatprep.mubr.bf16.mxu0 0
        %1246 = vmatmul.mubr.bf16.gmra.mrb[0].mxu0 %v922
        %v1247 = vpop.f32.mrb[0].mxu0
        %v1248 = vadd.f32 0.0, %v1247
        %v1249 = vpop.f32.mrb[0].mxu0
        %v1250 = vadd.f32 0.0, %v1249
        %v1251 = vpop.f32.mrb[0].mxu0
        %v1252 = vadd.f32 0.0, %v1251
        %v1253 = vpop.f32.mrb[0].mxu0
        %v1254 = vadd.f32 0.0, %v1253
        %1255 = vmatprep.mubr.bf16.mxu0 0
        %1256 = vmatmul.mubr.bf16.gmra.mrb[0].mxu0 %v925
        %v1257 = vpop.f32.mrb[0].mxu0
        %v1258 = vadd.f32 0.0, %v1257
        %v1259 = vpop.f32.mrb[0].mxu0
        %v1260 = vadd.f32 0.0, %v1259
        %v1261 = vpop.f32.mrb[0].mxu0
        %v1262 = vadd.f32 0.0, %v1261
        %v1263 = vpop.f32.mrb[0].mxu0
        %v1264 = vadd.f32 0.0, %v1263
        %1265 = vdwg.mxu0
        %1266 = vmatprep.subr.bf16.mxu0 %v838
        %1267 = vmatpush1.bf16.msra.mxu0 %v837
        %1268 = vmatprep.subr.bf16.mxu0 0
        %1269 = vmatpush1.bf16.msra.mxu0 0
        %1270 = vmatprep.subr.bf16.mxu0 0
        %1271 = vmatpush1.bf16.msra.mxu0 0
        %1272 = vmatprep.subr.bf16.mxu0 0
        %1273 = vmatpush1.bf16.msra.mxu0 0
        %1274 = vmatprep.subr.bf16.mxu0 0
        %1275 = vmatpush1.bf16.msra.mxu0 0
        %1276 = vmatprep.subr.bf16.mxu0 0
        %1277 = vmatpush1.bf16.msra.mxu0 0
        %1278 = vmatprep.subr.bf16.mxu0 0
        %1279 = vmatpush1.bf16.msra.mxu0 0
        %1280 = vmatprep.subr.bf16.mxu0 0
        %1281 = vmatpush1.bf16.msra.mxu0 0
        %1282 = vmatprep.subr.bf16.mxu0 0
        %1283 = vmatpush1.bf16.msra.mxu0 0
        %1284 = vmatprep.subr.bf16.mxu0 0
        %1285 = vmatpush1.bf16.msra.mxu0 0
        %1286 = vmatprep.subr.bf16.mxu0 0
        %1287 = vmatpush1.bf16.msra.mxu0 0
        %1288 = vmatprep.subr.bf16.mxu0 0
        %1289 = vmatpush1.bf16.msra.mxu0 0
        %1290 = vmatprep.subr.bf16.mxu0 0
        %1291 = vmatpush1.bf16.msra.mxu0 0
        %1292 = vmatprep.subr.bf16.mxu0 0
        %1293 = vmatpush1.bf16.msra.mxu0 0
        %1294 = vmatprep.subr.bf16.mxu0 0
        %1295 = vmatpush1.bf16.msra.mxu0 0
        %1296 = vmatprep.subr.bf16.mxu0 0
        %1297 = vmatpush1.bf16.msra.mxu0 0
        %1298 = vmatprep.mubr.bf16.mxu0 0
        %1299 = vmatmul.mubr.bf16.gmra.mrb[0].mxu0 %v904
        %v1300 = vpop.f32.mrb[0].mxu0
        %v1301 = vadd.f32 0.0, %v1300
        %v1302 = vpop.f32.mrb[0].mxu0
        %v1303 = vadd.f32 0.0, %v1302
        %v1304 = vpop.f32.mrb[0].mxu0
        %v1305 = vadd.f32 0.0, %v1304
        %v1306 = vpop.f32.mrb[0].mxu0
        %v1307 = vadd.f32 0.0, %v1306
        %1308 = vmatprep.mubr.bf16.mxu0 0
        %1309 = vmatmul.mubr.bf16.gmra.mrb[0].mxu0 %v907
        %v1310 = vpop.f32.mrb[0].mxu0
        %v1311 = vadd.f32 0.0, %v1310
        %v1312 = vpop.f32.mrb[0].mxu0
        %v1313 = vadd.f32 0.0, %v1312
        %v1314 = vpop.f32.mrb[0].mxu0
        %v1315 = vadd.f32 0.0, %v1314
        %v1316 = vpop.f32.mrb[0].mxu0
        %v1317 = vadd.f32 0.0, %v1316
        %1318 = vmatprep.mubr.bf16.mxu0 0
        %1319 = vmatmul.mubr.bf16.gmra.mrb[0].mxu0 %v910
        %v1320 = vpop.f32.mrb[0].mxu0
        %v1321 = vadd.f32 0.0, %v1320
        %v1322 = vpop.f32.mrb[0].mxu0
        %v1323 = vadd.f32 0.0, %v1322
        %v1324 = vpop.f32.mrb[0].mxu0
        %v1325 = vadd.f32 0.0, %v1324
        %v1326 = vpop.f32.mrb[0].mxu0
        %v1327 = vadd.f32 0.0, %v1326
        %1328 = vmatprep.mubr.bf16.mxu0 0
        %1329 = vmatmul.mubr.bf16.gmra.mrb[0].mxu0 %v913
        %v1330 = vpop.f32.mrb[0].mxu0
        %v1331 = vadd.f32 0.0, %v1330
        %v1332 = vpop.f32.mrb[0].mxu0
        %v1333 = vadd.f32 0.0, %v1332
        %v1334 = vpop.f32.mrb[0].mxu0
        %v1335 = vadd.f32 0.0, %v1334
        %v1336 = vpop.f32.mrb[0].mxu0
        %v1337 = vadd.f32 0.0, %v1336
        %1338 = vmatprep.mubr.bf16.mxu0 0
        %1339 = vmatmul.mubr.bf16.gmra.mrb[0].mxu0 %v916
        %v1340 = vpop.f32.mrb[0].mxu0
        %v1341 = vadd.f32 0.0, %v1340
        %v1342 = vpop.f32.mrb[0].mxu0
        %v1343 = vadd.f32 0.0, %v1342
        %v1344 = vpop.f32.mrb[0].mxu0
        %v1345 = vadd.f32 0.0, %v1344
        %v1346 = vpop.f32.mrb[0].mxu0
        %v1347 = vadd.f32 0.0, %v1346
        %1348 = vmatprep.mubr.bf16.mxu0 0
        %1349 = vmatmul.mubr.bf16.gmra.mrb[0].mxu0 %v919
        %v1350 = vpop.f32.mrb[0].mxu0
        %v1351 = vadd.f32 0.0, %v1350
        %v1352 = vpop.f32.mrb[0].mxu0
        %v1353 = vadd.f32 0.0, %v1352
        %v1354 = vpop.f32.mrb[0].mxu0
        %v1355 = vadd.f32 0.0, %v1354
        %v1356 = vpop.f32.mrb[0].mxu0
        %v1357 = vadd.f32 0.0, %v1356
        %1358 = vmatprep.mubr.bf16.mxu0 0
        %1359 = vmatmul.mubr.bf16.gmra.mrb[0].mxu0 %v922
        %v1360 = vpop.f32.mrb[0].mxu0
        %v1361 = vadd.f32 0.0, %v1360
        %v1362 = vpop.f32.mrb[0].mxu0
        %v1363 = vadd.f32 0.0, %v1362
        %v1364 = vpop.f32.mrb[0].mxu0
        %v1365 = vadd.f32 0.0, %v1364
        %v1366 = vpop.f32.mrb[0].mxu0
        %v1367 = vadd.f32 0.0, %v1366
        %1368 = vmatprep.mubr.bf16.mxu0 0
        %1369 = vmatmul.mubr.bf16.gmra.mrb[0].mxu0 %v925
        %v1370 = vpop.f32.mrb[0].mxu0
        %v1371 = vadd.f32 0.0, %v1370
        %v1372 = vpop.f32.mrb[0].mxu0
        %v1373 = vadd.f32 0.0, %v1372
        %v1374 = vpop.f32.mrb[0].mxu0
        %v1375 = vadd.f32 0.0, %v1374
        %v1376 = vpop.f32.mrb[0].mxu0
        %v1377 = vadd.f32 0.0, %v1376
        %1378 = vdwg.mxu0
        %1379 = vmatprep.subr.bf16.mxu0 %v840
        %1380 = vmatpush1.bf16.msra.mxu0 %v839
        %1381 = vmatprep.subr.bf16.mxu0 0
        %1382 = vmatpush1.bf16.msra.mxu0 0
        %1383 = vmatprep.subr.bf16.mxu0 0
        %1384 = vmatpush1.bf16.msra.mxu0 0
        %1385 = vmatprep.subr.bf16.mxu0 0
        %1386 = vmatpush1.bf16.msra.mxu0 0
        %1387 = vmatprep.subr.bf16.mxu0 0
        %1388 = vmatpush1.bf16.msra.mxu0 0
        %1389 = vmatprep.subr.bf16.mxu0 0
        %1390 = vmatpush1.bf16.msra.mxu0 0
        %1391 = vmatprep.subr.bf16.mxu0 0
        %1392 = vmatpush1.bf16.msra.mxu0 0
        %1393 = vmatprep.subr.bf16.mxu0 0
        %1394 = vmatpush1.bf16.msra.mxu0 0
        %1395 = vmatprep.subr.bf16.mxu0 0
        %1396 = vmatpush1.bf16.msra.mxu0 0
        %1397 = vmatprep.subr.bf16.mxu0 0
        %1398 = vmatpush1.bf16.msra.mxu0 0
        %1399 = vmatprep.subr.bf16.mxu0 0
        %1400 = vmatpush1.bf16.msra.mxu0 0
        %1401 = vmatprep.subr.bf16.mxu0 0
        %1402 = vmatpush1.bf16.msra.mxu0 0
        %1403 = vmatprep.subr.bf16.mxu0 0
        %1404 = vmatpush1.bf16.msra.mxu0 0
        %1405 = vmatprep.subr.bf16.mxu0 0
        %1406 = vmatpush1.bf16.msra.mxu0 0
        %1407 = vmatprep.subr.bf16.mxu0 0
        %1408 = vmatpush1.bf16.msra.mxu0 0
        %1409 = vmatprep.subr.bf16.mxu0 0
        %1410 = vmatpush1.bf16.msra.mxu0 0
        %1411 = vmatprep.mubr.bf16.mxu0 0
        %1412 = vmatmul.mubr.bf16.gmra.mrb[0].mxu0 %v904
        %v1413 = vpop.f32.mrb[0].mxu0
        %v1414 = vadd.f32 0.0, %v1413
        %v1415 = vpop.f32.mrb[0].mxu0
        %v1416 = vadd.f32 0.0, %v1415
        %v1417 = vpop.f32.mrb[0].mxu0
        %v1418 = vadd.f32 0.0, %v1417
        %v1419 = vpop.f32.mrb[0].mxu0
        %v1420 = vadd.f32 0.0, %v1419
        %1421 = vmatprep.mubr.bf16.mxu0 0
        %1422 = vmatmul.mubr.bf16.gmra.mrb[0].mxu0 %v907
        %v1423 = vpop.f32.mrb[0].mxu0
        %v1424 = vadd.f32 0.0, %v1423
        %v1425 = vpop.f32.mrb[0].mxu0
        %v1426 = vadd.f32 0.0, %v1425
        %v1427 = vpop.f32.mrb[0].mxu0
        %v1428 = vadd.f32 0.0, %v1427
        %v1429 = vpop.f32.mrb[0].mxu0
        %v1430 = vadd.f32 0.0, %v1429
        %1431 = vmatprep.mubr.bf16.mxu0 0
        %1432 = vmatmul.mubr.bf16.gmra.mrb[0].mxu0 %v910
        %v1433 = vpop.f32.mrb[0].mxu0
        %v1434 = vadd.f32 0.0, %v1433
        %v1435 = vpop.f32.mrb[0].mxu0
        %v1436 = vadd.f32 0.0, %v1435
        %v1437 = vpop.f32.mrb[0].mxu0
        %v1438 = vadd.f32 0.0, %v1437
        %v1439 = vpop.f32.mrb[0].mxu0
        %v1440 = vadd.f32 0.0, %v1439
        %1441 = vmatprep.mubr.bf16.mxu0 0
        %1442 = vmatmul.mubr.bf16.gmra.mrb[0].mxu0 %v913
        %v1443 = vpop.f32.mrb[0].mxu0
        %v1444 = vadd.f32 0.0, %v1443
        %v1445 = vpop.f32.mrb[0].mxu0
        %v1446 = vadd.f32 0.0, %v1445
        %v1447 = vpop.f32.mrb[0].mxu0
        %v1448 = vadd.f32 0.0, %v1447
        %v1449 = vpop.f32.mrb[0].mxu0
        %v1450 = vadd.f32 0.0, %v1449
        %1451 = vmatprep.mubr.bf16.mxu0 0
        %1452 = vmatmul.mubr.bf16.gmra.mrb[0].mxu0 %v916
        %v1453 = vpop.f32.mrb[0].mxu0
        %v1454 = vadd.f32 0.0, %v1453
        %v1455 = vpop.f32.mrb[0].mxu0
        %v1456 = vadd.f32 0.0, %v1455
        %v1457 = vpop.f32.mrb[0].mxu0
        %v1458 = vadd.f32 0.0, %v1457
        %v1459 = vpop.f32.mrb[0].mxu0
        %v1460 = vadd.f32 0.0, %v1459
        %1461 = vmatprep.mubr.bf16.mxu0 0
        %1462 = vmatmul.mubr.bf16.gmra.mrb[0].mxu0 %v919
        %v1463 = vpop.f32.mrb[0].mxu0
        %v1464 = vadd.f32 0.0, %v1463
        %v1465 = vpop.f32.mrb[0].mxu0
        %v1466 = vadd.f32 0.0, %v1465
        %v1467 = vpop.f32.mrb[0].mxu0
        %v1468 = vadd.f32 0.0, %v1467
        %v1469 = vpop.f32.mrb[0].mxu0
        %v1470 = vadd.f32 0.0, %v1469
        %1471 = vmatprep.mubr.bf16.mxu0 0
        %1472 = vmatmul.mubr.bf16.gmra.mrb[0].mxu0 %v922
        %v1473 = vpop.f32.mrb[0].mxu0
        %v1474 = vadd.f32 0.0, %v1473
        %v1475 = vpop.f32.mrb[0].mxu0
        %v1476 = vadd.f32 0.0, %v1475
        %v1477 = vpop.f32.mrb[0].mxu0
        %v1478 = vadd.f32 0.0, %v1477
        %v1479 = vpop.f32.mrb[0].mxu0
        %v1480 = vadd.f32 0.0, %v1479
        %1481 = vmatprep.mubr.bf16.mxu0 0
        %1482 = vmatmul.mubr.bf16.gmra.mrb[0].mxu0 %v925
        %v1483 = vpop.f32.mrb[0].mxu0
        %v1484 = vadd.f32 0.0, %v1483
        %v1485 = vpop.f32.mrb[0].mxu0
        %v1486 = vadd.f32 0.0, %v1485
        %v1487 = vpop.f32.mrb[0].mxu0
        %v1488 = vadd.f32 0.0, %v1487
        %v1489 = vpop.f32.mrb[0].mxu0
        %v1490 = vadd.f32 0.0, %v1489
        %1491 = vdwg.mxu0
        %1492 = vmatprep.subr.bf16.mxu0 %v842
        %1493 = vmatpush1.bf16.msra.mxu0 %v841
        %1494 = vmatprep.subr.bf16.mxu0 0
        %1495 = vmatpush1.bf16.msra.mxu0 0
        %1496 = vmatprep.subr.bf16.mxu0 0
        %1497 = vmatpush1.bf16.msra.mxu0 0
        %1498 = vmatprep.subr.bf16.mxu0 0
        %1499 = vmatpush1.bf16.msra.mxu0 0
        %1500 = vmatprep.subr.bf16.mxu0 0
        %1501 = vmatpush1.bf16.msra.mxu0 0
        %1502 = vmatprep.subr.bf16.mxu0 0
        %1503 = vmatpush1.bf16.msra.mxu0 0
        %1504 = vmatprep.subr.bf16.mxu0 0
        %1505 = vmatpush1.bf16.msra.mxu0 0
        %1506 = vmatprep.subr.bf16.mxu0 0
        %1507 = vmatpush1.bf16.msra.mxu0 0
        %1508 = vmatprep.subr.bf16.mxu0 0
        %1509 = vmatpush1.bf16.msra.mxu0 0
        %1510 = vmatprep.subr.bf16.mxu0 0
        %1511 = vmatpush1.bf16.msra.mxu0 0
        %1512 = vmatprep.subr.bf16.mxu0 0
        %1513 = vmatpush1.bf16.msra.mxu0 0
        %1514 = vmatprep.subr.bf16.mxu0 0
        %1515 = vmatpush1.bf16.msra.mxu0 0
        %1516 = vmatprep.subr.bf16.mxu0 0
        %1517 = vmatpush1.bf16.msra.mxu0 0
        %1518 = vmatprep.subr.bf16.mxu0 0
        %1519 = vmatpush1.bf16.msra.mxu0 0
        %1520 = vmatprep.subr.bf16.mxu0 0
        %1521 = vmatpush1.bf16.msra.mxu0 0
        %1522 = vmatprep.subr.bf16.mxu0 0
        %1523 = vmatpush1.bf16.msra.mxu0 0
        %1524 = vmatprep.mubr.bf16.mxu0 0
        %1525 = vmatmul.mubr.bf16.gmra.mrb[0].mxu0 %v904
        %v1526 = vpop.f32.mrb[0].mxu0
        %v1527 = vadd.f32 0.0, %v1526
        %v1528 = vpop.f32.mrb[0].mxu0
        %v1529 = vadd.f32 0.0, %v1528
        %v1530 = vpop.f32.mrb[0].mxu0
        %v1531 = vadd.f32 0.0, %v1530
        %v1532 = vpop.f32.mrb[0].mxu0
        %v1533 = vadd.f32 0.0, %v1532
        %1534 = vmatprep.mubr.bf16.mxu0 0
        %1535 = vmatmul.mubr.bf16.gmra.mrb[0].mxu0 %v907
        %v1536 = vpop.f32.mrb[0].mxu0
        %v1537 = vadd.f32 0.0, %v1536
        %v1538 = vpop.f32.mrb[0].mxu0
        %v1539 = vadd.f32 0.0, %v1538
        %v1540 = vpop.f32.mrb[0].mxu0
        %v1541 = vadd.f32 0.0, %v1540
        %v1542 = vpop.f32.mrb[0].mxu0
        %v1543 = vadd.f32 0.0, %v1542
        %1544 = vmatprep.mubr.bf16.mxu0 0
        %1545 = vmatmul.mubr.bf16.gmra.mrb[0].mxu0 %v910
        %v1546 = vpop.f32.mrb[0].mxu0
        %v1547 = vadd.f32 0.0, %v1546
        %v1548 = vpop.f32.mrb[0].mxu0
        %v1549 = vadd.f32 0.0, %v1548
        %v1550 = vpop.f32.mrb[0].mxu0
        %v1551 = vadd.f32 0.0, %v1550
        %v1552 = vpop.f32.mrb[0].mxu0
        %v1553 = vadd.f32 0.0, %v1552
        %1554 = vmatprep.mubr.bf16.mxu0 0
        %1555 = vmatmul.mubr.bf16.gmra.mrb[0].mxu0 %v913
        %v1556 = vpop.f32.mrb[0].mxu0
        %v1557 = vadd.f32 0.0, %v1556
        %v1558 = vpop.f32.mrb[0].mxu0
        %v1559 = vadd.f32 0.0, %v1558
        %v1560 = vpop.f32.mrb[0].mxu0
        %v1561 = vadd.f32 0.0, %v1560
        %v1562 = vpop.f32.mrb[0].mxu0
        %v1563 = vadd.f32 0.0, %v1562
        %1564 = vmatprep.mubr.bf16.mxu0 0
        %1565 = vmatmul.mubr.bf16.gmra.mrb[0].mxu0 %v916
        %v1566 = vpop.f32.mrb[0].mxu0
        %v1567 = vadd.f32 0.0, %v1566
        %v1568 = vpop.f32.mrb[0].mxu0
        %v1569 = vadd.f32 0.0, %v1568
        %v1570 = vpop.f32.mrb[0].mxu0
        %v1571 = vadd.f32 0.0, %v1570
        %v1572 = vpop.f32.mrb[0].mxu0
        %v1573 = vadd.f32 0.0, %v1572
        %1574 = vmatprep.mubr.bf16.mxu0 0
        %1575 = vmatmul.mubr.bf16.gmra.mrb[0].mxu0 %v919
        %v1576 = vpop.f32.mrb[0].mxu0
        %v1577 = vadd.f32 0.0, %v1576
        %v1578 = vpop.f32.mrb[0].mxu0
        %v1579 = vadd.f32 0.0, %v1578
        %v1580 = vpop.f32.mrb[0].mxu0
        %v1581 = vadd.f32 0.0, %v1580
        %v1582 = vpop.f32.mrb[0].mxu0
        %v1583 = vadd.f32 0.0, %v1582
        %1584 = vmatprep.mubr.bf16.mxu0 0
        %1585 = vmatmul.mubr.bf16.gmra.mrb[0].mxu0 %v922
        %v1586 = vpop.f32.mrb[0].mxu0
        %v1587 = vadd.f32 0.0, %v1586
        %v1588 = vpop.f32.mrb[0].mxu0
        %v1589 = vadd.f32 0.0, %v1588
        %v1590 = vpop.f32.mrb[0].mxu0
        %v1591 = vadd.f32 0.0, %v1590
        %v1592 = vpop.f32.mrb[0].mxu0
        %v1593 = vadd.f32 0.0, %v1592
        %1594 = vmatprep.mubr.bf16.mxu0 0
        %1595 = vmatmul.mubr.bf16.gmra.mrb[0].mxu0 %v925
        %v1596 = vpop.f32.mrb[0].mxu0
        %v1597 = vadd.f32 0.0, %v1596
        %v1598 = vpop.f32.mrb[0].mxu0
        %v1599 = vadd.f32 0.0, %v1598
        %v1600 = vpop.f32.mrb[0].mxu0
        %v1601 = vadd.f32 0.0, %v1600
        %v1602 = vpop.f32.mrb[0].mxu0
        %v1603 = vadd.f32 0.0, %v1602
        %1604 = vdwg.mxu0
        %1605 = vmatprep.subr.bf16.mxu0 %v844
        %1606 = vmatpush1.bf16.msra.mxu0 %v843
        %1607 = vmatprep.subr.bf16.mxu0 0
        %1608 = vmatpush1.bf16.msra.mxu0 0
        %1609 = vmatprep.subr.bf16.mxu0 0
        %1610 = vmatpush1.bf16.msra.mxu0 0
        %1611 = vmatprep.subr.bf16.mxu0 0
        %1612 = vmatpush1.bf16.msra.mxu0 0
        %1613 = vmatprep.subr.bf16.mxu0 0
        %1614 = vmatpush1.bf16.msra.mxu0 0
        %1615 = vmatprep.subr.bf16.mxu0 0
        %1616 = vmatpush1.bf16.msra.mxu0 0
        %1617 = vmatprep.subr.bf16.mxu0 0
        %1618 = vmatpush1.bf16.msra.mxu0 0
        %1619 = vmatprep.subr.bf16.mxu0 0
        %1620 = vmatpush1.bf16.msra.mxu0 0
        %1621 = vmatprep.subr.bf16.mxu0 0
        %1622 = vmatpush1.bf16.msra.mxu0 0
        %1623 = vmatprep.subr.bf16.mxu0 0
        %1624 = vmatpush1.bf16.msra.mxu0 0
        %1625 = vmatprep.subr.bf16.mxu0 0
        %1626 = vmatpush1.bf16.msra.mxu0 0
        %1627 = vmatprep.subr.bf16.mxu0 0
        %1628 = vmatpush1.bf16.msra.mxu0 0
        %1629 = vmatprep.subr.bf16.mxu0 0
        %1630 = vmatpush1.bf16.msra.mxu0 0
        %1631 = vmatprep.subr.bf16.mxu0 0
        %1632 = vmatpush1.bf16.msra.mxu0 0
        %1633 = vmatprep.subr.bf16.mxu0 0
        %1634 = vmatpush1.bf16.msra.mxu0 0
        %1635 = vmatprep.subr.bf16.mxu0 0
        %1636 = vmatpush1.bf16.msra.mxu0 0
        %1637 = vmatprep.mubr.bf16.mxu0 0
        %1638 = vmatmul.mubr.bf16.gmra.mrb[0].mxu0 %v904
        %v1639 = vpop.f32.mrb[0].mxu0
        %v1640 = vadd.f32 0.0, %v1639
        %v1641 = vpop.f32.mrb[0].mxu0
        %v1642 = vadd.f32 0.0, %v1641
        %v1643 = vpop.f32.mrb[0].mxu0
        %v1644 = vadd.f32 0.0, %v1643
        %v1645 = vpop.f32.mrb[0].mxu0
        %v1646 = vadd.f32 0.0, %v1645
        %1647 = vmatprep.mubr.bf16.mxu0 0
        %1648 = vmatmul.mubr.bf16.gmra.mrb[0].mxu0 %v907
        %v1649 = vpop.f32.mrb[0].mxu0
        %v1650 = vadd.f32 0.0, %v1649
        %v1651 = vpop.f32.mrb[0].mxu0
        %v1652 = vadd.f32 0.0, %v1651
        %v1653 = vpop.f32.mrb[0].mxu0
        %v1654 = vadd.f32 0.0, %v1653
        %v1655 = vpop.f32.mrb[0].mxu0
        %v1656 = vadd.f32 0.0, %v1655
        %1657 = vmatprep.mubr.bf16.mxu0 0
        %1658 = vmatmul.mubr.bf16.gmra.mrb[0].mxu0 %v910
        %v1659 = vpop.f32.mrb[0].mxu0
        %v1660 = vadd.f32 0.0, %v1659
        %v1661 = vpop.f32.mrb[0].mxu0
        %v1662 = vadd.f32 0.0, %v1661
        %v1663 = vpop.f32.mrb[0].mxu0
        %v1664 = vadd.f32 0.0, %v1663
        %v1665 = vpop.f32.mrb[0].mxu0
        %v1666 = vadd.f32 0.0, %v1665
        %1667 = vmatprep.mubr.bf16.mxu0 0
        %1668 = vmatmul.mubr.bf16.gmra.mrb[0].mxu0 %v913
        %v1669 = vpop.f32.mrb[0].mxu0
        %v1670 = vadd.f32 0.0, %v1669
        %v1671 = vpop.f32.mrb[0].mxu0
        %v1672 = vadd.f32 0.0, %v1671
        %v1673 = vpop.f32.mrb[0].mxu0
        %v1674 = vadd.f32 0.0, %v1673
        %v1675 = vpop.f32.mrb[0].mxu0
        %v1676 = vadd.f32 0.0, %v1675
        %1677 = vmatprep.mubr.bf16.mxu0 0
        %1678 = vmatmul.mubr.bf16.gmra.mrb[0].mxu0 %v916
        %v1679 = vpop.f32.mrb[0].mxu0
        %v1680 = vadd.f32 0.0, %v1679
        %v1681 = vpop.f32.mrb[0].mxu0
        %v1682 = vadd.f32 0.0, %v1681
        %v1683 = vpop.f32.mrb[0].mxu0
        %v1684 = vadd.f32 0.0, %v1683
        %v1685 = vpop.f32.mrb[0].mxu0
        %v1686 = vadd.f32 0.0, %v1685
        %1687 = vmatprep.mubr.bf16.mxu0 0
        %1688 = vmatmul.mubr.bf16.gmra.mrb[0].mxu0 %v919
        %v1689 = vpop.f32.mrb[0].mxu0
        %v1690 = vadd.f32 0.0, %v1689
        %v1691 = vpop.f32.mrb[0].mxu0
        %v1692 = vadd.f32 0.0, %v1691
        %v1693 = vpop.f32.mrb[0].mxu0
        %v1694 = vadd.f32 0.0, %v1693
        %v1695 = vpop.f32.mrb[0].mxu0
        %v1696 = vadd.f32 0.0, %v1695
        %1697 = vmatprep.mubr.bf16.mxu0 0
        %1698 = vmatmul.mubr.bf16.gmra.mrb[0].mxu0 %v922
        %v1699 = vpop.f32.mrb[0].mxu0
        %v1700 = vadd.f32 0.0, %v1699
        %v1701 = vpop.f32.mrb[0].mxu0
        %v1702 = vadd.f32 0.0, %v1701
        %v1703 = vpop.f32.mrb[0].mxu0
        %v1704 = vadd.f32 0.0, %v1703
        %v1705 = vpop.f32.mrb[0].mxu0
        %v1706 = vadd.f32 0.0, %v1705
        %1707 = vmatprep.mubr.bf16.mxu0 0
        %1708 = vmatmul.mubr.bf16.gmra.mrb[0].mxu0 %v925
        %v1709 = vpop.f32.mrb[0].mxu0
        %v1710 = vadd.f32 0.0, %v1709
        %v1711 = vpop.f32.mrb[0].mxu0
        %v1712 = vadd.f32 0.0, %v1711
        %v1713 = vpop.f32.mrb[0].mxu0
        %v1714 = vadd.f32 0.0, %v1713
        %v1715 = vpop.f32.mrb[0].mxu0
        %v1716 = vadd.f32 0.0, %v1715
        %1717 = vdwg.mxu0
        %1718 = vmatprep.subr.bf16.mxu0 %v846
        %1719 = vmatpush1.bf16.msra.mxu0 %v845
        %1720 = vmatprep.subr.bf16.mxu0 0
        %1721 = vmatpush1.bf16.msra.mxu0 0
        %1722 = vmatprep.subr.bf16.mxu0 0
        %1723 = vmatpush1.bf16.msra.mxu0 0
        %1724 = vmatprep.subr.bf16.mxu0 0
        %1725 = vmatpush1.bf16.msra.mxu0 0
        %1726 = vmatprep.subr.bf16.mxu0 0
        %1727 = vmatpush1.bf16.msra.mxu0 0
        %1728 = vmatprep.subr.bf16.mxu0 0
        %1729 = vmatpush1.bf16.msra.mxu0 0
        %1730 = vmatprep.subr.bf16.mxu0 0
        %1731 = vmatpush1.bf16.msra.mxu0 0
        %1732 = vmatprep.subr.bf16.mxu0 0
        %1733 = vmatpush1.bf16.msra.mxu0 0
        %1734 = vmatprep.subr.bf16.mxu0 0
        %1735 = vmatpush1.bf16.msra.mxu0 0
        %1736 = vmatprep.subr.bf16.mxu0 0
        %1737 = vmatpush1.bf16.msra.mxu0 0
        %1738 = vmatprep.subr.bf16.mxu0 0
        %1739 = vmatpush1.bf16.msra.mxu0 0
        %1740 = vmatprep.subr.bf16.mxu0 0
        %1741 = vmatpush1.bf16.msra.mxu0 0
        %1742 = vmatprep.subr.bf16.mxu0 0
        %1743 = vmatpush1.bf16.msra.mxu0 0
        %1744 = vmatprep.subr.bf16.mxu0 0
        %1745 = vmatpush1.bf16.msra.mxu0 0
        %1746 = vmatprep.subr.bf16.mxu0 0
        %1747 = vmatpush1.bf16.msra.mxu0 0
        %1748 = vmatprep.subr.bf16.mxu0 0
        %1749 = vmatpush1.bf16.msra.mxu0 0
        %1750 = vmatprep.mubr.bf16.mxu0 0
        %1751 = vmatmul.mubr.bf16.gmra.mrb[0].mxu0 %v904
        %v1752 = vpop.f32.mrb[0].mxu0
        %v1753 = vadd.f32 0.0, %v1752
        %v1754 = vpop.f32.mrb[0].mxu0
        %v1755 = vadd.f32 0.0, %v1754
        %v1756 = vpop.f32.mrb[0].mxu0
        %v1757 = vadd.f32 0.0, %v1756
        %v1758 = vpop.f32.mrb[0].mxu0
        %v1759 = vadd.f32 0.0, %v1758
        %1760 = vmatprep.mubr.bf16.mxu0 0
        %1761 = vmatmul.mubr.bf16.gmra.mrb[0].mxu0 %v907
        %v1762 = vpop.f32.mrb[0].mxu0
        %v1763 = vadd.f32 0.0, %v1762
        %v1764 = vpop.f32.mrb[0].mxu0
        %v1765 = vadd.f32 0.0, %v1764
        %v1766 = vpop.f32.mrb[0].mxu0
        %v1767 = vadd.f32 0.0, %v1766
        %v1768 = vpop.f32.mrb[0].mxu0
        %v1769 = vadd.f32 0.0, %v1768
        %1770 = vmatprep.mubr.bf16.mxu0 0
        %1771 = vmatmul.mubr.bf16.gmra.mrb[0].mxu0 %v910
        %v1772 = vpop.f32.mrb[0].mxu0
        %v1773 = vadd.f32 0.0, %v1772
        %v1774 = vpop.f32.mrb[0].mxu0
        %v1775 = vadd.f32 0.0, %v1774
        %v1776 = vpop.f32.mrb[0].mxu0
        %v1777 = vadd.f32 0.0, %v1776
        %v1778 = vpop.f32.mrb[0].mxu0
        %v1779 = vadd.f32 0.0, %v1778
        %1780 = vmatprep.mubr.bf16.mxu0 0
        %1781 = vmatmul.mubr.bf16.gmra.mrb[0].mxu0 %v913
        %v1782 = vpop.f32.mrb[0].mxu0
        %v1783 = vadd.f32 0.0, %v1782
        %v1784 = vpop.f32.mrb[0].mxu0
        %v1785 = vadd.f32 0.0, %v1784
        %v1786 = vpop.f32.mrb[0].mxu0
        %v1787 = vadd.f32 0.0, %v1786
        %v1788 = vpop.f32.mrb[0].mxu0
        %v1789 = vadd.f32 0.0, %v1788
        %1790 = vmatprep.mubr.bf16.mxu0 0
        %1791 = vmatmul.mubr.bf16.gmra.mrb[0].mxu0 %v916
        %v1792 = vpop.f32.mrb[0].mxu0
        %v1793 = vadd.f32 0.0, %v1792
        %v1794 = vpop.f32.mrb[0].mxu0
        %v1795 = vadd.f32 0.0, %v1794
        %v1796 = vpop.f32.mrb[0].mxu0
        %v1797 = vadd.f32 0.0, %v1796
        %v1798 = vpop.f32.mrb[0].mxu0
        %v1799 = vadd.f32 0.0, %v1798
        %1800 = vmatprep.mubr.bf16.mxu0 0
        %1801 = vmatmul.mubr.bf16.gmra.mrb[0].mxu0 %v919
        %v1802 = vpop.f32.mrb[0].mxu0
        %v1803 = vadd.f32 0.0, %v1802
        %v1804 = vpop.f32.mrb[0].mxu0
        %v1805 = vadd.f32 0.0, %v1804
        %v1806 = vpop.f32.mrb[0].mxu0
        %v1807 = vadd.f32 0.0, %v1806
        %v1808 = vpop.f32.mrb[0].mxu0
        %v1809 = vadd.f32 0.0, %v1808
        %1810 = vmatprep.mubr.bf16.mxu0 0
        %1811 = vmatmul.mubr.bf16.gmra.mrb[0].mxu0 %v922
        %v1812 = vpop.f32.mrb[0].mxu0
        %v1813 = vadd.f32 0.0, %v1812
        %v1814 = vpop.f32.mrb[0].mxu0
        %v1815 = vadd.f32 0.0, %v1814
        %v1816 = vpop.f32.mrb[0].mxu0
        %v1817 = vadd.f32 0.0, %v1816
        %v1818 = vpop.f32.mrb[0].mxu0
        %v1819 = vadd.f32 0.0, %v1818
        %1820 = vmatprep.mubr.bf16.mxu0 0
        %1821 = vmatmul.mubr.bf16.gmra.mrb[0].mxu0 %v925
        %v1822 = vpop.f32.mrb[0].mxu0
        %v1823 = vadd.f32 0.0, %v1822
        %v1824 = vpop.f32.mrb[0].mxu0
        %v1825 = vadd.f32 0.0, %v1824
        %v1826 = vpop.f32.mrb[0].mxu0
        %v1827 = vadd.f32 0.0, %v1826
        %v1828 = vpop.f32.mrb[0].mxu0
        %v1829 = vadd.f32 0.0, %v1828
        %1830 = vdwg.mxu0
        %v1831 = vmax.f32 %v962, %v964
        %1832 = vmax.xlane.f32.xlu0 %v1831
        %v1833 = vpop.xlane.xlu0 %1832
        %v1834 = vmax.f32 %v966, %v968
        %1835 = vmax.xlane.f32.xlu0 %v1834
        %v1836 = vpop.xlane.xlu0 %1835
        %v1837 = vmax.f32 %v972, %v974
        %1838 = vmax.xlane.f32.xlu0 %v1837
        %v1839 = vpop.xlane.xlu0 %1838
        %v1840 = vmax.f32 %v976, %v978
        %1841 = vmax.xlane.f32.xlu0 %v1840
        %v1842 = vpop.xlane.xlu0 %1841
        %v1843 = vmax.f32 %v982, %v984
        %1844 = vmax.xlane.f32.xlu0 %v1843
        %v1845 = vpop.xlane.xlu0 %1844
        %v1846 = vmax.f32 %v986, %v988
        %1847 = vmax.xlane.f32.xlu0 %v1846
        %v1848 = vpop.xlane.xlu0 %1847
        %v1849 = vmax.f32 %v992, %v994
        %1850 = vmax.xlane.f32.xlu0 %v1849
        %v1851 = vpop.xlane.xlu0 %1850
        %v1852 = vmax.f32 %v996, %v998
        %1853 = vmax.xlane.f32.xlu0 %v1852
        %v1854 = vpop.xlane.xlu0 %1853
        %v1855 = vmax.f32 %v1002, %v1004
        %1856 = vmax.xlane.f32.xlu0 %v1855
        %v1857 = vpop.xlane.xlu0 %1856
        %v1858 = vmax.f32 %v1006, %v1008
        %1859 = vmax.xlane.f32.xlu0 %v1858
        %v1860 = vpop.xlane.xlu0 %1859
        %v1861 = vmax.f32 %v1012, %v1014
        %1862 = vmax.xlane.f32.xlu0 %v1861
        %v1863 = vpop.xlane.xlu0 %1862
        %v1864 = vmax.f32 %v1016, %v1018
        %1865 = vmax.xlane.f32.xlu0 %v1864
        %v1866 = vpop.xlane.xlu0 %1865
        %v1867 = vmax.f32 %v1022, %v1024
        %1868 = vmax.xlane.f32.xlu0 %v1867
        %v1869 = vpop.xlane.xlu0 %1868
        %v1870 = vmax.f32 %v1026, %v1028
        %1871 = vmax.xlane.f32.xlu0 %v1870
        %v1872 = vpop.xlane.xlu0 %1871
        %v1873 = vmax.f32 %v1032, %v1034
        %1874 = vmax.xlane.f32.xlu0 %v1873
        %v1875 = vpop.xlane.xlu0 %1874
        %v1876 = vmax.f32 %v1036, %v1038
        %1877 = vmax.xlane.f32.xlu0 %v1876
        %v1878 = vpop.xlane.xlu0 %1877
        %v1879 = vsub.f32 %v962, %v1833
        %v1880 = vsub.f32 %v964, %v1833
        %v1881 = vsub.f32 %v966, %v1836
        %v1882 = vsub.f32 %v968, %v1836
        %v1883 = vsub.f32 %v972, %v1839
        %v1884 = vsub.f32 %v974, %v1839
        %v1885 = vsub.f32 %v976, %v1842
        %v1886 = vsub.f32 %v978, %v1842
        %v1887 = vsub.f32 %v982, %v1845
        %v1888 = vsub.f32 %v984, %v1845
        %v1889 = vsub.f32 %v986, %v1848
        %v1890 = vsub.f32 %v988, %v1848
        %v1891 = vsub.f32 %v992, %v1851
        %v1892 = vsub.f32 %v994, %v1851
        %v1893 = vsub.f32 %v996, %v1854
        %v1894 = vsub.f32 %v998, %v1854
        %v1895 = vsub.f32 %v1002, %v1857
        %v1896 = vsub.f32 %v1004, %v1857
        %v1897 = vsub.f32 %v1006, %v1860
        %v1898 = vsub.f32 %v1008, %v1860
        %v1899 = vsub.f32 %v1012, %v1863
        %v1900 = vsub.f32 %v1014, %v1863
        %v1901 = vsub.f32 %v1016, %v1866
        %v1902 = vsub.f32 %v1018, %v1866
        %v1903 = vsub.f32 %v1022, %v1869
        %v1904 = vsub.f32 %v1024, %v1869
        %v1905 = vsub.f32 %v1026, %v1872
        %v1906 = vsub.f32 %v1028, %v1872
        %v1907 = vsub.f32 %v1032, %v1875
        %v1908 = vsub.f32 %v1034, %v1875
        %v1909 = vsub.f32 %v1036, %v1878
        %v1910 = vsub.f32 %v1038, %v1878
        %v1911 = vmul.f32 %v1879, 1.442695
        %v1912 = vpow.pop %v1911
        %v1913 = vmul.f32 %v1880, 1.442695
        %v1914 = vpow.pop %v1913
        %v1915 = vmul.f32 %v1881, 1.442695
        %v1916 = vpow.pop %v1915
        %v1917 = vmul.f32 %v1882, 1.442695
        %v1918 = vpow.pop %v1917
        %v1919 = vmul.f32 %v1883, 1.442695
        %v1920 = vpow.pop %v1919
        %v1921 = vmul.f32 %v1884, 1.442695
        %v1922 = vpow.pop %v1921
        %v1923 = vmul.f32 %v1885, 1.442695
        %v1924 = vpow.pop %v1923
        %v1925 = vmul.f32 %v1886, 1.442695
        %v1926 = vpow.pop %v1925
        %v1927 = vmul.f32 %v1887, 1.442695
        %v1928 = vpow.pop %v1927
        %v1929 = vmul.f32 %v1888, 1.442695
        %v1930 = vpow.pop %v1929
        %v1931 = vmul.f32 %v1889, 1.442695
        %v1932 = vpow.pop %v1931
        %v1933 = vmul.f32 %v1890, 1.442695
        %v1934 = vpow.pop %v1933
        %v1935 = vmul.f32 %v1891, 1.442695
        %v1936 = vpow.pop %v1935
        %v1937 = vmul.f32 %v1892, 1.442695
        %v1938 = vpow.pop %v1937
        %v1939 = vmul.f32 %v1893, 1.442695
        %v1940 = vpow.pop %v1939
        %v1941 = vmul.f32 %v1894, 1.442695
        %v1942 = vpow.pop %v1941
        %v1943 = vmul.f32 %v1895, 1.442695
        %v1944 = vpow.pop %v1943
        %v1945 = vmul.f32 %v1896, 1.442695
        %v1946 = vpow.pop %v1945
        %v1947 = vmul.f32 %v1897, 1.442695
        %v1948 = vpow.pop %v1947
        %v1949 = vmul.f32 %v1898, 1.442695
        %v1950 = vpow.pop %v1949
        %v1951 = vmul.f32 %v1899, 1.442695
        %v1952 = vpow.pop %v1951
        %v1953 = vmul.f32 %v1900, 1.442695
        %v1954 = vpow.pop %v1953
        %v1955 = vmul.f32 %v1901, 1.442695
        %v1956 = vpow.pop %v1955
        %v1957 = vmul.f32 %v1902, 1.442695
        %v1958 = vpow.pop %v1957
        %v1959 = vmul.f32 %v1903, 1.442695
        %v1960 = vpow.pop %v1959
        %v1961 = vmul.f32 %v1904, 1.442695
        %v1962 = vpow.pop %v1961
        %v1963 = vmul.f32 %v1905, 1.442695
        %v1964 = vpow.pop %v1963
        %v1965 = vmul.f32 %v1906, 1.442695
        %v1966 = vpow.pop %v1965
        %v1967 = vmul.f32 %v1907, 1.442695
        %v1968 = vpow.pop %v1967
        %v1969 = vmul.f32 %v1908, 1.442695
        %v1970 = vpow.pop %v1969
        %v1971 = vmul.f32 %v1909, 1.442695
        %v1972 = vpow.pop %v1971
        %v1973 = vmul.f32 %v1910, 1.442695
        %v1974 = vpow.pop %v1973
        %v1975 = vpack.c.bf16 %v1916, %v1912
        %v1976 = vpack.c.bf16 %v1918, %v1914
        %v1977 = vpack.c.bf16 %v1924, %v1920
        %v1978 = vpack.c.bf16 %v1926, %v1922
        %v1979 = vpack.c.bf16 %v1932, %v1928
        %v1980 = vpack.c.bf16 %v1934, %v1930
        %v1981 = vpack.c.bf16 %v1940, %v1936
        %v1982 = vpack.c.bf16 %v1942, %v1938
        %v1983 = vpack.c.bf16 %v1948, %v1944
        %v1984 = vpack.c.bf16 %v1950, %v1946
        %v1985 = vpack.c.bf16 %v1956, %v1952
        %v1986 = vpack.c.bf16 %v1958, %v1954
        %v1987 = vpack.c.bf16 %v1964, %v1960
        %v1988 = vpack.c.bf16 %v1966, %v1962
        %v1989 = vpack.c.bf16 %v1972, %v1968
        %v1990 = vpack.c.bf16 %v1974, %v1970
        %1991 = vst [vmem:[#allocation2] sm:$0xff] %v1975
        %1992 = vst [vmem:[#allocation2 + $0x8] sm:$0xff] %v1976
        %1993 = vst [vmem:[#allocation2 + $0x80] sm:$0xff] %v1977
        %1994 = vst [vmem:[#allocation2 + $0x88] sm:$0xff] %v1978
        %1995 = vst [vmem:[#allocation2 + $0x100] sm:$0xff] %v1979
        %1996 = vst [vmem:[#allocation2 + $0x108] sm:$0xff] %v1980
        %1997 = vst [vmem:[#allocation2 + $0x180] sm:$0xff] %v1981
        %1998 = vst [vmem:[#allocation2 + $0x188] sm:$0xff] %v1982
        %1999 = vst [vmem:[#allocation2 + $0x200] sm:$0xff] %v1983
        %2000 = vst [vmem:[#allocation2 + $0x208] sm:$0xff] %v1984
        %2001 = vst [vmem:[#allocation2 + $0x280] sm:$0xff] %v1985
        %2002 = vst [vmem:[#allocation2 + $0x288] sm:$0xff] %v1986
        %2003 = vst [vmem:[#allocation2 + $0x300] sm:$0xff] %v1987
        %2004 = vst [vmem:[#allocation2 + $0x308] sm:$0xff] %v1988
        %2005 = vst [vmem:[#allocation2 + $0x380] sm:$0xff] %v1989
        %2006 = vst [vmem:[#allocation2 + $0x388] sm:$0xff] %v1990
        %v2007 = vmax.f32 %v1075, %v1077
        %2008 = vmax.xlane.f32.xlu0 %v2007
        %v2009 = vpop.xlane.xlu0 %2008
        %v2010 = vmax.f32 %v1079, %v1081
        %2011 = vmax.xlane.f32.xlu0 %v2010
        %v2012 = vpop.xlane.xlu0 %2011
        %v2013 = vmax.f32 %v1085, %v1087
        %2014 = vmax.xlane.f32.xlu0 %v2013
        %v2015 = vpop.xlane.xlu0 %2014
        %v2016 = vmax.f32 %v1089, %v1091
        %2017 = vmax.xlane.f32.xlu0 %v2016
        %v2018 = vpop.xlane.xlu0 %2017
        %v2019 = vmax.f32 %v1095, %v1097
        %2020 = vmax.xlane.f32.xlu0 %v2019
        %v2021 = vpop.xlane.xlu0 %2020
        %v2022 = vmax.f32 %v1099, %v1101
        %2023 = vmax.xlane.f32.xlu0 %v2022
        %v2024 = vpop.xlane.xlu0 %2023
        %v2025 = vmax.f32 %v1105, %v1107
        %2026 = vmax.xlane.f32.xlu0 %v2025
        %v2027 = vpop.xlane.xlu0 %2026
        %v2028 = vmax.f32 %v1109, %v1111
        %2029 = vmax.xlane.f32.xlu0 %v2028
        %v2030 = vpop.xlane.xlu0 %2029
        %v2031 = vmax.f32 %v1115, %v1117
        %2032 = vmax.xlane.f32.xlu0 %v2031
        %v2033 = vpop.xlane.xlu0 %2032
        %v2034 = vmax.f32 %v1119, %v1121
        %2035 = vmax.xlane.f32.xlu0 %v2034
        %v2036 = vpop.xlane.xlu0 %2035
        %v2037 = vmax.f32 %v1125, %v1127
        %2038 = vmax.xlane.f32.xlu0 %v2037
        %v2039 = vpop.xlane.xlu0 %2038
        %v2040 = vmax.f32 %v1129, %v1131
        %2041 = vmax.xlane.f32.xlu0 %v2040
        %v2042 = vpop.xlane.xlu0 %2041
        %v2043 = vmax.f32 %v1135, %v1137
        %2044 = vmax.xlane.f32.xlu0 %v2043
        %v2045 = vpop.xlane.xlu0 %2044
        %v2046 = vmax.f32 %v1139, %v1141
        %2047 = vmax.xlane.f32.xlu0 %v2046
        %v2048 = vpop.xlane.xlu0 %2047
        %v2049 = vmax.f32 %v1145, %v1147
        %2050 = vmax.xlane.f32.xlu0 %v2049
        %v2051 = vpop.xlane.xlu0 %2050
        %v2052 = vmax.f32 %v1149, %v1151
        %2053 = vmax.xlane.f32.xlu0 %v2052
        %v2054 = vpop.xlane.xlu0 %2053
        %v2055 = vsub.f32 %v1075, %v2009
        %v2056 = vsub.f32 %v1077, %v2009
        %v2057 = vsub.f32 %v1079, %v2012
        %v2058 = vsub.f32 %v1081, %v2012
        %v2059 = vsub.f32 %v1085, %v2015
        %v2060 = vsub.f32 %v1087, %v2015
        %v2061 = vsub.f32 %v1089, %v2018
        %v2062 = vsub.f32 %v1091, %v2018
        %v2063 = vsub.f32 %v1095, %v2021
        %v2064 = vsub.f32 %v1097, %v2021
        %v2065 = vsub.f32 %v1099, %v2024
        %v2066 = vsub.f32 %v1101, %v2024
        %v2067 = vsub.f32 %v1105, %v2027
        %v2068 = vsub.f32 %v1107, %v2027
        %v2069 = vsub.f32 %v1109, %v2030
        %v2070 = vsub.f32 %v1111, %v2030
        %v2071 = vsub.f32 %v1115, %v2033
        %v2072 = vsub.f32 %v1117, %v2033
        %v2073 = vsub.f32 %v1119, %v2036
        %v2074 = vsub.f32 %v1121, %v2036
        %v2075 = vsub.f32 %v1125, %v2039
        %v2076 = vsub.f32 %v1127, %v2039
        %v2077 = vsub.f32 %v1129, %v2042
        %v2078 = vsub.f32 %v1131, %v2042
        %v2079 = vsub.f32 %v1135, %v2045
        %v2080 = vsub.f32 %v1137, %v2045
        %v2081 = vsub.f32 %v1139, %v2048
        %v2082 = vsub.f32 %v1141, %v2048
        %v2083 = vsub.f32 %v1145, %v2051
        %v2084 = vsub.f32 %v1147, %v2051
        %v2085 = vsub.f32 %v1149, %v2054
        %v2086 = vsub.f32 %v1151, %v2054
        %v2087 = vmul.f32 %v2055, 1.442695
        %v2088 = vpow.pop %v2087
        %v2089 = vmul.f32 %v2056, 1.442695
        %v2090 = vpow.pop %v2089
        %v2091 = vmul.f32 %v2057, 1.442695
        %v2092 = vpow.pop %v2091
        %v2093 = vmul.f32 %v2058, 1.442695
        %v2094 = vpow.pop %v2093
        %v2095 = vmul.f32 %v2059, 1.442695
        %v2096 = vpow.pop %v2095
        %v2097 = vmul.f32 %v2060, 1.442695
        %v2098 = vpow.pop %v2097
        %v2099 = vmul.f32 %v2061, 1.442695
        %v2100 = vpow.pop %v2099
        %v2101 = vmul.f32 %v2062, 1.442695
        %v2102 = vpow.pop %v2101
        %v2103 = vmul.f32 %v2063, 1.442695
        %v2104 = vpow.pop %v2103
        %v2105 = vmul.f32 %v2064, 1.442695
        %v2106 = vpow.pop %v2105
        %v2107 = vmul.f32 %v2065, 1.442695
        %v2108 = vpow.pop %v2107
        %v2109 = vmul.f32 %v2066, 1.442695
        %v2110 = vpow.pop %v2109
        %v2111 = vmul.f32 %v2067, 1.442695
        %v2112 = vpow.pop %v2111
        %v2113 = vmul.f32 %v2068, 1.442695
        %v2114 = vpow.pop %v2113
        %v2115 = vmul.f32 %v2069, 1.442695
        %v2116 = vpow.pop %v2115
        %v2117 = vmul.f32 %v2070, 1.442695
        %v2118 = vpow.pop %v2117
        %v2119 = vmul.f32 %v2071, 1.442695
        %v2120 = vpow.pop %v2119
        %v2121 = vmul.f32 %v2072, 1.442695
        %v2122 = vpow.pop %v2121
        %v2123 = vmul.f32 %v2073, 1.442695
        %v2124 = vpow.pop %v2123
        %v2125 = vmul.f32 %v2074, 1.442695
        %v2126 = vpow.pop %v2125
        %v2127 = vmul.f32 %v2075, 1.442695
        %v2128 = vpow.pop %v2127
        %v2129 = vmul.f32 %v2076, 1.442695
        %v2130 = vpow.pop %v2129
        %v2131 = vmul.f32 %v2077, 1.442695
        %v2132 = vpow.pop %v2131
        %v2133 = vmul.f32 %v2078, 1.442695
        %v2134 = vpow.pop %v2133
        %v2135 = vmul.f32 %v2079, 1.442695
        %v2136 = vpow.pop %v2135
        %v2137 = vmul.f32 %v2080, 1.442695
        %v2138 = vpow.pop %v2137
        %v2139 = vmul.f32 %v2081, 1.442695
        %v2140 = vpow.pop %v2139
        %v2141 = vmul.f32 %v2082, 1.442695
        %v2142 = vpow.pop %v2141
        %v2143 = vmul.f32 %v2083, 1.442695
        %v2144 = vpow.pop %v2143
        %v2145 = vmul.f32 %v2084, 1.442695
        %v2146 = vpow.pop %v2145
        %v2147 = vmul.f32 %v2085, 1.442695
        %v2148 = vpow.pop %v2147
        %v2149 = vmul.f32 %v2086, 1.442695
        %v2150 = vpow.pop %v2149
        %v2151 = vpack.c.bf16 %v2092, %v2088
        %v2152 = vpack.c.bf16 %v2094, %v2090
        %v2153 = vpack.c.bf16 %v2100, %v2096
        %v2154 = vpack.c.bf16 %v2102, %v2098
        %v2155 = vpack.c.bf16 %v2108, %v2104
        %v2156 = vpack.c.bf16 %v2110, %v2106
        %v2157 = vpack.c.bf16 %v2116, %v2112
        %v2158 = vpack.c.bf16 %v2118, %v2114
        %v2159 = vpack.c.bf16 %v2124, %v2120
        %v2160 = vpack.c.bf16 %v2126, %v2122
        %v2161 = vpack.c.bf16 %v2132, %v2128
        %v2162 = vpack.c.bf16 %v2134, %v2130
        %v2163 = vpack.c.bf16 %v2140, %v2136
        %v2164 = vpack.c.bf16 %v2142, %v2138
        %v2165 = vpack.c.bf16 %v2148, %v2144
        %v2166 = vpack.c.bf16 %v2150, %v2146
        %2167 = vst [vmem:[#allocation2 + $0x10] sm:$0xff] %v2151
        %2168 = vst [vmem:[#allocation2 + $0x18] sm:$0xff] %v2152
        %2169 = vst [vmem:[#allocation2 + $0x90] sm:$0xff] %v2153
        %2170 = vst [vmem:[#allocation2 + $0x98] sm:$0xff] %v2154
        %2171 = vst [vmem:[#allocation2 + $0x110] sm:$0xff] %v2155
        %2172 = vst [vmem:[#allocation2 + $0x118] sm:$0xff] %v2156
        %2173 = vst [vmem:[#allocation2 + $0x190] sm:$0xff] %v2157
        %2174 = vst [vmem:[#allocation2 + $0x198] sm:$0xff] %v2158
        %2175 = vst [vmem:[#allocation2 + $0x210] sm:$0xff] %v2159
        %2176 = vst [vmem:[#allocation2 + $0x218] sm:$0xff] %v2160
        %2177 = vst [vmem:[#allocation2 + $0x290] sm:$0xff] %v2161
        %2178 = vst [vmem:[#allocation2 + $0x298] sm:$0xff] %v2162
        %2179 = vst [vmem:[#allocation2 + $0x310] sm:$0xff] %v2163
        %2180 = vst [vmem:[#allocation2 + $0x318] sm:$0xff] %v2164
        %2181 = vst [vmem:[#allocation2 + $0x390] sm:$0xff] %v2165
        %2182 = vst [vmem:[#allocation2 + $0x398] sm:$0xff] %v2166
        %v2183 = vmax.f32 %v1188, %v1190
        %2184 = vmax.xlane.f32.xlu0 %v2183
        %v2185 = vpop.xlane.xlu0 %2184
        %v2186 = vmax.f32 %v1192, %v1194
        %2187 = vmax.xlane.f32.xlu0 %v2186
        %v2188 = vpop.xlane.xlu0 %2187
        %v2189 = vmax.f32 %v1198, %v1200
        %2190 = vmax.xlane.f32.xlu0 %v2189
        %v2191 = vpop.xlane.xlu0 %2190
        %v2192 = vmax.f32 %v1202, %v1204
        %2193 = vmax.xlane.f32.xlu0 %v2192
        %v2194 = vpop.xlane.xlu0 %2193
        %v2195 = vmax.f32 %v1208, %v1210
        %2196 = vmax.xlane.f32.xlu0 %v2195
        %v2197 = vpop.xlane.xlu0 %2196
        %v2198 = vmax.f32 %v1212, %v1214
        %2199 = vmax.xlane.f32.xlu0 %v2198
        %v2200 = vpop.xlane.xlu0 %2199
        %v2201 = vmax.f32 %v1218, %v1220
        %2202 = vmax.xlane.f32.xlu0 %v2201
        %v2203 = vpop.xlane.xlu0 %2202
        %v2204 = vmax.f32 %v1222, %v1224
        %2205 = vmax.xlane.f32.xlu0 %v2204
        %v2206 = vpop.xlane.xlu0 %2205
        %v2207 = vmax.f32 %v1228, %v1230
        %2208 = vmax.xlane.f32.xlu0 %v2207
        %v2209 = vpop.xlane.xlu0 %2208
        %v2210 = vmax.f32 %v1232, %v1234
        %2211 = vmax.xlane.f32.xlu0 %v2210
        %v2212 = vpop.xlane.xlu0 %2211
        %v2213 = vmax.f32 %v1238, %v1240
        %2214 = vmax.xlane.f32.xlu0 %v2213
        %v2215 = vpop.xlane.xlu0 %2214
        %v2216 = vmax.f32 %v1242, %v1244
        %2217 = vmax.xlane.f32.xlu0 %v2216
        %v2218 = vpop.xlane.xlu0 %2217
        %v2219 = vmax.f32 %v1248, %v1250
        %2220 = vmax.xlane.f32.xlu0 %v2219
        %v2221 = vpop.xlane.xlu0 %2220
        %v2222 = vmax.f32 %v1252, %v1254
        %2223 = vmax.xlane.f32.xlu0 %v2222
        %v2224 = vpop.xlane.xlu0 %2223
        %v2225 = vmax.f32 %v1258, %v1260
        %2226 = vmax.xlane.f32.xlu0 %v2225
        %v2227 = vpop.xlane.xlu0 %2226
        %v2228 = vmax.f32 %v1262, %v1264
        %2229 = vmax.xlane.f32.xlu0 %v2228
        %v2230 = vpop.xlane.xlu0 %2229
        %v2231 = vsub.f32 %v1188, %v2185
        %v2232 = vsub.f32 %v1190, %v2185
        %v2233 = vsub.f32 %v1192, %v2188
        %v2234 = vsub.f32 %v1194, %v2188
        %v2235 = vsub.f32 %v1198, %v2191
        %v2236 = vsub.f32 %v1200, %v2191
        %v2237 = vsub.f32 %v1202, %v2194
        %v2238 = vsub.f32 %v1204, %v2194
        %v2239 = vsub.f32 %v1208, %v2197
        %v2240 = vsub.f32 %v1210, %v2197
        %v2241 = vsub.f32 %v1212, %v2200
        %v2242 = vsub.f32 %v1214, %v2200
        %v2243 = vsub.f32 %v1218, %v2203
        %v2244 = vsub.f32 %v1220, %v2203
        %v2245 = vsub.f32 %v1222, %v2206
        %v2246 = vsub.f32 %v1224, %v2206
        %v2247 = vsub.f32 %v1228, %v2209
        %v2248 = vsub.f32 %v1230, %v2209
        %v2249 = vsub.f32 %v1232, %v2212
        %v2250 = vsub.f32 %v1234, %v2212
        %v2251 = vsub.f32 %v1238, %v2215
        %v2252 = vsub.f32 %v1240, %v2215
        %v2253 = vsub.f32 %v1242, %v2218
        %v2254 = vsub.f32 %v1244, %v2218
        %v2255 = vsub.f32 %v1248, %v2221
        %v2256 = vsub.f32 %v1250, %v2221
        %v2257 = vsub.f32 %v1252, %v2224
        %v2258 = vsub.f32 %v1254, %v2224
        %v2259 = vsub.f32 %v1258, %v2227
        %v2260 = vsub.f32 %v1260, %v2227
        %v2261 = vsub.f32 %v1262, %v2230
        %v2262 = vsub.f32 %v1264, %v2230
        %v2263 = vmul.f32 %v2231, 1.442695
        %v2264 = vpow.pop %v2263
        %v2265 = vmul.f32 %v2232, 1.442695
        %v2266 = vpow.pop %v2265
        %v2267 = vmul.f32 %v2233, 1.442695
        %v2268 = vpow.pop %v2267
        %v2269 = vmul.f32 %v2234, 1.442695
        %v2270 = vpow.pop %v2269
        %v2271 = vmul.f32 %v2235, 1.442695
        %v2272 = vpow.pop %v2271
        %v2273 = vmul.f32 %v2236, 1.442695
        %v2274 = vpow.pop %v2273
        %v2275 = vmul.f32 %v2237, 1.442695
        %v2276 = vpow.pop %v2275
        %v2277 = vmul.f32 %v2238, 1.442695
        %v2278 = vpow.pop %v2277
        %v2279 = vmul.f32 %v2239, 1.442695
        %v2280 = vpow.pop %v2279
        %v2281 = vmul.f32 %v2240, 1.442695
        %v2282 = vpow.pop %v2281
        %v2283 = vmul.f32 %v2241, 1.442695
        %v2284 = vpow.pop %v2283
        %v2285 = vmul.f32 %v2242, 1.442695
        %v2286 = vpow.pop %v2285
        %v2287 = vmul.f32 %v2243, 1.442695
        %v2288 = vpow.pop %v2287
        %v2289 = vmul.f32 %v2244, 1.442695
        %v2290 = vpow.pop %v2289
        %v2291 = vmul.f32 %v2245, 1.442695
        %v2292 = vpow.pop %v2291
        %v2293 = vmul.f32 %v2246, 1.442695
        %v2294 = vpow.pop %v2293
        %v2295 = vmul.f32 %v2247, 1.442695
        %v2296 = vpow.pop %v2295
        %v2297 = vmul.f32 %v2248, 1.442695
        %v2298 = vpow.pop %v2297
        %v2299 = vmul.f32 %v2249, 1.442695
        %v2300 = vpow.pop %v2299
        %v2301 = vmul.f32 %v2250, 1.442695
        %v2302 = vpow.pop %v2301
        %v2303 = vmul.f32 %v2251, 1.442695
        %v2304 = vpow.pop %v2303
        %v2305 = vmul.f32 %v2252, 1.442695
        %v2306 = vpow.pop %v2305
        %v2307 = vmul.f32 %v2253, 1.442695
        %v2308 = vpow.pop %v2307
        %v2309 = vmul.f32 %v2254, 1.442695
        %v2310 = vpow.pop %v2309
        %v2311 = vmul.f32 %v2255, 1.442695
        %v2312 = vpow.pop %v2311
        %v2313 = vmul.f32 %v2256, 1.442695
        %v2314 = vpow.pop %v2313
        %v2315 = vmul.f32 %v2257, 1.442695
        %v2316 = vpow.pop %v2315
        %v2317 = vmul.f32 %v2258, 1.442695
        %v2318 = vpow.pop %v2317
        %v2319 = vmul.f32 %v2259, 1.442695
        %v2320 = vpow.pop %v2319
        %v2321 = vmul.f32 %v2260, 1.442695
        %v2322 = vpow.pop %v2321
        %v2323 = vmul.f32 %v2261, 1.442695
        %v2324 = vpow.pop %v2323
        %v2325 = vmul.f32 %v2262, 1.442695
        %v2326 = vpow.pop %v2325
        %v2327 = vpack.c.bf16 %v2268, %v2264
        %v2328 = vpack.c.bf16 %v2270, %v2266
        %v2329 = vpack.c.bf16 %v2276, %v2272
        %v2330 = vpack.c.bf16 %v2278, %v2274
        %v2331 = vpack.c.bf16 %v2284, %v2280
        %v2332 = vpack.c.bf16 %v2286, %v2282
        %v2333 = vpack.c.bf16 %v2292, %v2288
        %v2334 = vpack.c.bf16 %v2294, %v2290
        %v2335 = vpack.c.bf16 %v2300, %v2296
        %v2336 = vpack.c.bf16 %v2302, %v2298
        %v2337 = vpack.c.bf16 %v2308, %v2304
        %v2338 = vpack.c.bf16 %v2310, %v2306
        %v2339 = vpack.c.bf16 %v2316, %v2312
        %v2340 = vpack.c.bf16 %v2318, %v2314
        %v2341 = vpack.c.bf16 %v2324, %v2320
        %v2342 = vpack.c.bf16 %v2326, %v2322
        %2343 = vst [vmem:[#allocation2 + $0x20] sm:$0xff] %v2327
        %2344 = vst [vmem:[#allocation2 + $0x28] sm:$0xff] %v2328
        %2345 = vst [vmem:[#allocation2 + $0xa0] sm:$0xff] %v2329
        %2346 = vst [vmem:[#allocation2 + $0xa8] sm:$0xff] %v2330
        %2347 = vst [vmem:[#allocation2 + $0x120] sm:$0xff] %v2331
        %2348 = vst [vmem:[#allocation2 + $0x128] sm:$0xff] %v2332
        %2349 = vst [vmem:[#allocation2 + $0x1a0] sm:$0xff] %v2333
        %2350 = vst [vmem:[#allocation2 + $0x1a8] sm:$0xff] %v2334
        %2351 = vst [vmem:[#allocation2 + $0x220] sm:$0xff] %v2335
        %2352 = vst [vmem:[#allocation2 + $0x228] sm:$0xff] %v2336
        %2353 = vst [vmem:[#allocation2 + $0x2a0] sm:$0xff] %v2337
        %2354 = vst [vmem:[#allocation2 + $0x2a8] sm:$0xff] %v2338
        %2355 = vst [vmem:[#allocation2 + $0x320] sm:$0xff] %v2339
        %2356 = vst [vmem:[#allocation2 + $0x328] sm:$0xff] %v2340
        %2357 = vst [vmem:[#allocation2 + $0x3a0] sm:$0xff] %v2341
        %2358 = vst [vmem:[#allocation2 + $0x3a8] sm:$0xff] %v2342
        %v2359 = vmax.f32 %v1301, %v1303
        %2360 = vmax.xlane.f32.xlu0 %v2359
        %v2361 = vpop.xlane.xlu0 %2360
        %v2362 = vmax.f32 %v1305, %v1307
        %2363 = vmax.xlane.f32.xlu0 %v2362
        %v2364 = vpop.xlane.xlu0 %2363
        %v2365 = vmax.f32 %v1311, %v1313
        %2366 = vmax.xlane.f32.xlu0 %v2365
        %v2367 = vpop.xlane.xlu0 %2366
        %v2368 = vmax.f32 %v1315, %v1317
        %2369 = vmax.xlane.f32.xlu0 %v2368
        %v2370 = vpop.xlane.xlu0 %2369
        %v2371 = vmax.f32 %v1321, %v1323
        %2372 = vmax.xlane.f32.xlu0 %v2371
        %v2373 = vpop.xlane.xlu0 %2372
        %v2374 = vmax.f32 %v1325, %v1327
        %2375 = vmax.xlane.f32.xlu0 %v2374
        %v2376 = vpop.xlane.xlu0 %2375
        %v2377 = vmax.f32 %v1331, %v1333
        %2378 = vmax.xlane.f32.xlu0 %v2377
        %v2379 = vpop.xlane.xlu0 %2378
        %v2380 = vmax.f32 %v1335, %v1337
        %2381 = vmax.xlane.f32.xlu0 %v2380
        %v2382 = vpop.xlane.xlu0 %2381
        %v2383 = vmax.f32 %v1341, %v1343
        %2384 = vmax.xlane.f32.xlu0 %v2383
        %v2385 = vpop.xlane.xlu0 %2384
        %v2386 = vmax.f32 %v1345, %v1347
        %2387 = vmax.xlane.f32.xlu0 %v2386
        %v2388 = vpop.xlane.xlu0 %2387
        %v2389 = vmax.f32 %v1351, %v1353
        %2390 = vmax.xlane.f32.xlu0 %v2389
        %v2391 = vpop.xlane.xlu0 %2390
        %v2392 = vmax.f32 %v1355, %v1357
        %2393 = vmax.xlane.f32.xlu0 %v2392
        %v2394 = vpop.xlane.xlu0 %2393
        %v2395 = vmax.f32 %v1361, %v1363
        %2396 = vmax.xlane.f32.xlu0 %v2395
        %v2397 = vpop.xlane.xlu0 %2396
        %v2398 = vmax.f32 %v1365, %v1367
        %2399 = vmax.xlane.f32.xlu0 %v2398
        %v2400 = vpop.xlane.xlu0 %2399
        %v2401 = vmax.f32 %v1371, %v1373
        %2402 = vmax.xlane.f32.xlu0 %v2401
        %v2403 = vpop.xlane.xlu0 %2402
        %v2404 = vmax.f32 %v1375, %v1377
        %2405 = vmax.xlane.f32.xlu0 %v2404
        %v2406 = vpop.xlane.xlu0 %2405
        %v2407 = vsub.f32 %v1301, %v2361
        %v2408 = vsub.f32 %v1303, %v2361
        %v2409 = vsub.f32 %v1305, %v2364
        %v2410 = vsub.f32 %v1307, %v2364
        %v2411 = vsub.f32 %v1311, %v2367
        %v2412 = vsub.f32 %v1313, %v2367
        %v2413 = vsub.f32 %v1315, %v2370
        %v2414 = vsub.f32 %v1317, %v2370
        %v2415 = vsub.f32 %v1321, %v2373
        %v2416 = vsub.f32 %v1323, %v2373
        %v2417 = vsub.f32 %v1325, %v2376
        %v2418 = vsub.f32 %v1327, %v2376
        %v2419 = vsub.f32 %v1331, %v2379
        %v2420 = vsub.f32 %v1333, %v2379
        %v2421 = vsub.f32 %v1335, %v2382
        %v2422 = vsub.f32 %v1337, %v2382
        %v2423 = vsub.f32 %v1341, %v2385
        %v2424 = vsub.f32 %v1343, %v2385
        %v2425 = vsub.f32 %v1345, %v2388
        %v2426 = vsub.f32 %v1347, %v2388
        %v2427 = vsub.f32 %v1351, %v2391
        %v2428 = vsub.f32 %v1353, %v2391
        %v2429 = vsub.f32 %v1355, %v2394
        %v2430 = vsub.f32 %v1357, %v2394
        %v2431 = vsub.f32 %v1361, %v2397
        %v2432 = vsub.f32 %v1363, %v2397
        %v2433 = vsub.f32 %v1365, %v2400
        %v2434 = vsub.f32 %v1367, %v2400
        %v2435 = vsub.f32 %v1371, %v2403
        %v2436 = vsub.f32 %v1373, %v2403
        %v2437 = vsub.f32 %v1375, %v2406
        %v2438 = vsub.f32 %v1377, %v2406
        %v2439 = vmul.f32 %v2407, 1.442695
        %v2440 = vpow.pop %v2439
        %v2441 = vmul.f32 %v2408, 1.442695
        %v2442 = vpow.pop %v2441
        %v2443 = vmul.f32 %v2409, 1.442695
        %v2444 = vpow.pop %v2443
        %v2445 = vmul.f32 %v2410, 1.442695
        %v2446 = vpow.pop %v2445
        %v2447 = vmul.f32 %v2411, 1.442695
        %v2448 = vpow.pop %v2447
        %v2449 = vmul.f32 %v2412, 1.442695
        %v2450 = vpow.pop %v2449
        %v2451 = vmul.f32 %v2413, 1.442695
        %v2452 = vpow.pop %v2451
        %v2453 = vmul.f32 %v2414, 1.442695
        %v2454 = vpow.pop %v2453
        %v2455 = vmul.f32 %v2415, 1.442695
        %v2456 = vpow.pop %v2455
        %v2457 = vmul.f32 %v2416, 1.442695
        %v2458 = vpow.pop %v2457
        %v2459 = vmul.f32 %v2417, 1.442695
        %v2460 = vpow.pop %v2459
        %v2461 = vmul.f32 %v2418, 1.442695
        %v2462 = vpow.pop %v2461
        %v2463 = vmul.f32 %v2419, 1.442695
        %v2464 = vpow.pop %v2463
        %v2465 = vmul.f32 %v2420, 1.442695
        %v2466 = vpow.pop %v2465
        %v2467 = vmul.f32 %v2421, 1.442695
        %v2468 = vpow.pop %v2467
        %v2469 = vmul.f32 %v2422, 1.442695
        %v2470 = vpow.pop %v2469
        %v2471 = vmul.f32 %v2423, 1.442695
        %v2472 = vpow.pop %v2471
        %v2473 = vmul.f32 %v2424, 1.442695
        %v2474 = vpow.pop %v2473
        %v2475 = vmul.f32 %v2425, 1.442695
        %v2476 = vpow.pop %v2475
        %v2477 = vmul.f32 %v2426, 1.442695
        %v2478 = vpow.pop %v2477
        %v2479 = vmul.f32 %v2427, 1.442695
        %v2480 = vpow.pop %v2479
        %v2481 = vmul.f32 %v2428, 1.442695
        %v2482 = vpow.pop %v2481
        %v2483 = vmul.f32 %v2429, 1.442695
        %v2484 = vpow.pop %v2483
        %v2485 = vmul.f32 %v2430, 1.442695
        %v2486 = vpow.pop %v2485
        %v2487 = vmul.f32 %v2431, 1.442695
        %v2488 = vpow.pop %v2487
        %v2489 = vmul.f32 %v2432, 1.442695
        %v2490 = vpow.pop %v2489
        %v2491 = vmul.f32 %v2433, 1.442695
        %v2492 = vpow.pop %v2491
        %v2493 = vmul.f32 %v2434, 1.442695
        %v2494 = vpow.pop %v2493
        %v2495 = vmul.f32 %v2435, 1.442695
        %v2496 = vpow.pop %v2495
        %v2497 = vmul.f32 %v2436, 1.442695
        %v2498 = vpow.pop %v2497
        %v2499 = vmul.f32 %v2437, 1.442695
        %v2500 = vpow.pop %v2499
        %v2501 = vmul.f32 %v2438, 1.442695
        %v2502 = vpow.pop %v2501
        %v2503 = vpack.c.bf16 %v2444, %v2440
        %v2504 = vpack.c.bf16 %v2446, %v2442
        %v2505 = vpack.c.bf16 %v2452, %v2448
        %v2506 = vpack.c.bf16 %v2454, %v2450
        %v2507 = vpack.c.bf16 %v2460, %v2456
        %v2508 = vpack.c.bf16 %v2462, %v2458
        %v2509 = vpack.c.bf16 %v2468, %v2464
        %v2510 = vpack.c.bf16 %v2470, %v2466
        %v2511 = vpack.c.bf16 %v2476, %v2472
        %v2512 = vpack.c.bf16 %v2478, %v2474
        %v2513 = vpack.c.bf16 %v2484, %v2480
        %v2514 = vpack.c.bf16 %v2486, %v2482
        %v2515 = vpack.c.bf16 %v2492, %v2488
        %v2516 = vpack.c.bf16 %v2494, %v2490
        %v2517 = vpack.c.bf16 %v2500, %v2496
        %v2518 = vpack.c.bf16 %v2502, %v2498
        %2519 = vst [vmem:[#allocation2 + $0x30] sm:$0xff] %v2503
        %2520 = vst [vmem:[#allocation2 + $0x38] sm:$0xff] %v2504
        %2521 = vst [vmem:[#allocation2 + $0xb0] sm:$0xff] %v2505
        %2522 = vst [vmem:[#allocation2 + $0xb8] sm:$0xff] %v2506
        %2523 = vst [vmem:[#allocation2 + $0x130] sm:$0xff] %v2507
        %2524 = vst [vmem:[#allocation2 + $0x138] sm:$0xff] %v2508
        %2525 = vst [vmem:[#allocation2 + $0x1b0] sm:$0xff] %v2509
        %2526 = vst [vmem:[#allocation2 + $0x1b8] sm:$0xff] %v2510
        %2527 = vst [vmem:[#allocation2 + $0x230] sm:$0xff] %v2511
        %2528 = vst [vmem:[#allocation2 + $0x238] sm:$0xff] %v2512
        %2529 = vst [vmem:[#allocation2 + $0x2b0] sm:$0xff] %v2513
        %2530 = vst [vmem:[#allocation2 + $0x2b8] sm:$0xff] %v2514
        %2531 = vst [vmem:[#allocation2 + $0x330] sm:$0xff] %v2515
        %2532 = vst [vmem:[#allocation2 + $0x338] sm:$0xff] %v2516
        %2533 = vst [vmem:[#allocation2 + $0x3b0] sm:$0xff] %v2517
        %2534 = vst [vmem:[#allocation2 + $0x3b8] sm:$0xff] %v2518
        %v2535 = vmax.f32 %v1414, %v1416
        %2536 = vmax.xlane.f32.xlu0 %v2535
        %v2537 = vpop.xlane.xlu0 %2536
        %v2538 = vmax.f32 %v1418, %v1420
        %2539 = vmax.xlane.f32.xlu0 %v2538
        %v2540 = vpop.xlane.xlu0 %2539
        %v2541 = vmax.f32 %v1424, %v1426
        %2542 = vmax.xlane.f32.xlu0 %v2541
        %v2543 = vpop.xlane.xlu0 %2542
        %v2544 = vmax.f32 %v1428, %v1430
        %2545 = vmax.xlane.f32.xlu0 %v2544
        %v2546 = vpop.xlane.xlu0 %2545
        %v2547 = vmax.f32 %v1434, %v1436
        %2548 = vmax.xlane.f32.xlu0 %v2547
        %v2549 = vpop.xlane.xlu0 %2548
        %v2550 = vmax.f32 %v1438, %v1440
        %2551 = vmax.xlane.f32.xlu0 %v2550
        %v2552 = vpop.xlane.xlu0 %2551
        %v2553 = vmax.f32 %v1444, %v1446
        %2554 = vmax.xlane.f32.xlu0 %v2553
        %v2555 = vpop.xlane.xlu0 %2554
        %v2556 = vmax.f32 %v1448, %v1450
        %2557 = vmax.xlane.f32.xlu0 %v2556
        %v2558 = vpop.xlane.xlu0 %2557
        %v2559 = vmax.f32 %v1454, %v1456
        %2560 = vmax.xlane.f32.xlu0 %v2559
        %v2561 = vpop.xlane.xlu0 %2560
        %v2562 = vmax.f32 %v1458, %v1460
        %2563 = vmax.xlane.f32.xlu0 %v2562
        %v2564 = vpop.xlane.xlu0 %2563
        %v2565 = vmax.f32 %v1464, %v1466
        %2566 = vmax.xlane.f32.xlu0 %v2565
        %v2567 = vpop.xlane.xlu0 %2566
        %v2568 = vmax.f32 %v1468, %v1470
        %2569 = vmax.xlane.f32.xlu0 %v2568
        %v2570 = vpop.xlane.xlu0 %2569
        %v2571 = vmax.f32 %v1474, %v1476
        %2572 = vmax.xlane.f32.xlu0 %v2571
        %v2573 = vpop.xlane.xlu0 %2572
        %v2574 = vmax.f32 %v1478, %v1480
        %2575 = vmax.xlane.f32.xlu0 %v2574
        %v2576 = vpop.xlane.xlu0 %2575
        %v2577 = vmax.f32 %v1484, %v1486
        %2578 = vmax.xlane.f32.xlu0 %v2577
        %v2579 = vpop.xlane.xlu0 %2578
        %v2580 = vmax.f32 %v1488, %v1490
        %2581 = vmax.xlane.f32.xlu0 %v2580
        %v2582 = vpop.xlane.xlu0 %2581
        %v2583 = vsub.f32 %v1414, %v2537
        %v2584 = vsub.f32 %v1416, %v2537
        %v2585 = vsub.f32 %v1418, %v2540
        %v2586 = vsub.f32 %v1420, %v2540
        %v2587 = vsub.f32 %v1424, %v2543
        %v2588 = vsub.f32 %v1426, %v2543
        %v2589 = vsub.f32 %v1428, %v2546
        %v2590 = vsub.f32 %v1430, %v2546
        %v2591 = vsub.f32 %v1434, %v2549
        %v2592 = vsub.f32 %v1436, %v2549
        %v2593 = vsub.f32 %v1438, %v2552
        %v2594 = vsub.f32 %v1440, %v2552
        %v2595 = vsub.f32 %v1444, %v2555
        %v2596 = vsub.f32 %v1446, %v2555
        %v2597 = vsub.f32 %v1448, %v2558
        %v2598 = vsub.f32 %v1450, %v2558
        %v2599 = vsub.f32 %v1454, %v2561
        %v2600 = vsub.f32 %v1456, %v2561
        %v2601 = vsub.f32 %v1458, %v2564
        %v2602 = vsub.f32 %v1460, %v2564
        %v2603 = vsub.f32 %v1464, %v2567
        %v2604 = vsub.f32 %v1466, %v2567
        %v2605 = vsub.f32 %v1468, %v2570
        %v2606 = vsub.f32 %v1470, %v2570
        %v2607 = vsub.f32 %v1474, %v2573
        %v2608 = vsub.f32 %v1476, %v2573
        %v2609 = vsub.f32 %v1478, %v2576
        %v2610 = vsub.f32 %v1480, %v2576
        %v2611 = vsub.f32 %v1484, %v2579
        %v2612 = vsub.f32 %v1486, %v2579
        %v2613 = vsub.f32 %v1488, %v2582
        %v2614 = vsub.f32 %v1490, %v2582
        %v2615 = vmul.f32 %v2583, 1.442695
        %v2616 = vpow.pop %v2615
        %v2617 = vmul.f32 %v2584, 1.442695
        %v2618 = vpow.pop %v2617
        %v2619 = vmul.f32 %v2585, 1.442695
        %v2620 = vpow.pop %v2619
        %v2621 = vmul.f32 %v2586, 1.442695
        %v2622 = vpow.pop %v2621
        %v2623 = vmul.f32 %v2587, 1.442695
        %v2624 = vpow.pop %v2623
        %v2625 = vmul.f32 %v2588, 1.442695
        %v2626 = vpow.pop %v2625
        %v2627 = vmul.f32 %v2589, 1.442695
        %v2628 = vpow.pop %v2627
        %v2629 = vmul.f32 %v2590, 1.442695
        %v2630 = vpow.pop %v2629
        %v2631 = vmul.f32 %v2591, 1.442695
        %v2632 = vpow.pop %v2631
        %v2633 = vmul.f32 %v2592, 1.442695
        %v2634 = vpow.pop %v2633
        %v2635 = vmul.f32 %v2593, 1.442695
        %v2636 = vpow.pop %v2635
        %v2637 = vmul.f32 %v2594, 1.442695
        %v2638 = vpow.pop %v2637
        %v2639 = vmul.f32 %v2595, 1.442695
        %v2640 = vpow.pop %v2639
        %v2641 = vmul.f32 %v2596, 1.442695
        %v2642 = vpow.pop %v2641
        %v2643 = vmul.f32 %v2597, 1.442695
        %v2644 = vpow.pop %v2643
        %v2645 = vmul.f32 %v2598, 1.442695
        %v2646 = vpow.pop %v2645
        %v2647 = vmul.f32 %v2599, 1.442695
        %v2648 = vpow.pop %v2647
        %v2649 = vmul.f32 %v2600, 1.442695
        %v2650 = vpow.pop %v2649
        %v2651 = vmul.f32 %v2601, 1.442695
        %v2652 = vpow.pop %v2651
        %v2653 = vmul.f32 %v2602, 1.442695
        %v2654 = vpow.pop %v2653
        %v2655 = vmul.f32 %v2603, 1.442695
        %v2656 = vpow.pop %v2655
        %v2657 = vmul.f32 %v2604, 1.442695
        %v2658 = vpow.pop %v2657
        %v2659 = vmul.f32 %v2605, 1.442695
        %v2660 = vpow.pop %v2659
        %v2661 = vmul.f32 %v2606, 1.442695
        %v2662 = vpow.pop %v2661
        %v2663 = vmul.f32 %v2607, 1.442695
        %v2664 = vpow.pop %v2663
        %v2665 = vmul.f32 %v2608, 1.442695
        %v2666 = vpow.pop %v2665
        %v2667 = vmul.f32 %v2609, 1.442695
        %v2668 = vpow.pop %v2667
        %v2669 = vmul.f32 %v2610, 1.442695
        %v2670 = vpow.pop %v2669
        %v2671 = vmul.f32 %v2611, 1.442695
        %v2672 = vpow.pop %v2671
        %v2673 = vmul.f32 %v2612, 1.442695
        %v2674 = vpow.pop %v2673
        %v2675 = vmul.f32 %v2613, 1.442695
        %v2676 = vpow.pop %v2675
        %v2677 = vmul.f32 %v2614, 1.442695
        %v2678 = vpow.pop %v2677
        %v2679 = vpack.c.bf16 %v2620, %v2616
        %v2680 = vpack.c.bf16 %v2622, %v2618
        %v2681 = vpack.c.bf16 %v2628, %v2624
        %v2682 = vpack.c.bf16 %v2630, %v2626
        %v2683 = vpack.c.bf16 %v2636, %v2632
        %v2684 = vpack.c.bf16 %v2638, %v2634
        %v2685 = vpack.c.bf16 %v2644, %v2640
        %v2686 = vpack.c.bf16 %v2646, %v2642
        %v2687 = vpack.c.bf16 %v2652, %v2648
        %v2688 = vpack.c.bf16 %v2654, %v2650
        %v2689 = vpack.c.bf16 %v2660, %v2656
        %v2690 = vpack.c.bf16 %v2662, %v2658
        %v2691 = vpack.c.bf16 %v2668, %v2664
        %v2692 = vpack.c.bf16 %v2670, %v2666
        %v2693 = vpack.c.bf16 %v2676, %v2672
        %v2694 = vpack.c.bf16 %v2678, %v2674
        %2695 = vst [vmem:[#allocation2 + $0x40] sm:$0xff] %v2679
        %2696 = vst [vmem:[#allocation2 + $0x48] sm:$0xff] %v2680
        %2697 = vst [vmem:[#allocation2 + $0xc0] sm:$0xff] %v2681
        %2698 = vst [vmem:[#allocation2 + $0xc8] sm:$0xff] %v2682
        %2699 = vst [vmem:[#allocation2 + $0x140] sm:$0xff] %v2683
        %2700 = vst [vmem:[#allocation2 + $0x148] sm:$0xff] %v2684
        %2701 = vst [vmem:[#allocation2 + $0x1c0] sm:$0xff] %v2685
        %2702 = vst [vmem:[#allocation2 + $0x1c8] sm:$0xff] %v2686
        %2703 = vst [vmem:[#allocation2 + $0x240] sm:$0xff] %v2687
        %2704 = vst [vmem:[#allocation2 + $0x248] sm:$0xff] %v2688
        %2705 = vst [vmem:[#allocation2 + $0x2c0] sm:$0xff] %v2689
        %2706 = vst [vmem:[#allocation2 + $0x2c8] sm:$0xff] %v2690
        %2707 = vst [vmem:[#allocation2 + $0x340] sm:$0xff] %v2691
        %2708 = vst [vmem:[#allocation2 + $0x348] sm:$0xff] %v2692
        %2709 = vst [vmem:[#allocation2 + $0x3c0] sm:$0xff] %v2693
        %2710 = vst [vmem:[#allocation2 + $0x3c8] sm:$0xff] %v2694
        %v2711 = vmax.f32 %v1527, %v1529
        %2712 = vmax.xlane.f32.xlu0 %v2711
        %v2713 = vpop.xlane.xlu0 %2712
        %v2714 = vmax.f32 %v1531, %v1533
        %2715 = vmax.xlane.f32.xlu0 %v2714
        %v2716 = vpop.xlane.xlu0 %2715
        %v2717 = vmax.f32 %v1537, %v1539
        %2718 = vmax.xlane.f32.xlu0 %v2717
        %v2719 = vpop.xlane.xlu0 %2718
        %v2720 = vmax.f32 %v1541, %v1543
        %2721 = vmax.xlane.f32.xlu0 %v2720
        %v2722 = vpop.xlane.xlu0 %2721
        %v2723 = vmax.f32 %v1547, %v1549
        %2724 = vmax.xlane.f32.xlu0 %v2723
        %v2725 = vpop.xlane.xlu0 %2724
        %v2726 = vmax.f32 %v1551, %v1553
        %2727 = vmax.xlane.f32.xlu0 %v2726
        %v2728 = vpop.xlane.xlu0 %2727
        %v2729 = vmax.f32 %v1557, %v1559
        %2730 = vmax.xlane.f32.xlu0 %v2729
        %v2731 = vpop.xlane.xlu0 %2730
        %v2732 = vmax.f32 %v1561, %v1563
        %2733 = vmax.xlane.f32.xlu0 %v2732
        %v2734 = vpop.xlane.xlu0 %2733
        %v2735 = vmax.f32 %v1567, %v1569
        %2736 = vmax.xlane.f32.xlu0 %v2735
        %v2737 = vpop.xlane.xlu0 %2736
        %v2738 = vmax.f32 %v1571, %v1573
        %2739 = vmax.xlane.f32.xlu0 %v2738
        %v2740 = vpop.xlane.xlu0 %2739
        %v2741 = vmax.f32 %v1577, %v1579
        %2742 = vmax.xlane.f32.xlu0 %v2741
        %v2743 = vpop.xlane.xlu0 %2742
        %v2744 = vmax.f32 %v1581, %v1583
        %2745 = vmax.xlane.f32.xlu0 %v2744
        %v2746 = vpop.xlane.xlu0 %2745
        %v2747 = vmax.f32 %v1587, %v1589
        %2748 = vmax.xlane.f32.xlu0 %v2747
        %v2749 = vpop.xlane.xlu0 %2748
        %v2750 = vmax.f32 %v1591, %v1593
        %2751 = vmax.xlane.f32.xlu0 %v2750
        %v2752 = vpop.xlane.xlu0 %2751
        %v2753 = vmax.f32 %v1597, %v1599
        %2754 = vmax.xlane.f32.xlu0 %v2753
        %v2755 = vpop.xlane.xlu0 %2754
        %v2756 = vmax.f32 %v1601, %v1603
        %2757 = vmax.xlane.f32.xlu0 %v2756
        %v2758 = vpop.xlane.xlu0 %2757
        %v2759 = vsub.f32 %v1527, %v2713
        %v2760 = vsub.f32 %v1529, %v2713
        %v2761 = vsub.f32 %v1531, %v2716
        %v2762 = vsub.f32 %v1533, %v2716
        %v2763 = vsub.f32 %v1537, %v2719
        %v2764 = vsub.f32 %v1539, %v2719
        %v2765 = vsub.f32 %v1541, %v2722
        %v2766 = vsub.f32 %v1543, %v2722
        %v2767 = vsub.f32 %v1547, %v2725
        %v2768 = vsub.f32 %v1549, %v2725
        %v2769 = vsub.f32 %v1551, %v2728
        %v2770 = vsub.f32 %v1553, %v2728
        %v2771 = vsub.f32 %v1557, %v2731
        %v2772 = vsub.f32 %v1559, %v2731
        %v2773 = vsub.f32 %v1561, %v2734
        %v2774 = vsub.f32 %v1563, %v2734
        %v2775 = vsub.f32 %v1567, %v2737
        %v2776 = vsub.f32 %v1569, %v2737
        %v2777 = vsub.f32 %v1571, %v2740
        %v2778 = vsub.f32 %v1573, %v2740
        %v2779 = vsub.f32 %v1577, %v2743
        %v2780 = vsub.f32 %v1579, %v2743
        %v2781 = vsub.f32 %v1581, %v2746
        %v2782 = vsub.f32 %v1583, %v2746
        %v2783 = vsub.f32 %v1587, %v2749
        %v2784 = vsub.f32 %v1589, %v2749
        %v2785 = vsub.f32 %v1591, %v2752
        %v2786 = vsub.f32 %v1593, %v2752
        %v2787 = vsub.f32 %v1597, %v2755
        %v2788 = vsub.f32 %v1599, %v2755
        %v2789 = vsub.f32 %v1601, %v2758
        %v2790 = vsub.f32 %v1603, %v2758
        %v2791 = vmul.f32 %v2759, 1.442695
        %v2792 = vpow.pop %v2791
        %v2793 = vmul.f32 %v2760, 1.442695
        %v2794 = vpow.pop %v2793
        %v2795 = vmul.f32 %v2761, 1.442695
        %v2796 = vpow.pop %v2795
        %v2797 = vmul.f32 %v2762, 1.442695
        %v2798 = vpow.pop %v2797
        %v2799 = vmul.f32 %v2763, 1.442695
        %v2800 = vpow.pop %v2799
        %v2801 = vmul.f32 %v2764, 1.442695
        %v2802 = vpow.pop %v2801
        %v2803 = vmul.f32 %v2765, 1.442695
        %v2804 = vpow.pop %v2803
        %v2805 = vmul.f32 %v2766, 1.442695
        %v2806 = vpow.pop %v2805
        %v2807 = vmul.f32 %v2767, 1.442695
        %v2808 = vpow.pop %v2807
        %v2809 = vmul.f32 %v2768, 1.442695
        %v2810 = vpow.pop %v2809
        %v2811 = vmul.f32 %v2769, 1.442695
        %v2812 = vpow.pop %v2811
        %v2813 = vmul.f32 %v2770, 1.442695
        %v2814 = vpow.pop %v2813
        %v2815 = vmul.f32 %v2771, 1.442695
        %v2816 = vpow.pop %v2815
        %v2817 = vmul.f32 %v2772, 1.442695
        %v2818 = vpow.pop %v2817
        %v2819 = vmul.f32 %v2773, 1.442695
        %v2820 = vpow.pop %v2819
        %v2821 = vmul.f32 %v2774, 1.442695
        %v2822 = vpow.pop %v2821
        %v2823 = vmul.f32 %v2775, 1.442695
        %v2824 = vpow.pop %v2823
        %v2825 = vmul.f32 %v2776, 1.442695
        %v2826 = vpow.pop %v2825
        %v2827 = vmul.f32 %v2777, 1.442695
        %v2828 = vpow.pop %v2827
        %v2829 = vmul.f32 %v2778, 1.442695
        %v2830 = vpow.pop %v2829
        %v2831 = vmul.f32 %v2779, 1.442695
        %v2832 = vpow.pop %v2831
        %v2833 = vmul.f32 %v2780, 1.442695
        %v2834 = vpow.pop %v2833
        %v2835 = vmul.f32 %v2781, 1.442695
        %v2836 = vpow.pop %v2835
        %v2837 = vmul.f32 %v2782, 1.442695
        %v2838 = vpow.pop %v2837
        %v2839 = vmul.f32 %v2783, 1.442695
        %v2840 = vpow.pop %v2839
        %v2841 = vmul.f32 %v2784, 1.442695
        %v2842 = vpow.pop %v2841
        %v2843 = vmul.f32 %v2785, 1.442695
        %v2844 = vpow.pop %v2843
        %v2845 = vmul.f32 %v2786, 1.442695
        %v2846 = vpow.pop %v2845
        %v2847 = vmul.f32 %v2787, 1.442695
        %v2848 = vpow.pop %v2847
        %v2849 = vmul.f32 %v2788, 1.442695
        %v2850 = vpow.pop %v2849
        %v2851 = vmul.f32 %v2789, 1.442695
        %v2852 = vpow.pop %v2851
        %v2853 = vmul.f32 %v2790, 1.442695
        %v2854 = vpow.pop %v2853
        %v2855 = vpack.c.bf16 %v2796, %v2792
        %v2856 = vpack.c.bf16 %v2798, %v2794
        %v2857 = vpack.c.bf16 %v2804, %v2800
        %v2858 = vpack.c.bf16 %v2806, %v2802
        %v2859 = vpack.c.bf16 %v2812, %v2808
        %v2860 = vpack.c.bf16 %v2814, %v2810
        %v2861 = vpack.c.bf16 %v2820, %v2816
        %v2862 = vpack.c.bf16 %v2822, %v2818
        %v2863 = vpack.c.bf16 %v2828, %v2824
        %v2864 = vpack.c.bf16 %v2830, %v2826
        %v2865 = vpack.c.bf16 %v2836, %v2832
        %v2866 = vpack.c.bf16 %v2838, %v2834
        %v2867 = vpack.c.bf16 %v2844, %v2840
        %v2868 = vpack.c.bf16 %v2846, %v2842
        %v2869 = vpack.c.bf16 %v2852, %v2848
        %v2870 = vpack.c.bf16 %v2854, %v2850
        %2871 = vst [vmem:[#allocation2 + $0x50] sm:$0xff] %v2855
        %2872 = vst [vmem:[#allocation2 + $0x58] sm:$0xff] %v2856
        %2873 = vst [vmem:[#allocation2 + $0xd0] sm:$0xff] %v2857
        %2874 = vst [vmem:[#allocation2 + $0xd8] sm:$0xff] %v2858
        %2875 = vst [vmem:[#allocation2 + $0x150] sm:$0xff] %v2859
        %2876 = vst [vmem:[#allocation2 + $0x158] sm:$0xff] %v2860
        %2877 = vst [vmem:[#allocation2 + $0x1d0] sm:$0xff] %v2861
        %2878 = vst [vmem:[#allocation2 + $0x1d8] sm:$0xff] %v2862
        %2879 = vst [vmem:[#allocation2 + $0x250] sm:$0xff] %v2863
        %2880 = vst [vmem:[#allocation2 + $0x258] sm:$0xff] %v2864
        %2881 = vst [vmem:[#allocation2 + $0x2d0] sm:$0xff] %v2865
        %2882 = vst [vmem:[#allocation2 + $0x2d8] sm:$0xff] %v2866
        %2883 = vst [vmem:[#allocation2 + $0x350] sm:$0xff] %v2867
        %2884 = vst [vmem:[#allocation2 + $0x358] sm:$0xff] %v2868
        %2885 = vst [vmem:[#allocation2 + $0x3d0] sm:$0xff] %v2869
        %2886 = vst [vmem:[#allocation2 + $0x3d8] sm:$0xff] %v2870
        %v2887 = vmax.f32 %v1640, %v1642
        %2888 = vmax.xlane.f32.xlu0 %v2887
        %v2889 = vpop.xlane.xlu0 %2888
        %v2890 = vmax.f32 %v1644, %v1646
        %2891 = vmax.xlane.f32.xlu0 %v2890
        %v2892 = vpop.xlane.xlu0 %2891
        %v2893 = vmax.f32 %v1650, %v1652
        %2894 = vmax.xlane.f32.xlu0 %v2893
        %v2895 = vpop.xlane.xlu0 %2894
        %v2896 = vmax.f32 %v1654, %v1656
        %2897 = vmax.xlane.f32.xlu0 %v2896
        %v2898 = vpop.xlane.xlu0 %2897
        %v2899 = vmax.f32 %v1660, %v1662
        %2900 = vmax.xlane.f32.xlu0 %v2899
        %v2901 = vpop.xlane.xlu0 %2900
        %v2902 = vmax.f32 %v1664, %v1666
        %2903 = vmax.xlane.f32.xlu0 %v2902
        %v2904 = vpop.xlane.xlu0 %2903
        %v2905 = vmax.f32 %v1670, %v1672
        %2906 = vmax.xlane.f32.xlu0 %v2905
        %v2907 = vpop.xlane.xlu0 %2906
        %v2908 = vmax.f32 %v1674, %v1676
        %2909 = vmax.xlane.f32.xlu0 %v2908
        %v2910 = vpop.xlane.xlu0 %2909
        %v2911 = vmax.f32 %v1680, %v1682
        %2912 = vmax.xlane.f32.xlu0 %v2911
        %v2913 = vpop.xlane.xlu0 %2912
        %v2914 = vmax.f32 %v1684, %v1686
        %2915 = vmax.xlane.f32.xlu0 %v2914
        %v2916 = vpop.xlane.xlu0 %2915
        %v2917 = vmax.f32 %v1690, %v1692
        %2918 = vmax.xlane.f32.xlu0 %v2917
        %v2919 = vpop.xlane.xlu0 %2918
        %v2920 = vmax.f32 %v1694, %v1696
        %2921 = vmax.xlane.f32.xlu0 %v2920
        %v2922 = vpop.xlane.xlu0 %2921
        %v2923 = vmax.f32 %v1700, %v1702
        %2924 = vmax.xlane.f32.xlu0 %v2923
        %v2925 = vpop.xlane.xlu0 %2924
        %v2926 = vmax.f32 %v1704, %v1706
        %2927 = vmax.xlane.f32.xlu0 %v2926
        %v2928 = vpop.xlane.xlu0 %2927
        %v2929 = vmax.f32 %v1710, %v1712
        %2930 = vmax.xlane.f32.xlu0 %v2929
        %v2931 = vpop.xlane.xlu0 %2930
        %v2932 = vmax.f32 %v1714, %v1716
        %2933 = vmax.xlane.f32.xlu0 %v2932
        %v2934 = vpop.xlane.xlu0 %2933
        %v2935 = vsub.f32 %v1640, %v2889
        %v2936 = vsub.f32 %v1642, %v2889
        %v2937 = vsub.f32 %v1644, %v2892
        %v2938 = vsub.f32 %v1646, %v2892
        %v2939 = vsub.f32 %v1650, %v2895
        %v2940 = vsub.f32 %v1652, %v2895
        %v2941 = vsub.f32 %v1654, %v2898
        %v2942 = vsub.f32 %v1656, %v2898
        %v2943 = vsub.f32 %v1660, %v2901
        %v2944 = vsub.f32 %v1662, %v2901
        %v2945 = vsub.f32 %v1664, %v2904
        %v2946 = vsub.f32 %v1666, %v2904
        %v2947 = vsub.f32 %v1670, %v2907
        %v2948 = vsub.f32 %v1672, %v2907
        %v2949 = vsub.f32 %v1674, %v2910
        %v2950 = vsub.f32 %v1676, %v2910
        %v2951 = vsub.f32 %v1680, %v2913
        %v2952 = vsub.f32 %v1682, %v2913
        %v2953 = vsub.f32 %v1684, %v2916
        %v2954 = vsub.f32 %v1686, %v2916
        %v2955 = vsub.f32 %v1690, %v2919
        %v2956 = vsub.f32 %v1692, %v2919
        %v2957 = vsub.f32 %v1694, %v2922
        %v2958 = vsub.f32 %v1696, %v2922
        %v2959 = vsub.f32 %v1700, %v2925
        %v2960 = vsub.f32 %v1702, %v2925
        %v2961 = vsub.f32 %v1704, %v2928
        %v2962 = vsub.f32 %v1706, %v2928
        %v2963 = vsub.f32 %v1710, %v2931
        %v2964 = vsub.f32 %v1712, %v2931
        %v2965 = vsub.f32 %v1714, %v2934
        %v2966 = vsub.f32 %v1716, %v2934
        %v2967 = vmul.f32 %v2935, 1.442695
        %v2968 = vpow.pop %v2967
        %v2969 = vmul.f32 %v2936, 1.442695
        %v2970 = vpow.pop %v2969
        %v2971 = vmul.f32 %v2937, 1.442695
        %v2972 = vpow.pop %v2971
        %v2973 = vmul.f32 %v2938, 1.442695
        %v2974 = vpow.pop %v2973
        %v2975 = vmul.f32 %v2939, 1.442695
        %v2976 = vpow.pop %v2975
        %v2977 = vmul.f32 %v2940, 1.442695
        %v2978 = vpow.pop %v2977
        %v2979 = vmul.f32 %v2941, 1.442695
        %v2980 = vpow.pop %v2979
        %v2981 = vmul.f32 %v2942, 1.442695
        %v2982 = vpow.pop %v2981
        %v2983 = vmul.f32 %v2943, 1.442695
        %v2984 = vpow.pop %v2983
        %v2985 = vmul.f32 %v2944, 1.442695
        %v2986 = vpow.pop %v2985
        %v2987 = vmul.f32 %v2945, 1.442695
        %v2988 = vpow.pop %v2987
        %v2989 = vmul.f32 %v2946, 1.442695
        %v2990 = vpow.pop %v2989
        %v2991 = vmul.f32 %v2947, 1.442695
        %v2992 = vpow.pop %v2991
        %v2993 = vmul.f32 %v2948, 1.442695
        %v2994 = vpow.pop %v2993
        %v2995 = vmul.f32 %v2949, 1.442695
        %v2996 = vpow.pop %v2995
        %v2997 = vmul.f32 %v2950, 1.442695
        %v2998 = vpow.pop %v2997
        %v2999 = vmul.f32 %v2951, 1.442695
        %v3000 = vpow.pop %v2999
        %v3001 = vmul.f32 %v2952, 1.442695
        %v3002 = vpow.pop %v3001
        %v3003 = vmul.f32 %v2953, 1.442695
        %v3004 = vpow.pop %v3003
        %v3005 = vmul.f32 %v2954, 1.442695
        %v3006 = vpow.pop %v3005
        %v3007 = vmul.f32 %v2955, 1.442695
        %v3008 = vpow.pop %v3007
        %v3009 = vmul.f32 %v2956, 1.442695
        %v3010 = vpow.pop %v3009
        %v3011 = vmul.f32 %v2957, 1.442695
        %v3012 = vpow.pop %v3011
        %v3013 = vmul.f32 %v2958, 1.442695
        %v3014 = vpow.pop %v3013
        %v3015 = vmul.f32 %v2959, 1.442695
        %v3016 = vpow.pop %v3015
        %v3017 = vmul.f32 %v2960, 1.442695
        %v3018 = vpow.pop %v3017
        %v3019 = vmul.f32 %v2961, 1.442695
        %v3020 = vpow.pop %v3019
        %v3021 = vmul.f32 %v2962, 1.442695
        %v3022 = vpow.pop %v3021
        %v3023 = vmul.f32 %v2963, 1.442695
        %v3024 = vpow.pop %v3023
        %v3025 = vmul.f32 %v2964, 1.442695
        %v3026 = vpow.pop %v3025
        %v3027 = vmul.f32 %v2965, 1.442695
        %v3028 = vpow.pop %v3027
        %v3029 = vmul.f32 %v2966, 1.442695
        %v3030 = vpow.pop %v3029
        %v3031 = vpack.c.bf16 %v2972, %v2968
        %v3032 = vpack.c.bf16 %v2974, %v2970
        %v3033 = vpack.c.bf16 %v2980, %v2976
        %v3034 = vpack.c.bf16 %v2982, %v2978
        %v3035 = vpack.c.bf16 %v2988, %v2984
        %v3036 = vpack.c.bf16 %v2990, %v2986
        %v3037 = vpack.c.bf16 %v2996, %v2992
        %v3038 = vpack.c.bf16 %v2998, %v2994
        %v3039 = vpack.c.bf16 %v3004, %v3000
        %v3040 = vpack.c.bf16 %v3006, %v3002
        %v3041 = vpack.c.bf16 %v3012, %v3008
        %v3042 = vpack.c.bf16 %v3014, %v3010
        %v3043 = vpack.c.bf16 %v3020, %v3016
        %v3044 = vpack.c.bf16 %v3022, %v3018
        %v3045 = vpack.c.bf16 %v3028, %v3024
        %v3046 = vpack.c.bf16 %v3030, %v3026
        %3047 = vst [vmem:[#allocation2 + $0x60] sm:$0xff] %v3031
        %3048 = vst [vmem:[#allocation2 + $0x68] sm:$0xff] %v3032
        %3049 = vst [vmem:[#allocation2 + $0xe0] sm:$0xff] %v3033
        %3050 = vst [vmem:[#allocation2 + $0xe8] sm:$0xff] %v3034
        %3051 = vst [vmem:[#allocation2 + $0x160] sm:$0xff] %v3035
        %3052 = vst [vmem:[#allocation2 + $0x168] sm:$0xff] %v3036
        %3053 = vst [vmem:[#allocation2 + $0x1e0] sm:$0xff] %v3037
        %3054 = vst [vmem:[#allocation2 + $0x1e8] sm:$0xff] %v3038
        %3055 = vst [vmem:[#allocation2 + $0x260] sm:$0xff] %v3039
        %3056 = vst [vmem:[#allocation2 + $0x268] sm:$0xff] %v3040
        %3057 = vst [vmem:[#allocation2 + $0x2e0] sm:$0xff] %v3041
        %3058 = vst [vmem:[#allocation2 + $0x2e8] sm:$0xff] %v3042
        %3059 = vst [vmem:[#allocation2 + $0x360] sm:$0xff] %v3043
        %3060 = vst [vmem:[#allocation2 + $0x368] sm:$0xff] %v3044
        %3061 = vst [vmem:[#allocation2 + $0x3e0] sm:$0xff] %v3045
        %3062 = vst [vmem:[#allocation2 + $0x3e8] sm:$0xff] %v3046
        %v3063 = vmax.f32 %v1753, %v1755
        %3064 = vmax.xlane.f32.xlu0 %v3063
        %v3065 = vpop.xlane.xlu0 %3064
        %v3066 = vmax.f32 %v1757, %v1759
        %3067 = vmax.xlane.f32.xlu0 %v3066
        %v3068 = vpop.xlane.xlu0 %3067
        %v3069 = vmax.f32 %v1763, %v1765
        %3070 = vmax.xlane.f32.xlu0 %v3069
        %v3071 = vpop.xlane.xlu0 %3070
        %v3072 = vmax.f32 %v1767, %v1769
        %3073 = vmax.xlane.f32.xlu0 %v3072
        %v3074 = vpop.xlane.xlu0 %3073
        %v3075 = vmax.f32 %v1773, %v1775
        %3076 = vmax.xlane.f32.xlu0 %v3075
        %v3077 = vpop.xlane.xlu0 %3076
        %v3078 = vmax.f32 %v1777, %v1779
        %3079 = vmax.xlane.f32.xlu0 %v3078
        %v3080 = vpop.xlane.xlu0 %3079
        %v3081 = vmax.f32 %v1783, %v1785
        %3082 = vmax.xlane.f32.xlu0 %v3081
        %v3083 = vpop.xlane.xlu0 %3082
        %v3084 = vmax.f32 %v1787, %v1789
        %3085 = vmax.xlane.f32.xlu0 %v3084
        %v3086 = vpop.xlane.xlu0 %3085
        %v3087 = vmax.f32 %v1793, %v1795
        %3088 = vmax.xlane.f32.xlu0 %v3087
        %v3089 = vpop.xlane.xlu0 %3088
        %v3090 = vmax.f32 %v1797, %v1799
        %3091 = vmax.xlane.f32.xlu0 %v3090
        %v3092 = vpop.xlane.xlu0 %3091
        %v3093 = vmax.f32 %v1803, %v1805
        %3094 = vmax.xlane.f32.xlu0 %v3093
        %v3095 = vpop.xlane.xlu0 %3094
        %v3096 = vmax.f32 %v1807, %v1809
        %3097 = vmax.xlane.f32.xlu0 %v3096
        %v3098 = vpop.xlane.xlu0 %3097
        %v3099 = vmax.f32 %v1813, %v1815
        %3100 = vmax.xlane.f32.xlu0 %v3099
        %v3101 = vpop.xlane.xlu0 %3100
        %v3102 = vmax.f32 %v1817, %v1819
        %3103 = vmax.xlane.f32.xlu0 %v3102
        %v3104 = vpop.xlane.xlu0 %3103
        %v3105 = vmax.f32 %v1823, %v1825
        %3106 = vmax.xlane.f32.xlu0 %v3105
        %v3107 = vpop.xlane.xlu0 %3106
        %v3108 = vmax.f32 %v1827, %v1829
        %3109 = vmax.xlane.f32.xlu0 %v3108
        %v3110 = vpop.xlane.xlu0 %3109
        %v3111 = vsub.f32 %v1753, %v3065
        %v3112 = vsub.f32 %v1755, %v3065
        %v3113 = vsub.f32 %v1757, %v3068
        %v3114 = vsub.f32 %v1759, %v3068
        %v3115 = vsub.f32 %v1763, %v3071
        %v3116 = vsub.f32 %v1765, %v3071
        %v3117 = vsub.f32 %v1767, %v3074
        %v3118 = vsub.f32 %v1769, %v3074
        %v3119 = vsub.f32 %v1773, %v3077
        %v3120 = vsub.f32 %v1775, %v3077
        %v3121 = vsub.f32 %v1777, %v3080
        %v3122 = vsub.f32 %v1779, %v3080
        %v3123 = vsub.f32 %v1783, %v3083
        %v3124 = vsub.f32 %v1785, %v3083
        %v3125 = vsub.f32 %v1787, %v3086
        %v3126 = vsub.f32 %v1789, %v3086
        %v3127 = vsub.f32 %v1793, %v3089
        %v3128 = vsub.f32 %v1795, %v3089
        %v3129 = vsub.f32 %v1797, %v3092
        %v3130 = vsub.f32 %v1799, %v3092
        %v3131 = vsub.f32 %v1803, %v3095
        %v3132 = vsub.f32 %v1805, %v3095
        %v3133 = vsub.f32 %v1807, %v3098
        %v3134 = vsub.f32 %v1809, %v3098
        %v3135 = vsub.f32 %v1813, %v3101
        %v3136 = vsub.f32 %v1815, %v3101
        %v3137 = vsub.f32 %v1817, %v3104
        %v3138 = vsub.f32 %v1819, %v3104
        %v3139 = vsub.f32 %v1823, %v3107
        %v3140 = vsub.f32 %v1825, %v3107
        %v3141 = vsub.f32 %v1827, %v3110
        %v3142 = vsub.f32 %v1829, %v3110
        %v3143 = vmul.f32 %v3111, 1.442695
        %v3144 = vpow.pop %v3143
        %v3145 = vmul.f32 %v3112, 1.442695
        %v3146 = vpow.pop %v3145
        %v3147 = vmul.f32 %v3113, 1.442695
        %v3148 = vpow.pop %v3147
        %v3149 = vmul.f32 %v3114, 1.442695
        %v3150 = vpow.pop %v3149
        %v3151 = vmul.f32 %v3115, 1.442695
        %v3152 = vpow.pop %v3151
        %v3153 = vmul.f32 %v3116, 1.442695
        %v3154 = vpow.pop %v3153
        %v3155 = vmul.f32 %v3117, 1.442695
        %v3156 = vpow.pop %v3155
        %v3157 = vmul.f32 %v3118, 1.442695
        %v3158 = vpow.pop %v3157
        %v3159 = vmul.f32 %v3119, 1.442695
        %v3160 = vpow.pop %v3159
        %v3161 = vmul.f32 %v3120, 1.442695
        %v3162 = vpow.pop %v3161
        %v3163 = vmul.f32 %v3121, 1.442695
        %v3164 = vpow.pop %v3163
        %v3165 = vmul.f32 %v3122, 1.442695
        %v3166 = vpow.pop %v3165
        %v3167 = vmul.f32 %v3123, 1.442695
        %v3168 = vpow.pop %v3167
        %v3169 = vmul.f32 %v3124, 1.442695
        %v3170 = vpow.pop %v3169
        %v3171 = vmul.f32 %v3125, 1.442695
        %v3172 = vpow.pop %v3171
        %v3173 = vmul.f32 %v3126, 1.442695
        %v3174 = vpow.pop %v3173
        %v3175 = vmul.f32 %v3127, 1.442695
        %v3176 = vpow.pop %v3175
        %v3177 = vmul.f32 %v3128, 1.442695
        %v3178 = vpow.pop %v3177
        %v3179 = vmul.f32 %v3129, 1.442695
        %v3180 = vpow.pop %v3179
        %v3181 = vmul.f32 %v3130, 1.442695
        %v3182 = vpow.pop %v3181
        %v3183 = vmul.f32 %v3131, 1.442695
        %v3184 = vpow.pop %v3183
        %v3185 = vmul.f32 %v3132, 1.442695
        %v3186 = vpow.pop %v3185
        %v3187 = vmul.f32 %v3133, 1.442695
        %v3188 = vpow.pop %v3187
        %v3189 = vmul.f32 %v3134, 1.442695
        %v3190 = vpow.pop %v3189
        %v3191 = vmul.f32 %v3135, 1.442695
        %v3192 = vpow.pop %v3191
        %v3193 = vmul.f32 %v3136, 1.442695
        %v3194 = vpow.pop %v3193
        %v3195 = vmul.f32 %v3137, 1.442695
        %v3196 = vpow.pop %v3195
        %v3197 = vmul.f32 %v3138, 1.442695
        %v3198 = vpow.pop %v3197
        %v3199 = vmul.f32 %v3139, 1.442695
        %v3200 = vpow.pop %v3199
        %v3201 = vmul.f32 %v3140, 1.442695
        %v3202 = vpow.pop %v3201
        %v3203 = vmul.f32 %v3141, 1.442695
        %v3204 = vpow.pop %v3203
        %v3205 = vmul.f32 %v3142, 1.442695
        %v3206 = vpow.pop %v3205
        %v3207 = vpack.c.bf16 %v3148, %v3144
        %v3208 = vpack.c.bf16 %v3150, %v3146
        %v3209 = vpack.c.bf16 %v3156, %v3152
        %v3210 = vpack.c.bf16 %v3158, %v3154
        %v3211 = vpack.c.bf16 %v3164, %v3160
        %v3212 = vpack.c.bf16 %v3166, %v3162
        %v3213 = vpack.c.bf16 %v3172, %v3168
        %v3214 = vpack.c.bf16 %v3174, %v3170
        %v3215 = vpack.c.bf16 %v3180, %v3176
        %v3216 = vpack.c.bf16 %v3182, %v3178
        %v3217 = vpack.c.bf16 %v3188, %v3184
        %v3218 = vpack.c.bf16 %v3190, %v3186
        %v3219 = vpack.c.bf16 %v3196, %v3192
        %v3220 = vpack.c.bf16 %v3198, %v3194
        %v3221 = vpack.c.bf16 %v3204, %v3200
        %v3222 = vpack.c.bf16 %v3206, %v3202
        %3223 = vst [vmem:[#allocation2 + $0x70] sm:$0xff] %v3207
        %3224 = vst [vmem:[#allocation2 + $0x78] sm:$0xff] %v3208
        %3225 = vst [vmem:[#allocation2 + $0xf0] sm:$0xff] %v3209
        %3226 = vst [vmem:[#allocation2 + $0xf8] sm:$0xff] %v3210
        %3227 = vst [vmem:[#allocation2 + $0x170] sm:$0xff] %v3211
        %3228 = vst [vmem:[#allocation2 + $0x178] sm:$0xff] %v3212
        %3229 = vst [vmem:[#allocation2 + $0x1f0] sm:$0xff] %v3213
        %3230 = vst [vmem:[#allocation2 + $0x1f8] sm:$0xff] %v3214
        %3231 = vst [vmem:[#allocation2 + $0x270] sm:$0xff] %v3215
        %3232 = vst [vmem:[#allocation2 + $0x278] sm:$0xff] %v3216
        %3233 = vst [vmem:[#allocation2 + $0x2f0] sm:$0xff] %v3217
        %3234 = vst [vmem:[#allocation2 + $0x2f8] sm:$0xff] %v3218
        %3235 = vst [vmem:[#allocation2 + $0x370] sm:$0xff] %v3219
        %3236 = vst [vmem:[#allocation2 + $0x378] sm:$0xff] %v3220
        %3237 = vst [vmem:[#allocation2 + $0x3f0] sm:$0xff] %v3221
        %3238 = vst [vmem:[#allocation2 + $0x3f8] sm:$0xff] %v3222
        %v3239 = vld [vmem:[#allocation2] sm:$0xff]
        %v3240 = vld [vmem:[#allocation2 + $0x8] sm:$0xff]
        %v3241 = vld [vmem:[#allocation2 + $0x10] sm:$0xff]
        %v3242 = vld [vmem:[#allocation2 + $0x18] sm:$0xff]
        %v3243 = vld [vmem:[#allocation2 + $0x20] sm:$0xff]
        %v3244 = vld [vmem:[#allocation2 + $0x28] sm:$0xff]
        %v3245 = vld [vmem:[#allocation2 + $0x30] sm:$0xff]
        %v3246 = vld [vmem:[#allocation2 + $0x38] sm:$0xff]
        %v3247 = vld [vmem:[#allocation2 + $0x40] sm:$0xff]
        %v3248 = vld [vmem:[#allocation2 + $0x48] sm:$0xff]
        %v3249 = vld [vmem:[#allocation2 + $0x50] sm:$0xff]
        %v3250 = vld [vmem:[#allocation2 + $0x58] sm:$0xff]
        %v3251 = vld [vmem:[#allocation2 + $0x60] sm:$0xff]
        %v3252 = vld [vmem:[#allocation2 + $0x68] sm:$0xff]
        %v3253 = vld [vmem:[#allocation2 + $0x70] sm:$0xff]
        %v3254 = vld [vmem:[#allocation2 + $0x78] sm:$0xff]
        %v3255 = vld [vmem:[#allocation2 + $0x80] sm:$0xff]
        %v3256 = vld [vmem:[#allocation2 + $0x88] sm:$0xff]
        %v3257 = vld [vmem:[#allocation2 + $0x90] sm:$0xff]
        %v3258 = vld [vmem:[#allocation2 + $0x98] sm:$0xff]
        %v3259 = vld [vmem:[#allocation2 + $0xa0] sm:$0xff]
        %v3260 = vld [vmem:[#allocation2 + $0xa8] sm:$0xff]
        %v3261 = vld [vmem:[#allocation2 + $0xb0] sm:$0xff]
        %v3262 = vld [vmem:[#allocation2 + $0xb8] sm:$0xff]
        %v3263 = vld [vmem:[#allocation2 + $0xc0] sm:$0xff]
        %v3264 = vld [vmem:[#allocation2 + $0xc8] sm:$0xff]
        %v3265 = vld [vmem:[#allocation2 + $0xd0] sm:$0xff]
        %v3266 = vld [vmem:[#allocation2 + $0xd8] sm:$0xff]
        %v3267 = vld [vmem:[#allocation2 + $0xe0] sm:$0xff]
        %v3268 = vld [vmem:[#allocation2 + $0xe8] sm:$0xff]
        %v3269 = vld [vmem:[#allocation2 + $0xf0] sm:$0xff]
        %v3270 = vld [vmem:[#allocation2 + $0xf8] sm:$0xff]
        %v3271 = vld [vmem:[#allocation2 + $0x100] sm:$0xff]
        %v3272 = vld [vmem:[#allocation2 + $0x108] sm:$0xff]
        %v3273 = vld [vmem:[#allocation2 + $0x110] sm:$0xff]
        %v3274 = vld [vmem:[#allocation2 + $0x118] sm:$0xff]
        %v3275 = vld [vmem:[#allocation2 + $0x120] sm:$0xff]
        %v3276 = vld [vmem:[#allocation2 + $0x128] sm:$0xff]
        %v3277 = vld [vmem:[#allocation2 + $0x130] sm:$0xff]
        %v3278 = vld [vmem:[#allocation2 + $0x138] sm:$0xff]
        %v3279 = vld [vmem:[#allocation2 + $0x140] sm:$0xff]
        %v3280 = vld [vmem:[#allocation2 + $0x148] sm:$0xff]
        %v3281 = vld [vmem:[#allocation2 + $0x150] sm:$0xff]
        %v3282 = vld [vmem:[#allocation2 + $0x158] sm:$0xff]
        %v3283 = vld [vmem:[#allocation2 + $0x160] sm:$0xff]
        %v3284 = vld [vmem:[#allocation2 + $0x168] sm:$0xff]
        %v3285 = vld [vmem:[#allocation2 + $0x170] sm:$0xff]
        %v3286 = vld [vmem:[#allocation2 + $0x178] sm:$0xff]
        %v3287 = vld [vmem:[#allocation2 + $0x180] sm:$0xff]
        %v3288 = vld [vmem:[#allocation2 + $0x188] sm:$0xff]
        %v3289 = vld [vmem:[#allocation2 + $0x190] sm:$0xff]
        %v3290 = vld [vmem:[#allocation2 + $0x198] sm:$0xff]
        %v3291 = vld [vmem:[#allocation2 + $0x1a0] sm:$0xff]
        %v3292 = vld [vmem:[#allocation2 + $0x1a8] sm:$0xff]
        %v3293 = vld [vmem:[#allocation2 + $0x1b0] sm:$0xff]
        %v3294 = vld [vmem:[#allocation2 + $0x1b8] sm:$0xff]
        %v3295 = vld [vmem:[#allocation2 + $0x1c0] sm:$0xff]
        %v3296 = vld [vmem:[#allocation2 + $0x1c8] sm:$0xff]
        %v3297 = vld [vmem:[#allocation2 + $0x1d0] sm:$0xff]
        %v3298 = vld [vmem:[#allocation2 + $0x1d8] sm:$0xff]
        %v3299 = vld [vmem:[#allocation2 + $0x1e0] sm:$0xff]
        %v3300 = vld [vmem:[#allocation2 + $0x1e8] sm:$0xff]
        %v3301 = vld [vmem:[#allocation2 + $0x1f0] sm:$0xff]
        %v3302 = vld [vmem:[#allocation2 + $0x1f8] sm:$0xff]
        %v3303 = vld [vmem:[#allocation2 + $0x200] sm:$0xff]
        %v3304 = vld [vmem:[#allocation2 + $0x208] sm:$0xff]
        %v3305 = vld [vmem:[#allocation2 + $0x210] sm:$0xff]
        %v3306 = vld [vmem:[#allocation2 + $0x218] sm:$0xff]
        %v3307 = vld [vmem:[#allocation2 + $0x220] sm:$0xff]
        %v3308 = vld [vmem:[#allocation2 + $0x228] sm:$0xff]
        %v3309 = vld [vmem:[#allocation2 + $0x230] sm:$0xff]
        %v3310 = vld [vmem:[#allocation2 + $0x238] sm:$0xff]
        %v3311 = vld [vmem:[#allocation2 + $0x240] sm:$0xff]
        %v3312 = vld [vmem:[#allocation2 + $0x248] sm:$0xff]
        %v3313 = vld [vmem:[#allocation2 + $0x250] sm:$0xff]
        %v3314 = vld [vmem:[#allocation2 + $0x258] sm:$0xff]
        %v3315 = vld [vmem:[#allocation2 + $0x260] sm:$0xff]
        %v3316 = vld [vmem:[#allocation2 + $0x268] sm:$0xff]
        %v3317 = vld [vmem:[#allocation2 + $0x270] sm:$0xff]
        %v3318 = vld [vmem:[#allocation2 + $0x278] sm:$0xff]
        %v3319 = vld [vmem:[#allocation2 + $0x280] sm:$0xff]
        %v3320 = vld [vmem:[#allocation2 + $0x288] sm:$0xff]
        %v3321 = vld [vmem:[#allocation2 + $0x290] sm:$0xff]
        %v3322 = vld [vmem:[#allocation2 + $0x298] sm:$0xff]
        %v3323 = vld [vmem:[#allocation2 + $0x2a0] sm:$0xff]
        %v3324 = vld [vmem:[#allocation2 + $0x2a8] sm:$0xff]
        %v3325 = vld [vmem:[#allocation2 + $0x2b0] sm:$0xff]
        %v3326 = vld [vmem:[#allocation2 + $0x2b8] sm:$0xff]
        %v3327 = vld [vmem:[#allocation2 + $0x2c0] sm:$0xff]
        %v3328 = vld [vmem:[#allocation2 + $0x2c8] sm:$0xff]
        %v3329 = vld [vmem:[#allocation2 + $0x2d0] sm:$0xff]
        %v3330 = vld [vmem:[#allocation2 + $0x2d8] sm:$0xff]
        %v3331 = vld [vmem:[#allocation2 + $0x2e0] sm:$0xff]
        %v3332 = vld [vmem:[#allocation2 + $0x2e8] sm:$0xff]
        %v3333 = vld [vmem:[#allocation2 + $0x2f0] sm:$0xff]
        %v3334 = vld [vmem:[#allocation2 + $0x2f8] sm:$0xff]
        %v3335 = vld [vmem:[#allocation2 + $0x300] sm:$0xff]
        %v3336 = vld [vmem:[#allocation2 + $0x308] sm:$0xff]
        %v3337 = vld [vmem:[#allocation2 + $0x310] sm:$0xff]
        %v3338 = vld [vmem:[#allocation2 + $0x318] sm:$0xff]
        %v3339 = vld [vmem:[#allocation2 + $0x320] sm:$0xff]
        %v3340 = vld [vmem:[#allocation2 + $0x328] sm:$0xff]
        %v3341 = vld [vmem:[#allocation2 + $0x330] sm:$0xff]
        %v3342 = vld [vmem:[#allocation2 + $0x338] sm:$0xff]
        %v3343 = vld [vmem:[#allocation2 + $0x340] sm:$0xff]
        %v3344 = vld [vmem:[#allocation2 + $0x348] sm:$0xff]
        %v3345 = vld [vmem:[#allocation2 + $0x350] sm:$0xff]
        %v3346 = vld [vmem:[#allocation2 + $0x358] sm:$0xff]
        %v3347 = vld [vmem:[#allocation2 + $0x360] sm:$0xff]
        %v3348 = vld [vmem:[#allocation2 + $0x368] sm:$0xff]
        %v3349 = vld [vmem:[#allocation2 + $0x370] sm:$0xff]
        %v3350 = vld [vmem:[#allocation2 + $0x378] sm:$0xff]
        %v3351 = vld [vmem:[#allocation2 + $0x380] sm:$0xff]
        %v3352 = vld [vmem:[#allocation2 + $0x388] sm:$0xff]
        %v3353 = vld [vmem:[#allocation2 + $0x390] sm:$0xff]
        %v3354 = vld [vmem:[#allocation2 + $0x398] sm:$0xff]
        %v3355 = vld [vmem:[#allocation2 + $0x3a0] sm:$0xff]
        %v3356 = vld [vmem:[#allocation2 + $0x3a8] sm:$0xff]
        %v3357 = vld [vmem:[#allocation2 + $0x3b0] sm:$0xff]
        %v3358 = vld [vmem:[#allocation2 + $0x3b8] sm:$0xff]
        %v3359 = vld [vmem:[#allocation2 + $0x3c0] sm:$0xff]
        %v3360 = vld [vmem:[#allocation2 + $0x3c8] sm:$0xff]
        %v3361 = vld [vmem:[#allocation2 + $0x3d0] sm:$0xff]
        %v3362 = vld [vmem:[#allocation2 + $0x3d8] sm:$0xff]
        %v3363 = vld [vmem:[#allocation2 + $0x3e0] sm:$0xff]
        %v3364 = vld [vmem:[#allocation2 + $0x3e8] sm:$0xff]
        %v3365 = vld [vmem:[#allocation2 + $0x3f0] sm:$0xff]
        %v3366 = vld [vmem:[#allocation2 + $0x3f8] sm:$0xff]
        %3367 = vmatprep.subr.bf16.mxu0 %v3240
        %3368 = vmatpush1.bf16.xpose.msra.mxu0 %v3239
        %3369 = vmatprep.subr.bf16.mxu0 %v3256
        %3370 = vmatpush1.bf16.xpose.msra.mxu0 %v3255
        %3371 = vmatprep.subr.bf16.mxu0 %v3272
        %3372 = vmatpush1.bf16.xpose.msra.mxu0 %v3271
        %3373 = vmatprep.subr.bf16.mxu0 %v3288
        %3374 = vmatpush1.bf16.xpose.msra.mxu0 %v3287
        %3375 = vmatprep.subr.bf16.mxu0 %v3304
        %3376 = vmatpush1.bf16.xpose.msra.mxu0 %v3303
        %3377 = vmatprep.subr.bf16.mxu0 %v3320
        %3378 = vmatpush1.bf16.xpose.msra.mxu0 %v3319
        %3379 = vmatprep.subr.bf16.mxu0 %v3336
        %3380 = vmatpush1.bf16.xpose.msra.mxu0 %v3335
        %3381 = vmatprep.subr.bf16.mxu0 %v3352
        %3382 = vmatpush1.bf16.xpose.msra.mxu0 %v3351
        %3383 = vmatprep.subr.bf16.mxu0 0
        %3384 = vmatpush1.bf16.xpose.msra.mxu0 0
        %3385 = vmatprep.subr.bf16.mxu0 0
        %3386 = vmatpush1.bf16.xpose.msra.mxu0 0
        %3387 = vmatprep.subr.bf16.mxu0 0
        %3388 = vmatpush1.bf16.xpose.msra.mxu0 0
        %3389 = vmatprep.subr.bf16.mxu0 0
        %3390 = vmatpush1.bf16.xpose.msra.mxu0 0
        %3391 = vmatprep.subr.bf16.mxu0 0
        %3392 = vmatpush1.bf16.xpose.msra.mxu0 0
        %3393 = vmatprep.subr.bf16.mxu0 0
        %3394 = vmatpush1.bf16.xpose.msra.mxu0 0
        %3395 = vmatprep.subr.bf16.mxu0 0
        %3396 = vmatpush1.bf16.xpose.msra.mxu0 0
        %3397 = vmatprep.subr.bf16.mxu0 0
        %3398 = vmatpush1.bf16.xpose.msra.mxu0 0
        %3399 = vmatprep.mubr.bf16.mxu0 %v848
        %3400 = vmatmul.mubr.bf16.gmra.mrb[0].mxu0 %v847
        %v3401 = vpop.f32.mrb[0].mxu0
        %v3402 = vadd.f32 0.0, %v3401
        %v3403 = vpop.f32.mrb[0].mxu0
        %v3404 = vpop.f32.mrb[0].mxu0
        %v3405 = vadd.f32 0.0, %v3404
        %v3406 = vpop.f32.mrb[0].mxu0
        %3407 = vdwg.mxu0
        %3408 = vmatprep.subr.bf16.mxu0 %v3242
        %3409 = vmatpush1.bf16.xpose.msra.mxu0 %v3241
        %3410 = vmatprep.subr.bf16.mxu0 %v3258
        %3411 = vmatpush1.bf16.xpose.msra.mxu0 %v3257
        %3412 = vmatprep.subr.bf16.mxu0 %v3274
        %3413 = vmatpush1.bf16.xpose.msra.mxu0 %v3273
        %3414 = vmatprep.subr.bf16.mxu0 %v3290
        %3415 = vmatpush1.bf16.xpose.msra.mxu0 %v3289
        %3416 = vmatprep.subr.bf16.mxu0 %v3306
        %3417 = vmatpush1.bf16.xpose.msra.mxu0 %v3305
        %3418 = vmatprep.subr.bf16.mxu0 %v3322
        %3419 = vmatpush1.bf16.xpose.msra.mxu0 %v3321
        %3420 = vmatprep.subr.bf16.mxu0 %v3338
        %3421 = vmatpush1.bf16.xpose.msra.mxu0 %v3337
        %3422 = vmatprep.subr.bf16.mxu0 %v3354
        %3423 = vmatpush1.bf16.xpose.msra.mxu0 %v3353
        %3424 = vmatprep.subr.bf16.mxu0 0
        %3425 = vmatpush1.bf16.xpose.msra.mxu0 0
        %3426 = vmatprep.subr.bf16.mxu0 0
        %3427 = vmatpush1.bf16.xpose.msra.mxu0 0
        %3428 = vmatprep.subr.bf16.mxu0 0
        %3429 = vmatpush1.bf16.xpose.msra.mxu0 0
        %3430 = vmatprep.subr.bf16.mxu0 0
        %3431 = vmatpush1.bf16.xpose.msra.mxu0 0
        %3432 = vmatprep.subr.bf16.mxu0 0
        %3433 = vmatpush1.bf16.xpose.msra.mxu0 0
        %3434 = vmatprep.subr.bf16.mxu0 0
        %3435 = vmatpush1.bf16.xpose.msra.mxu0 0
        %3436 = vmatprep.subr.bf16.mxu0 0
        %3437 = vmatpush1.bf16.xpose.msra.mxu0 0
        %3438 = vmatprep.subr.bf16.mxu0 0
        %3439 = vmatpush1.bf16.xpose.msra.mxu0 0
        %3440 = vmatprep.mubr.bf16.mxu0 %v850
        %3441 = vmatmul.mubr.bf16.gmra.mrb[0].mxu0 %v849
        %v3442 = vpop.f32.mrb[0].mxu0
        %v3443 = vadd.f32 %v3402, %v3442
        %v3444 = vpop.f32.mrb[0].mxu0
        %v3445 = vpop.f32.mrb[0].mxu0
        %v3446 = vadd.f32 %v3405, %v3445
        %v3447 = vpop.f32.mrb[0].mxu0
        %3448 = vdwg.mxu0
        %3449 = vmatprep.subr.bf16.mxu0 %v3244
        %3450 = vmatpush1.bf16.xpose.msra.mxu0 %v3243
        %3451 = vmatprep.subr.bf16.mxu0 %v3260
        %3452 = vmatpush1.bf16.xpose.msra.mxu0 %v3259
        %3453 = vmatprep.subr.bf16.mxu0 %v3276
        %3454 = vmatpush1.bf16.xpose.msra.mxu0 %v3275
        %3455 = vmatprep.subr.bf16.mxu0 %v3292
        %3456 = vmatpush1.bf16.xpose.msra.mxu0 %v3291
        %3457 = vmatprep.subr.bf16.mxu0 %v3308
        %3458 = vmatpush1.bf16.xpose.msra.mxu0 %v3307
        %3459 = vmatprep.subr.bf16.mxu0 %v3324
        %3460 = vmatpush1.bf16.xpose.msra.mxu0 %v3323
        %3461 = vmatprep.subr.bf16.mxu0 %v3340
        %3462 = vmatpush1.bf16.xpose.msra.mxu0 %v3339
        %3463 = vmatprep.subr.bf16.mxu0 %v3356
        %3464 = vmatpush1.bf16.xpose.msra.mxu0 %v3355
        %3465 = vmatprep.subr.bf16.mxu0 0
        %3466 = vmatpush1.bf16.xpose.msra.mxu0 0
        %3467 = vmatprep.subr.bf16.mxu0 0
        %3468 = vmatpush1.bf16.xpose.msra.mxu0 0
        %3469 = vmatprep.subr.bf16.mxu0 0
        %3470 = vmatpush1.bf16.xpose.msra.mxu0 0
        %3471 = vmatprep.subr.bf16.mxu0 0
        %3472 = vmatpush1.bf16.xpose.msra.mxu0 0
        %3473 = vmatprep.subr.bf16.mxu0 0
        %3474 = vmatpush1.bf16.xpose.msra.mxu0 0
        %3475 = vmatprep.subr.bf16.mxu0 0
        %3476 = vmatpush1.bf16.xpose.msra.mxu0 0
        %3477 = vmatprep.subr.bf16.mxu0 0
        %3478 = vmatpush1.bf16.xpose.msra.mxu0 0
        %3479 = vmatprep.subr.bf16.mxu0 0
        %3480 = vmatpush1.bf16.xpose.msra.mxu0 0
        %3481 = vmatprep.mubr.bf16.mxu0 %v852
        %3482 = vmatmul.mubr.bf16.gmra.mrb[0].mxu0 %v851
        %v3483 = vpop.f32.mrb[0].mxu0
        %v3484 = vadd.f32 %v3443, %v3483
        %v3485 = vpop.f32.mrb[0].mxu0
        %v3486 = vpop.f32.mrb[0].mxu0
        %v3487 = vadd.f32 %v3446, %v3486
        %v3488 = vpop.f32.mrb[0].mxu0
        %3489 = vdwg.mxu0
        %3490 = vmatprep.subr.bf16.mxu0 %v3246
        %3491 = vmatpush1.bf16.xpose.msra.mxu0 %v3245
        %3492 = vmatprep.subr.bf16.mxu0 %v3262
        %3493 = vmatpush1.bf16.xpose.msra.mxu0 %v3261
        %3494 = vmatprep.subr.bf16.mxu0 %v3278
        %3495 = vmatpush1.bf16.xpose.msra.mxu0 %v3277
        %3496 = vmatprep.subr.bf16.mxu0 %v3294
        %3497 = vmatpush1.bf16.xpose.msra.mxu0 %v3293
        %3498 = vmatprep.subr.bf16.mxu0 %v3310
        %3499 = vmatpush1.bf16.xpose.msra.mxu0 %v3309
        %3500 = vmatprep.subr.bf16.mxu0 %v3326
        %3501 = vmatpush1.bf16.xpose.msra.mxu0 %v3325
        %3502 = vmatprep.subr.bf16.mxu0 %v3342
        %3503 = vmatpush1.bf16.xpose.msra.mxu0 %v3341
        %3504 = vmatprep.subr.bf16.mxu0 %v3358
        %3505 = vmatpush1.bf16.xpose.msra.mxu0 %v3357
        %3506 = vmatprep.subr.bf16.mxu0 0
        %3507 = vmatpush1.bf16.xpose.msra.mxu0 0
        %3508 = vmatprep.subr.bf16.mxu0 0
        %3509 = vmatpush1.bf16.xpose.msra.mxu0 0
        %3510 = vmatprep.subr.bf16.mxu0 0
        %3511 = vmatpush1.bf16.xpose.msra.mxu0 0
        %3512 = vmatprep.subr.bf16.mxu0 0
        %3513 = vmatpush1.bf16.xpose.msra.mxu0 0
        %3514 = vmatprep.subr.bf16.mxu0 0
        %3515 = vmatpush1.bf16.xpose.msra.mxu0 0
        %3516 = vmatprep.subr.bf16.mxu0 0
        %3517 = vmatpush1.bf16.xpose.msra.mxu0 0
        %3518 = vmatprep.subr.bf16.mxu0 0
        %3519 = vmatpush1.bf16.xpose.msra.mxu0 0
        %3520 = vmatprep.subr.bf16.mxu0 0
        %3521 = vmatpush1.bf16.xpose.msra.mxu0 0
        %3522 = vmatprep.mubr.bf16.mxu0 %v854
        %3523 = vmatmul.mubr.bf16.gmra.mrb[0].mxu0 %v853
        %v3524 = vpop.f32.mrb[0].mxu0
        %v3525 = vadd.f32 %v3484, %v3524
        %v3526 = vpop.f32.mrb[0].mxu0
        %v3527 = vpop.f32.mrb[0].mxu0
        %v3528 = vadd.f32 %v3487, %v3527
        %v3529 = vpop.f32.mrb[0].mxu0
        %3530 = vdwg.mxu0
        %3531 = vmatprep.subr.bf16.mxu0 %v3248
        %3532 = vmatpush1.bf16.xpose.msra.mxu0 %v3247
        %3533 = vmatprep.subr.bf16.mxu0 %v3264
        %3534 = vmatpush1.bf16.xpose.msra.mxu0 %v3263
        %3535 = vmatprep.subr.bf16.mxu0 %v3280
        %3536 = vmatpush1.bf16.xpose.msra.mxu0 %v3279
        %3537 = vmatprep.subr.bf16.mxu0 %v3296
        %3538 = vmatpush1.bf16.xpose.msra.mxu0 %v3295
        %3539 = vmatprep.subr.bf16.mxu0 %v3312
        %3540 = vmatpush1.bf16.xpose.msra.mxu0 %v3311
        %3541 = vmatprep.subr.bf16.mxu0 %v3328
        %3542 = vmatpush1.bf16.xpose.msra.mxu0 %v3327
        %3543 = vmatprep.subr.bf16.mxu0 %v3344
        %3544 = vmatpush1.bf16.xpose.msra.mxu0 %v3343
        %3545 = vmatprep.subr.bf16.mxu0 %v3360
        %3546 = vmatpush1.bf16.xpose.msra.mxu0 %v3359
        %3547 = vmatprep.subr.bf16.mxu0 0
        %3548 = vmatpush1.bf16.xpose.msra.mxu0 0
        %3549 = vmatprep.subr.bf16.mxu0 0
        %3550 = vmatpush1.bf16.xpose.msra.mxu0 0
        %3551 = vmatprep.subr.bf16.mxu0 0
        %3552 = vmatpush1.bf16.xpose.msra.mxu0 0
        %3553 = vmatprep.subr.bf16.mxu0 0
        %3554 = vmatpush1.bf16.xpose.msra.mxu0 0
        %3555 = vmatprep.subr.bf16.mxu0 0
        %3556 = vmatpush1.bf16.xpose.msra.mxu0 0
        %3557 = vmatprep.subr.bf16.mxu0 0
        %3558 = vmatpush1.bf16.xpose.msra.mxu0 0
        %3559 = vmatprep.subr.bf16.mxu0 0
        %3560 = vmatpush1.bf16.xpose.msra.mxu0 0
        %3561 = vmatprep.subr.bf16.mxu0 0
        %3562 = vmatpush1.bf16.xpose.msra.mxu0 0
        %3563 = vmatprep.mubr.bf16.mxu0 %v856
        %3564 = vmatmul.mubr.bf16.gmra.mrb[0].mxu0 %v855
        %v3565 = vpop.f32.mrb[0].mxu0
        %v3566 = vadd.f32 %v3525, %v3565
        %v3567 = vpop.f32.mrb[0].mxu0
        %v3568 = vpop.f32.mrb[0].mxu0
        %v3569 = vadd.f32 %v3528, %v3568
        %v3570 = vpop.f32.mrb[0].mxu0
        %3571 = vdwg.mxu0
        %3572 = vmatprep.subr.bf16.mxu0 %v3250
        %3573 = vmatpush1.bf16.xpose.msra.mxu0 %v3249
        %3574 = vmatprep.subr.bf16.mxu0 %v3266
        %3575 = vmatpush1.bf16.xpose.msra.mxu0 %v3265
        %3576 = vmatprep.subr.bf16.mxu0 %v3282
        %3577 = vmatpush1.bf16.xpose.msra.mxu0 %v3281
        %3578 = vmatprep.subr.bf16.mxu0 %v3298
        %3579 = vmatpush1.bf16.xpose.msra.mxu0 %v3297
        %3580 = vmatprep.subr.bf16.mxu0 %v3314
        %3581 = vmatpush1.bf16.xpose.msra.mxu0 %v3313
        %3582 = vmatprep.subr.bf16.mxu0 %v3330
        %3583 = vmatpush1.bf16.xpose.msra.mxu0 %v3329
        %3584 = vmatprep.subr.bf16.mxu0 %v3346
        %3585 = vmatpush1.bf16.xpose.msra.mxu0 %v3345
        %3586 = vmatprep.subr.bf16.mxu0 %v3362
        %3587 = vmatpush1.bf16.xpose.msra.mxu0 %v3361
        %3588 = vmatprep.subr.bf16.mxu0 0
        %3589 = vmatpush1.bf16.xpose.msra.mxu0 0
        %3590 = vmatprep.subr.bf16.mxu0 0
        %3591 = vmatpush1.bf16.xpose.msra.mxu0 0
        %3592 = vmatprep.subr.bf16.mxu0 0
        %3593 = vmatpush1.bf16.xpose.msra.mxu0 0
        %3594 = vmatprep.subr.bf16.mxu0 0
        %3595 = vmatpush1.bf16.xpose.msra.mxu0 0
        %3596 = vmatprep.subr.bf16.mxu0 0
        %3597 = vmatpush1.bf16.xpose.msra.mxu0 0
        %3598 = vmatprep.subr.bf16.mxu0 0
        %3599 = vmatpush1.bf16.xpose.msra.mxu0 0
        %3600 = vmatprep.subr.bf16.mxu0 0
        %3601 = vmatpush1.bf16.xpose.msra.mxu0 0
        %3602 = vmatprep.subr.bf16.mxu0 0
        %3603 = vmatpush1.bf16.xpose.msra.mxu0 0
        %3604 = vmatprep.mubr.bf16.mxu0 %v858
        %3605 = vmatmul.mubr.bf16.gmra.mrb[0].mxu0 %v857
        %v3606 = vpop.f32.mrb[0].mxu0
        %v3607 = vadd.f32 %v3566, %v3606
        %v3608 = vpop.f32.mrb[0].mxu0
        %v3609 = vpop.f32.mrb[0].mxu0
        %v3610 = vadd.f32 %v3569, %v3609
        %v3611 = vpop.f32.mrb[0].mxu0
        %3612 = vdwg.mxu0
        %3613 = vmatprep.subr.bf16.mxu0 %v3252
        %3614 = vmatpush1.bf16.xpose.msra.mxu0 %v3251
        %3615 = vmatprep.subr.bf16.mxu0 %v3268
        %3616 = vmatpush1.bf16.xpose.msra.mxu0 %v3267
        %3617 = vmatprep.subr.bf16.mxu0 %v3284
        %3618 = vmatpush1.bf16.xpose.msra.mxu0 %v3283
        %3619 = vmatprep.subr.bf16.mxu0 %v3300
        %3620 = vmatpush1.bf16.xpose.msra.mxu0 %v3299
        %3621 = vmatprep.subr.bf16.mxu0 %v3316
        %3622 = vmatpush1.bf16.xpose.msra.mxu0 %v3315
        %3623 = vmatprep.subr.bf16.mxu0 %v3332
        %3624 = vmatpush1.bf16.xpose.msra.mxu0 %v3331
        %3625 = vmatprep.subr.bf16.mxu0 %v3348
        %3626 = vmatpush1.bf16.xpose.msra.mxu0 %v3347
        %3627 = vmatprep.subr.bf16.mxu0 %v3364
        %3628 = vmatpush1.bf16.xpose.msra.mxu0 %v3363
        %3629 = vmatprep.subr.bf16.mxu0 0
        %3630 = vmatpush1.bf16.xpose.msra.mxu0 0
        %3631 = vmatprep.subr.bf16.mxu0 0
        %3632 = vmatpush1.bf16.xpose.msra.mxu0 0
        %3633 = vmatprep.subr.bf16.mxu0 0
        %3634 = vmatpush1.bf16.xpose.msra.mxu0 0
        %3635 = vmatprep.subr.bf16.mxu0 0
        %3636 = vmatpush1.bf16.xpose.msra.mxu0 0
        %3637 = vmatprep.subr.bf16.mxu0 0
        %3638 = vmatpush1.bf16.xpose.msra.mxu0 0
        %3639 = vmatprep.subr.bf16.mxu0 0
        %3640 = vmatpush1.bf16.xpose.msra.mxu0 0
        %3641 = vmatprep.subr.bf16.mxu0 0
        %3642 = vmatpush1.bf16.xpose.msra.mxu0 0
        %3643 = vmatprep.subr.bf16.mxu0 0
        %3644 = vmatpush1.bf16.xpose.msra.mxu0 0
        %3645 = vmatprep.mubr.bf16.mxu0 %v860
        %3646 = vmatmul.mubr.bf16.gmra.mrb[0].mxu0 %v859
        %v3647 = vpop.f32.mrb[0].mxu0
        %v3648 = vadd.f32 %v3607, %v3647
        %v3649 = vpop.f32.mrb[0].mxu0
        %v3650 = vpop.f32.mrb[0].mxu0
        %v3651 = vadd.f32 %v3610, %v3650
        %v3652 = vpop.f32.mrb[0].mxu0
        %3653 = vdwg.mxu0
        %3654 = vmatprep.subr.bf16.mxu0 %v3254
        %3655 = vmatpush1.bf16.xpose.msra.mxu0 %v3253
        %3656 = vmatprep.subr.bf16.mxu0 %v3270
        %3657 = vmatpush1.bf16.xpose.msra.mxu0 %v3269
        %3658 = vmatprep.subr.bf16.mxu0 %v3286
        %3659 = vmatpush1.bf16.xpose.msra.mxu0 %v3285
        %3660 = vmatprep.subr.bf16.mxu0 %v3302
        %3661 = vmatpush1.bf16.xpose.msra.mxu0 %v3301
        %3662 = vmatprep.subr.bf16.mxu0 %v3318
        %3663 = vmatpush1.bf16.xpose.msra.mxu0 %v3317
        %3664 = vmatprep.subr.bf16.mxu0 %v3334
        %3665 = vmatpush1.bf16.xpose.msra.mxu0 %v3333
        %3666 = vmatprep.subr.bf16.mxu0 %v3350
        %3667 = vmatpush1.bf16.xpose.msra.mxu0 %v3349
        %3668 = vmatprep.subr.bf16.mxu0 %v3366
        %3669 = vmatpush1.bf16.xpose.msra.mxu0 %v3365
        %3670 = vmatprep.subr.bf16.mxu0 0
        %3671 = vmatpush1.bf16.xpose.msra.mxu0 0
        %3672 = vmatprep.subr.bf16.mxu0 0
        %3673 = vmatpush1.bf16.xpose.msra.mxu0 0
        %3674 = vmatprep.subr.bf16.mxu0 0
        %3675 = vmatpush1.bf16.xpose.msra.mxu0 0
        %3676 = vmatprep.subr.bf16.mxu0 0
        %3677 = vmatpush1.bf16.xpose.msra.mxu0 0
        %3678 = vmatprep.subr.bf16.mxu0 0
        %3679 = vmatpush1.bf16.xpose.msra.mxu0 0
        %3680 = vmatprep.subr.bf16.mxu0 0
        %3681 = vmatpush1.bf16.xpose.msra.mxu0 0
        %3682 = vmatprep.subr.bf16.mxu0 0
        %3683 = vmatpush1.bf16.xpose.msra.mxu0 0
        %3684 = vmatprep.subr.bf16.mxu0 0
        %3685 = vmatpush1.bf16.xpose.msra.mxu0 0
        %3686 = vmatprep.mubr.bf16.mxu0 %v862
        %3687 = vmatmul.mubr.bf16.gmra.mrb[0].mxu0 %v861
        %v3688 = vpop.f32.mrb[0].mxu0
        %v3689 = vadd.f32 %v3648, %v3688
        %v3690 = vpop.f32.mrb[0].mxu0
        %v3691 = vpop.f32.mrb[0].mxu0
        %v3692 = vadd.f32 %v3651, %v3691
        %v3693 = vpop.f32.mrb[0].mxu0
        %3694 = vdwg.mxu0
        %3695 = vmatprep.subr.bf16.mxu0 %v3240
        %3696 = vmatpush1.bf16.xpose.msra.mxu0 %v3239
        %3697 = vmatprep.subr.bf16.mxu0 %v3256
        %3698 = vmatpush1.bf16.xpose.msra.mxu0 %v3255
        %3699 = vmatprep.subr.bf16.mxu0 %v3272
        %3700 = vmatpush1.bf16.xpose.msra.mxu0 %v3271
        %3701 = vmatprep.subr.bf16.mxu0 %v3288
        %3702 = vmatpush1.bf16.xpose.msra.mxu0 %v3287
        %3703 = vmatprep.subr.bf16.mxu0 %v3304
        %3704 = vmatpush1.bf16.xpose.msra.mxu0 %v3303
        %3705 = vmatprep.subr.bf16.mxu0 %v3320
        %3706 = vmatpush1.bf16.xpose.msra.mxu0 %v3319
        %3707 = vmatprep.subr.bf16.mxu0 %v3336
        %3708 = vmatpush1.bf16.xpose.msra.mxu0 %v3335
        %3709 = vmatprep.subr.bf16.mxu0 %v3352
        %3710 = vmatpush1.bf16.xpose.msra.mxu0 %v3351
        %3711 = vmatprep.subr.bf16.mxu0 0
        %3712 = vmatpush1.bf16.xpose.msra.mxu0 0
        %3713 = vmatprep.subr.bf16.mxu0 0
        %3714 = vmatpush1.bf16.xpose.msra.mxu0 0
        %3715 = vmatprep.subr.bf16.mxu0 0
        %3716 = vmatpush1.bf16.xpose.msra.mxu0 0
        %3717 = vmatprep.subr.bf16.mxu0 0
        %3718 = vmatpush1.bf16.xpose.msra.mxu0 0
        %3719 = vmatprep.subr.bf16.mxu0 0
        %3720 = vmatpush1.bf16.xpose.msra.mxu0 0
        %3721 = vmatprep.subr.bf16.mxu0 0
        %3722 = vmatpush1.bf16.xpose.msra.mxu0 0
        %3723 = vmatprep.subr.bf16.mxu0 0
        %3724 = vmatpush1.bf16.xpose.msra.mxu0 0
        %3725 = vmatprep.subr.bf16.mxu0 0
        %3726 = vmatpush1.bf16.xpose.msra.mxu0 0
        %3727 = vmatprep.mubr.bf16.mxu0 %v768
        %3728 = vmatmul.mubr.bf16.gmra.mrb[0].mxu0 %v767
        %v3729 = vpop.f32.mrb[0].mxu0
        %v3730 = vadd.f32 0.0, %v3729
        %v3731 = vpop.f32.mrb[0].mxu0
        %v3732 = vpop.f32.mrb[0].mxu0
        %v3733 = vadd.f32 0.0, %v3732
        %v3734 = vpop.f32.mrb[0].mxu0
        %3735 = vdwg.mxu0
        %3736 = vmatprep.subr.bf16.mxu0 %v3242
        %3737 = vmatpush1.bf16.xpose.msra.mxu0 %v3241
        %3738 = vmatprep.subr.bf16.mxu0 %v3258
        %3739 = vmatpush1.bf16.xpose.msra.mxu0 %v3257
        %3740 = vmatprep.subr.bf16.mxu0 %v3274
        %3741 = vmatpush1.bf16.xpose.msra.mxu0 %v3273
        %3742 = vmatprep.subr.bf16.mxu0 %v3290
        %3743 = vmatpush1.bf16.xpose.msra.mxu0 %v3289
        %3744 = vmatprep.subr.bf16.mxu0 %v3306
        %3745 = vmatpush1.bf16.xpose.msra.mxu0 %v3305
        %3746 = vmatprep.subr.bf16.mxu0 %v3322
        %3747 = vmatpush1.bf16.xpose.msra.mxu0 %v3321
        %3748 = vmatprep.subr.bf16.mxu0 %v3338
        %3749 = vmatpush1.bf16.xpose.msra.mxu0 %v3337
        %3750 = vmatprep.subr.bf16.mxu0 %v3354
        %3751 = vmatpush1.bf16.xpose.msra.mxu0 %v3353
        %3752 = vmatprep.subr.bf16.mxu0 0
        %3753 = vmatpush1.bf16.xpose.msra.mxu0 0
        %3754 = vmatprep.subr.bf16.mxu0 0
        %3755 = vmatpush1.bf16.xpose.msra.mxu0 0
        %3756 = vmatprep.subr.bf16.mxu0 0
        %3757 = vmatpush1.bf16.xpose.msra.mxu0 0
        %3758 = vmatprep.subr.bf16.mxu0 0
        %3759 = vmatpush1.bf16.xpose.msra.mxu0 0
        %3760 = vmatprep.subr.bf16.mxu0 0
        %3761 = vmatpush1.bf16.xpose.msra.mxu0 0
        %3762 = vmatprep.subr.bf16.mxu0 0
        %3763 = vmatpush1.bf16.xpose.msra.mxu0 0
        %3764 = vmatprep.subr.bf16.mxu0 0
        %3765 = vmatpush1.bf16.xpose.msra.mxu0 0
        %3766 = vmatprep.subr.bf16.mxu0 0
        %3767 = vmatpush1.bf16.xpose.msra.mxu0 0
        %3768 = vmatprep.mubr.bf16.mxu0 %v770
        %3769 = vmatmul.mubr.bf16.gmra.mrb[0].mxu0 %v769
        %v3770 = vpop.f32.mrb[0].mxu0
        %v3771 = vadd.f32 %v3730, %v3770
        %v3772 = vpop.f32.mrb[0].mxu0
        %v3773 = vpop.f32.mrb[0].mxu0
        %v3774 = vadd.f32 %v3733, %v3773
        %v3775 = vpop.f32.mrb[0].mxu0
        %3776 = vdwg.mxu0
        %3777 = vmatprep.subr.bf16.mxu0 %v3244
        %3778 = vmatpush1.bf16.xpose.msra.mxu0 %v3243
        %3779 = vmatprep.subr.bf16.mxu0 %v3260
        %3780 = vmatpush1.bf16.xpose.msra.mxu0 %v3259
        %3781 = vmatprep.subr.bf16.mxu0 %v3276
        %3782 = vmatpush1.bf16.xpose.msra.mxu0 %v3275
        %3783 = vmatprep.subr.bf16.mxu0 %v3292
        %3784 = vmatpush1.bf16.xpose.msra.mxu0 %v3291
        %3785 = vmatprep.subr.bf16.mxu0 %v3308
        %3786 = vmatpush1.bf16.xpose.msra.mxu0 %v3307
        %3787 = vmatprep.subr.bf16.mxu0 %v3324
        %3788 = vmatpush1.bf16.xpose.msra.mxu0 %v3323
        %3789 = vmatprep.subr.bf16.mxu0 %v3340
        %3790 = vmatpush1.bf16.xpose.msra.mxu0 %v3339
        %3791 = vmatprep.subr.bf16.mxu0 %v3356
        %3792 = vmatpush1.bf16.xpose.msra.mxu0 %v3355
        %3793 = vmatprep.subr.bf16.mxu0 0
        %3794 = vmatpush1.bf16.xpose.msra.mxu0 0
        %3795 = vmatprep.subr.bf16.mxu0 0
        %3796 = vmatpush1.bf16.xpose.msra.mxu0 0
        %3797 = vmatprep.subr.bf16.mxu0 0
        %3798 = vmatpush1.bf16.xpose.msra.mxu0 0
        %3799 = vmatprep.subr.bf16.mxu0 0
        %3800 = vmatpush1.bf16.xpose.msra.mxu0 0
        %3801 = vmatprep.subr.bf16.mxu0 0
        %3802 = vmatpush1.bf16.xpose.msra.mxu0 0
        %3803 = vmatprep.subr.bf16.mxu0 0
        %3804 = vmatpush1.bf16.xpose.msra.mxu0 0
        %3805 = vmatprep.subr.bf16.mxu0 0
        %3806 = vmatpush1.bf16.xpose.msra.mxu0 0
        %3807 = vmatprep.subr.bf16.mxu0 0
        %3808 = vmatpush1.bf16.xpose.msra.mxu0 0
        %3809 = vmatprep.mubr.bf16.mxu0 %v772
        %3810 = vmatmul.mubr.bf16.gmra.mrb[0].mxu0 %v771
        %v3811 = vpop.f32.mrb[0].mxu0
        %v3812 = vadd.f32 %v3771, %v3811
        %v3813 = vpop.f32.mrb[0].mxu0
        %v3814 = vpop.f32.mrb[0].mxu0
        %v3815 = vadd.f32 %v3774, %v3814
        %v3816 = vpop.f32.mrb[0].mxu0
        %3817 = vdwg.mxu0
        %3818 = vmatprep.subr.bf16.mxu0 %v3246
        %3819 = vmatpush1.bf16.xpose.msra.mxu0 %v3245
        %3820 = vmatprep.subr.bf16.mxu0 %v3262
        %3821 = vmatpush1.bf16.xpose.msra.mxu0 %v3261
        %3822 = vmatprep.subr.bf16.mxu0 %v3278
        %3823 = vmatpush1.bf16.xpose.msra.mxu0 %v3277
        %3824 = vmatprep.subr.bf16.mxu0 %v3294
        %3825 = vmatpush1.bf16.xpose.msra.mxu0 %v3293
        %3826 = vmatprep.subr.bf16.mxu0 %v3310
        %3827 = vmatpush1.bf16.xpose.msra.mxu0 %v3309
        %3828 = vmatprep.subr.bf16.mxu0 %v3326
        %3829 = vmatpush1.bf16.xpose.msra.mxu0 %v3325
        %3830 = vmatprep.subr.bf16.mxu0 %v3342
        %3831 = vmatpush1.bf16.xpose.msra.mxu0 %v3341
        %3832 = vmatprep.subr.bf16.mxu0 %v3358
        %3833 = vmatpush1.bf16.xpose.msra.mxu0 %v3357
        %3834 = vmatprep.subr.bf16.mxu0 0
        %3835 = vmatpush1.bf16.xpose.msra.mxu0 0
        %3836 = vmatprep.subr.bf16.mxu0 0
        %3837 = vmatpush1.bf16.xpose.msra.mxu0 0
        %3838 = vmatprep.subr.bf16.mxu0 0
        %3839 = vmatpush1.bf16.xpose.msra.mxu0 0
        %3840 = vmatprep.subr.bf16.mxu0 0
        %3841 = vmatpush1.bf16.xpose.msra.mxu0 0
        %3842 = vmatprep.subr.bf16.mxu0 0
        %3843 = vmatpush1.bf16.xpose.msra.mxu0 0
        %3844 = vmatprep.subr.bf16.mxu0 0
        %3845 = vmatpush1.bf16.xpose.msra.mxu0 0
        %3846 = vmatprep.subr.bf16.mxu0 0
        %3847 = vmatpush1.bf16.xpose.msra.mxu0 0
        %3848 = vmatprep.subr.bf16.mxu0 0
        %3849 = vmatpush1.bf16.xpose.msra.mxu0 0
        %3850 = vmatprep.mubr.bf16.mxu0 %v774
        %3851 = vmatmul.mubr.bf16.gmra.mrb[0].mxu0 %v773
        %v3852 = vpop.f32.mrb[0].mxu0
        %v3853 = vadd.f32 %v3812, %v3852
        %v3854 = vpop.f32.mrb[0].mxu0
        %v3855 = vpop.f32.mrb[0].mxu0
        %v3856 = vadd.f32 %v3815, %v3855
        %v3857 = vpop.f32.mrb[0].mxu0
        %3858 = vdwg.mxu0
        %3859 = vmatprep.subr.bf16.mxu0 %v3248
        %3860 = vmatpush1.bf16.xpose.msra.mxu0 %v3247
        %3861 = vmatprep.subr.bf16.mxu0 %v3264
        %3862 = vmatpush1.bf16.xpose.msra.mxu0 %v3263
        %3863 = vmatprep.subr.bf16.mxu0 %v3280
        %3864 = vmatpush1.bf16.xpose.msra.mxu0 %v3279
        %3865 = vmatprep.subr.bf16.mxu0 %v3296
        %3866 = vmatpush1.bf16.xpose.msra.mxu0 %v3295
        %3867 = vmatprep.subr.bf16.mxu0 %v3312
        %3868 = vmatpush1.bf16.xpose.msra.mxu0 %v3311
        %3869 = vmatprep.subr.bf16.mxu0 %v3328
        %3870 = vmatpush1.bf16.xpose.msra.mxu0 %v3327
        %3871 = vmatprep.subr.bf16.mxu0 %v3344
        %3872 = vmatpush1.bf16.xpose.msra.mxu0 %v3343
        %3873 = vmatprep.subr.bf16.mxu0 %v3360
        %3874 = vmatpush1.bf16.xpose.msra.mxu0 %v3359
        %3875 = vmatprep.subr.bf16.mxu0 0
        %3876 = vmatpush1.bf16.xpose.msra.mxu0 0
        %3877 = vmatprep.subr.bf16.mxu0 0
        %3878 = vmatpush1.bf16.xpose.msra.mxu0 0
        %3879 = vmatprep.subr.bf16.mxu0 0
        %3880 = vmatpush1.bf16.xpose.msra.mxu0 0
        %3881 = vmatprep.subr.bf16.mxu0 0
        %3882 = vmatpush1.bf16.xpose.msra.mxu0 0
        %3883 = vmatprep.subr.bf16.mxu0 0
        %3884 = vmatpush1.bf16.xpose.msra.mxu0 0
        %3885 = vmatprep.subr.bf16.mxu0 0
        %3886 = vmatpush1.bf16.xpose.msra.mxu0 0
        %3887 = vmatprep.subr.bf16.mxu0 0
        %3888 = vmatpush1.bf16.xpose.msra.mxu0 0
        %3889 = vmatprep.subr.bf16.mxu0 0
        %3890 = vmatpush1.bf16.xpose.msra.mxu0 0
        %3891 = vmatprep.mubr.bf16.mxu0 %v776
        %3892 = vmatmul.mubr.bf16.gmra.mrb[0].mxu0 %v775
        %v3893 = vpop.f32.mrb[0].mxu0
        %v3894 = vadd.f32 %v3853, %v3893
        %v3895 = vpop.f32.mrb[0].mxu0
        %v3896 = vpop.f32.mrb[0].mxu0
        %v3897 = vadd.f32 %v3856, %v3896
        %v3898 = vpop.f32.mrb[0].mxu0
        %3899 = vdwg.mxu0
        %3900 = vmatprep.subr.bf16.mxu0 %v3250
        %3901 = vmatpush1.bf16.xpose.msra.mxu0 %v3249
        %3902 = vmatprep.subr.bf16.mxu0 %v3266
        %3903 = vmatpush1.bf16.xpose.msra.mxu0 %v3265
        %3904 = vmatprep.subr.bf16.mxu0 %v3282
        %3905 = vmatpush1.bf16.xpose.msra.mxu0 %v3281
        %3906 = vmatprep.subr.bf16.mxu0 %v3298
        %3907 = vmatpush1.bf16.xpose.msra.mxu0 %v3297
        %3908 = vmatprep.subr.bf16.mxu0 %v3314
        %3909 = vmatpush1.bf16.xpose.msra.mxu0 %v3313
        %3910 = vmatprep.subr.bf16.mxu0 %v3330
        %3911 = vmatpush1.bf16.xpose.msra.mxu0 %v3329
        %3912 = vmatprep.subr.bf16.mxu0 %v3346
        %3913 = vmatpush1.bf16.xpose.msra.mxu0 %v3345
        %3914 = vmatprep.subr.bf16.mxu0 %v3362
        %3915 = vmatpush1.bf16.xpose.msra.mxu0 %v3361
        %3916 = vmatprep.subr.bf16.mxu0 0
        %3917 = vmatpush1.bf16.xpose.msra.mxu0 0
        %3918 = vmatprep.subr.bf16.mxu0 0
        %3919 = vmatpush1.bf16.xpose.msra.mxu0 0
        %3920 = vmatprep.subr.bf16.mxu0 0
        %3921 = vmatpush1.bf16.xpose.msra.mxu0 0
        %3922 = vmatprep.subr.bf16.mxu0 0
        %3923 = vmatpush1.bf16.xpose.msra.mxu0 0
        %3924 = vmatprep.subr.bf16.mxu0 0
        %3925 = vmatpush1.bf16.xpose.msra.mxu0 0
        %3926 = vmatprep.subr.bf16.mxu0 0
        %3927 = vmatpush1.bf16.xpose.msra.mxu0 0
        %3928 = vmatprep.subr.bf16.mxu0 0
        %3929 = vmatpush1.bf16.xpose.msra.mxu0 0
        %3930 = vmatprep.subr.bf16.mxu0 0
        %3931 = vmatpush1.bf16.xpose.msra.mxu0 0
        %3932 = vmatprep.mubr.bf16.mxu0 %v778
        %3933 = vmatmul.mubr.bf16.gmra.mrb[0].mxu0 %v777
        %v3934 = vpop.f32.mrb[0].mxu0
        %v3935 = vadd.f32 %v3894, %v3934
        %v3936 = vpop.f32.mrb[0].mxu0
        %v3937 = vpop.f32.mrb[0].mxu0
        %v3938 = vadd.f32 %v3897, %v3937
        %v3939 = vpop.f32.mrb[0].mxu0
        %3940 = vdwg.mxu0
        %3941 = vmatprep.subr.bf16.mxu0 %v3252
        %3942 = vmatpush1.bf16.xpose.msra.mxu0 %v3251
        %3943 = vmatprep.subr.bf16.mxu0 %v3268
        %3944 = vmatpush1.bf16.xpose.msra.mxu0 %v3267
        %3945 = vmatprep.subr.bf16.mxu0 %v3284
        %3946 = vmatpush1.bf16.xpose.msra.mxu0 %v3283
        %3947 = vmatprep.subr.bf16.mxu0 %v3300
        %3948 = vmatpush1.bf16.xpose.msra.mxu0 %v3299
        %3949 = vmatprep.subr.bf16.mxu0 %v3316
        %3950 = vmatpush1.bf16.xpose.msra.mxu0 %v3315
        %3951 = vmatprep.subr.bf16.mxu0 %v3332
        %3952 = vmatpush1.bf16.xpose.msra.mxu0 %v3331
        %3953 = vmatprep.subr.bf16.mxu0 %v3348
        %3954 = vmatpush1.bf16.xpose.msra.mxu0 %v3347
        %3955 = vmatprep.subr.bf16.mxu0 %v3364
        %3956 = vmatpush1.bf16.xpose.msra.mxu0 %v3363
        %3957 = vmatprep.subr.bf16.mxu0 0
        %3958 = vmatpush1.bf16.xpose.msra.mxu0 0
        %3959 = vmatprep.subr.bf16.mxu0 0
        %3960 = vmatpush1.bf16.xpose.msra.mxu0 0
        %3961 = vmatprep.subr.bf16.mxu0 0
        %3962 = vmatpush1.bf16.xpose.msra.mxu0 0
        %3963 = vmatprep.subr.bf16.mxu0 0
        %3964 = vmatpush1.bf16.xpose.msra.mxu0 0
        %3965 = vmatprep.subr.bf16.mxu0 0
        %3966 = vmatpush1.bf16.xpose.msra.mxu0 0
        %3967 = vmatprep.subr.bf16.mxu0 0
        %3968 = vmatpush1.bf16.xpose.msra.mxu0 0
        %3969 = vmatprep.subr.bf16.mxu0 0
        %3970 = vmatpush1.bf16.xpose.msra.mxu0 0
        %3971 = vmatprep.subr.bf16.mxu0 0
        %3972 = vmatpush1.bf16.xpose.msra.mxu0 0
        %3973 = vmatprep.mubr.bf16.mxu0 %v780
        %3974 = vmatmul.mubr.bf16.gmra.mrb[0].mxu0 %v779
        %v3975 = vpop.f32.mrb[0].mxu0
        %v3976 = vadd.f32 %v3935, %v3975
        %v3977 = vpop.f32.mrb[0].mxu0
        %v3978 = vpop.f32.mrb[0].mxu0
        %v3979 = vadd.f32 %v3938, %v3978
        %v3980 = vpop.f32.mrb[0].mxu0
        %3981 = vdwg.mxu0
        %3982 = vmatprep.subr.bf16.mxu0 %v3254
        %3983 = vmatpush1.bf16.xpose.msra.mxu0 %v3253
        %3984 = vmatprep.subr.bf16.mxu0 %v3270
        %3985 = vmatpush1.bf16.xpose.msra.mxu0 %v3269
        %3986 = vmatprep.subr.bf16.mxu0 %v3286
        %3987 = vmatpush1.bf16.xpose.msra.mxu0 %v3285
        %3988 = vmatprep.subr.bf16.mxu0 %v3302
        %3989 = vmatpush1.bf16.xpose.msra.mxu0 %v3301
        %3990 = vmatprep.subr.bf16.mxu0 %v3318
        %3991 = vmatpush1.bf16.xpose.msra.mxu0 %v3317
        %3992 = vmatprep.subr.bf16.mxu0 %v3334
        %3993 = vmatpush1.bf16.xpose.msra.mxu0 %v3333
        %3994 = vmatprep.subr.bf16.mxu0 %v3350
        %3995 = vmatpush1.bf16.xpose.msra.mxu0 %v3349
        %3996 = vmatprep.subr.bf16.mxu0 %v3366
        %3997 = vmatpush1.bf16.xpose.msra.mxu0 %v3365
        %3998 = vmatprep.subr.bf16.mxu0 0
        %3999 = vmatpush1.bf16.xpose.msra.mxu0 0
        %4000 = vmatprep.subr.bf16.mxu0 0
        %4001 = vmatpush1.bf16.xpose.msra.mxu0 0
        %4002 = vmatprep.subr.bf16.mxu0 0
        %4003 = vmatpush1.bf16.xpose.msra.mxu0 0
        %4004 = vmatprep.subr.bf16.mxu0 0
        %4005 = vmatpush1.bf16.xpose.msra.mxu0 0
        %4006 = vmatprep.subr.bf16.mxu0 0
        %4007 = vmatpush1.bf16.xpose.msra.mxu0 0
        %4008 = vmatprep.subr.bf16.mxu0 0
        %4009 = vmatpush1.bf16.xpose.msra.mxu0 0
        %4010 = vmatprep.subr.bf16.mxu0 0
        %4011 = vmatpush1.bf16.xpose.msra.mxu0 0
        %4012 = vmatprep.subr.bf16.mxu0 0
        %4013 = vmatpush1.bf16.xpose.msra.mxu0 0
        %4014 = vmatprep.mubr.bf16.mxu0 %v782
        %4015 = vmatmul.mubr.bf16.gmra.mrb[0].mxu0 %v781
        %v4016 = vpop.f32.mrb[0].mxu0
        %v4017 = vadd.f32 %v3976, %v4016
        %v4018 = vpop.f32.mrb[0].mxu0
        %v4019 = vpop.f32.mrb[0].mxu0
        %v4020 = vadd.f32 %v3979, %v4019
        %v4021 = vpop.f32.mrb[0].mxu0
        %4022 = vdwg.mxu0
        %v4023 = vrcp.pop %v4017
        %v4024 = vrcp.pop %v4020
        %v4025 = vmul.f32 %v3689, %v4023
        %v4026 = vmul.f32 %v3692, %v4024
        %v4027 = vld [vmem:[%s361] sm:$0xff]
        %v4028 = vld [vmem:[%s361 + $0x8] sm:$0xff]
        %v4029 = vld [vmem:[%s7] sm:$0xff]
        %v4030 = vld [vmem:[%s7 + $0x8] sm:$0xff]
        %v4031 = vpack.c.bf16 %v4030, %v4029
        %v4032 = vpack.c.bf16 %v4026, %v4025
        %v4034 = vsel %vm420, %v4031, 0
        %4036 = vmatprep.subr.bf16.mxu0 0
        %4037 = vmatpush1.bf16.msra.mxu0 %v4032
        %4038 = vmatprep.subr.bf16.mxu0 0
        %4039 = vmatpush1.bf16.msra.mxu0 0
        %4040 = vmatprep.subr.bf16.mxu0 0
        %4041 = vmatpush1.bf16.msra.mxu0 0
        %4042 = vmatprep.subr.bf16.mxu0 0
        %4043 = vmatpush1.bf16.msra.mxu0 0
        %4044 = vmatprep.subr.bf16.mxu0 0
        %4045 = vmatpush1.bf16.msra.mxu0 0
        %4046 = vmatprep.subr.bf16.mxu0 0
        %4047 = vmatpush1.bf16.msra.mxu0 0
        %4048 = vmatprep.subr.bf16.mxu0 0
        %4049 = vmatpush1.bf16.msra.mxu0 0
        %4050 = vmatprep.subr.bf16.mxu0 0
        %4051 = vmatpush1.bf16.msra.mxu0 0
        %4052 = vmatprep.subr.bf16.mxu0 0
        %4053 = vmatpush1.bf16.msra.mxu0 0
        %4054 = vmatprep.subr.bf16.mxu0 0
        %4055 = vmatpush1.bf16.msra.mxu0 0
        %4056 = vmatprep.subr.bf16.mxu0 0
        %4057 = vmatpush1.bf16.msra.mxu0 0
        %4058 = vmatprep.subr.bf16.mxu0 0
        %4059 = vmatpush1.bf16.msra.mxu0 0
        %4060 = vmatprep.subr.bf16.mxu0 0
        %4061 = vmatpush1.bf16.msra.mxu0 0
        %4062 = vmatprep.subr.bf16.mxu0 0
        %4063 = vmatpush1.bf16.msra.mxu0 0
        %4064 = vmatprep.subr.bf16.mxu0 0
        %4065 = vmatpush1.bf16.msra.mxu0 0
        %4066 = vmatprep.subr.bf16.mxu0 0
        %4067 = vmatpush1.bf16.msra.mxu0 0
        %4068 = vmatprep.mubr.bf16.mxu0 0
        %4069 = vmatmul.mubr.bf16.gmra.mrb[0].mxu0 %v4034
        %v4070 = vpop.f32.mrb[0].mxu0
        %v4071 = vadd.f32 0.0, %v4070
        %v4072 = vpop.f32.mrb[0].mxu0
        %v4073 = vpop.f32.mrb[0].mxu0
        %v4074 = vadd.f32 0.0, %v4073
        %v4075 = vpop.f32.mrb[0].mxu0
        %4076 = vdwg.mxu0
        %v4077 = vadd.f32 %v4027, %v4071
        %v4078 = vadd.f32 %v4028, %v4074
        %v4079 = vld [vmem:[%s8] sm:$0xff]
        %v4080 = vld [vmem:[%s8 + $0x8] sm:$0xff]
        %4082 = vset.pattern.permute.xlu0 0
        %4083 = vperm.xlu0 %4082, %v4079
        %v4084 = vpop.permute.xlu0 %4083
        %4087 = vset.pattern.permute.xlu0 0
        %4088 = vperm.xlu0 %4087, %v4080
        %v4089 = vpop.permute.xlu0 %4088
        %v4091 = vadd.f32 %v4077, %v4084
        %v4092 = vadd.f32 %v4078, %v4089
        %4093 = vst [vmem:[%s397] sm:$0xff] %v4091
        %4094 = vst [vmem:[%s397 + $0x8] sm:$0xff] %v4092
        %s4095 = sand.u32 %s243, 1
        %s4096 = sand.u32 %s243, 1
        %s4097 = smul.addr %s4096, 16
        %s4098 = scalar_lea.vmem [#allocation4], %s4097
        // Predicated region
        $region95: #{crau_forward.1} parent=89 // pred_check
          %p4099 = pneg %p253
        $region96: #{crau_forward.1} parent=89 // pred_check_branch
          %4101 = sbr.rel (%p4099) target = $region98
        $region97: #{crau_forward.1} parent=89 // pred_region
          %s4102 = smul.addr %s24, 10
          %s4103 = sadd.s32 %s25, %s4102
          %s4104 = smul.addr %s4103, 8
          %s4105 = scalar_lea.vmem %s9, %s4104
          // Predicated region
          $region99: #{crau_forward.1} parent=97 // pred_check
            _
          $region100: #{crau_forward.1} parent=97 // pred_check_branch
            %4107 = sbr.rel (0) target = $region102
          $region101: #{crau_forward.1} parent=97 // pred_region
            // Predicated region
            $region103: #{crau_forward.1} parent=101 // pred_check
              _
            $region104: #{crau_forward.1} parent=101 // pred_check_branch
              %4109 = sbr.rel (0) target = $region106
            $region105: #{crau_forward.1} parent=101 // pred_region
              // Predicated region
              $region118: #{crau_forward.1} parent=105 // pred_check
                _
              $region119: #{crau_forward.1} parent=105 // pred_check_branch
                %4126 = sbr.rel (0) target = $region121
              $region120: #{crau_forward.1} parent=105 // pred_region
                loop: start=0, step=1, limit=1
                $region122: #{crau_forward.1} parent=120 // loop_pre_header
                  _
                $region123: #{crau_forward.1} parent=120 // loop_header
                  %s4128 = sphi 0, %s4132
                  %p4129 = scmp.ge.s32.totalorder %s4128, 1
                  %s4133 = sphi %s4098, %s4098
                  %s4134 = sphi %s4105, %s4105
                $region124: #{crau_forward.1} parent=120 // loop_header_branch
                  %4131 = sbr.rel (%p4129) target = $region128
                $region125: #{crau_forward.1} parent=120 // loop_body
                  %v4135 = vld [vmem:[%s4133] sm:$0xff]
                  %4136 = vst [vmem:[%s4134] sm:$0xff] %v4135
                  %v4137 = vld [vmem:[%s4133 + $0x8] sm:$0xff]
                  %4138 = vst [vmem:[%s4134 + $0x28] sm:$0xff] %v4137
                $region126: #{crau_forward.1} parent=120 // loop_footer
                  %s4132 = sadd.s32 1, %s4128
                $region127: #{crau_forward.1} parent=120 // loop_footer_branch
                  %4127 = sbr.rel target = $region123
                $region128: #{crau_forward.1} parent=120 // loop_exit
                  _
              $region121: #{crau_forward.1} parent=105 // pred_fallthru
                _
              // Predicated region
              $region129: #{crau_forward.1} parent=105 // pred_check
                _
              $region130: #{crau_forward.1} parent=105 // pred_check_branch
                %4140 = sbr.rel target = $region132
              $region131: #{crau_forward.1} parent=105 // pred_region
                _
              $region132: #{crau_forward.1} parent=105 // pred_fallthru
                _
            $region106: #{crau_forward.1} parent=101 // pred_fallthru
              _
            // Predicated region
            $region107: #{crau_forward.1} parent=101 // pred_check
              _
            $region108: #{crau_forward.1} parent=101 // pred_check_branch
              %4111 = sbr.rel target = $region110
            $region109: #{crau_forward.1} parent=101 // pred_region
              loop: start=0, step=1, limit=1
              $region111: #{crau_forward.1} parent=109 // loop_pre_header
                _
              $region112: #{crau_forward.1} parent=109 // loop_header
                %s4114 = sphi 0, %s4118
                %p4115 = scmp.ge.s32.totalorder %s4114, 1
                %s4119 = sphi %s4098, %s4098
                %s4120 = sphi %s4105, %s4105
              $region113: #{crau_forward.1} parent=109 // loop_header_branch
                %4117 = sbr.rel (%p4115) target = $region117
              $region114: #{crau_forward.1} parent=109 // loop_body
                %v4121 = vld [vmem:[%s4119] sm:$0xff]
                %4122 = vst [vmem:[%s4120] sm:$0xff] %v4121
                %v4123 = vld [vmem:[%s4119 + $0x8] sm:$0xff]
                %4124 = vst [vmem:[%s4120 + $0x28] sm:$0xff] %v4123
              $region115: #{crau_forward.1} parent=109 // loop_footer
                %s4118 = sadd.s32 1, %s4114
              $region116: #{crau_forward.1} parent=109 // loop_footer_branch
                %4113 = sbr.rel target = $region112
              $region117: #{crau_forward.1} parent=109 // loop_exit
                _
            $region110: #{crau_forward.1} parent=101 // pred_fallthru
              _
          $region102: #{crau_forward.1} parent=97 // pred_fallthru
            _
          %4141 = vnop
        $region98: #{crau_forward.1} parent=89 // pred_fallthru
          _
      $region90: #{crau_forward.1} parent=5 // pred_fallthru
        _
      %p4142 = scmp.le.s32.totalorder 2, %s15
      // Predicated region
      $region133: #{crau_forward.1} parent=5 // pred_check
        %p4143 = pneg %p4142
      $region134: #{crau_forward.1} parent=5 // pred_check_branch
        %4145 = sbr.rel (%p4143) target = $region136
      $region135: #{crau_forward.1} parent=5 // pred_region
        %s4146 = ssub.s32 %s15, 2
        // Predicated region
        $region137: #{crau_forward.1} parent=135 // pred_check
          %p4147 = pneg %p259
        $region138: #{crau_forward.1} parent=135 // pred_check_branch
          %4149 = sbr.rel (%p4147) target = $region140
        $region139: #{crau_forward.1} parent=135 // pred_region
          %s4150 = sand.u32 %s244, 1
          %s4151 = sand.u32 %s244, 1
          %s4152 = smul.addr %s4151, 16
          %s4153 = scalar_lea.vmem [#allocation4], %s4152
        $region140: #{crau_forward.1} parent=135 // pred_fallthru
          _
      $region136: #{crau_forward.1} parent=5 // pred_fallthru
        _
    $region6: #{crau_forward.1} parent=1 // loop_footer
      %s19 = sadd.s32 1, %s15
    $region7: #{crau_forward.1} parent=1 // loop_footer_branch
      %14 = sbr.rel target = $region3
    $region8: #{crau_forward.1} parent=1 // loop_exit
      _

</llo_original>
